<compile_context>
chip_gen: v7x
topology: tpu7x:2x2x1
jax: 0.10.0
libtpu: 0.0.40
codegen_flags: <defaults>
</compile_context>

<pallas_src>
import math
from functools import partial

import jax
import jax.numpy as jnp
from jax.experimental import pallas as pl
from jax.experimental.pallas import tpu as pltpu

F32 = jnp.float32
BF16 = jnp.bfloat16
LANE = 128

_VMEM_LIMIT_CACHE = None


# --------------------------------------------------------------------------- #
# helpers
# --------------------------------------------------------------------------- #
def _vmem_limit_bytes():
    """Generation-aware VMEM budget: ~3/4 of physical, capped at 100 MiB
    (48 MiB on v7x's 64 MiB; 96 MiB on v5e/v6e's 128 MiB)."""
    global _VMEM_LIMIT_CACHE
    if _VMEM_LIMIT_CACHE is None:
        cap = 64 * 1024 * 1024
        try:
            info = pltpu.get_tpu_info()
            cap = int(getattr(info, "vmem_capacity_bytes", 0)) or cap
        except Exception:
            pass
        _VMEM_LIMIT_CACHE = int(min(cap * 3 // 4, 100 * 1024 * 1024))
    return _VMEM_LIMIT_CACHE


def _round_up(x, m):
    return ((x + m - 1) // m) * m


def _pad_to(a, shape):
    return jnp.pad(a, [(0, s - d) for d, s in zip(a.shape, shape)])


def _full_spec(shape):
    nd = len(shape)
    return pl.BlockSpec(shape, lambda *_: (0,) * nd)


def _pick_row_tile(n):
    for t in (512, 256, 128, 64, 32, 16, 8):
        if n % t == 0:
            return t
    return n  # block equals full dim -> still legal


def _pick_batch_tile(B, L, Hp, vmem_limit):
    """Largest divisor of B such that (a) ~10 live (Bb, L, Hp) f32 temporaries fit
    in a quarter of the VMEM budget and (b) Bb*L reaches ~256 MXU rows."""
    per_seq = L * Hp * 4
    cap = max(1, (vmem_limit // 4) // max(1, 10 * per_seq))
    target = max(1, (256 + L - 1) // L)
    best = 1
    for d in range(1, B + 1):
        if B % d:
            continue
        if d > cap:
            break
        best = d
        if d >= target:
            break
    return best


# --------------------------------------------------------------------------- #
# small fused kernels (input init, time MLP, per-block time projection, head)
# --------------------------------------------------------------------------- #
def _linear_act_kernel(x_ref, w_ref, b_ref, o_ref, *, act):
    y = jnp.dot(x_ref[...].astype(BF16), w_ref[...],
                preferred_element_type=F32) + b_ref[...]
    if act == "relu":
        y = jnp.maximum(y, 0.0)
    elif act == "silu":
        y = y * jax.nn.sigmoid(y)
    o_ref[...] = y


def linear_act(x, w_bf16, b, act="none"):
    """y = act(x @ w + b); x: (N, Din) f32, w: (Din, Dout) bf16, b: (1, Dout)."""
    n, din = x.shape
    dout = w_bf16.shape[1]
    rt = _pick_row_tile(n)
    return pl.pallas_call(
        partial(_linear_act_kernel, act=act),
        out_shape=jax.ShapeDtypeStruct((n, dout), F32),
        grid=(n // rt,),
        in_specs=[pl.BlockSpec((rt, din), lambda i: (i, 0)),
                  pl.BlockSpec((din, dout), lambda i: (0, 0)),
                  pl.BlockSpec((1, dout), lambda i: (0, 0))],
        out_specs=pl.BlockSpec((rt, dout), lambda i: (i, 0)),
        compiler_params=pltpu.CompilerParams(
            dimension_semantics=("parallel",),
            vmem_limit_bytes=_vmem_limit_bytes()),
    )(x, w_bf16, b)


def _time_mlp_kernel(te_ref, w1_ref, b1_ref, w2_ref, b2_ref, o_ref):
    h = jnp.dot(te_ref[...].astype(BF16), w1_ref[...],
                preferred_element_type=F32) + b1_ref[...]
    h = h * jax.nn.sigmoid(h)                      # SiLU
    h = jnp.dot(h.astype(BF16), w2_ref[...],
                preferred_element_type=F32) + b2_ref[...]
    o_ref[...] = h * jax.nn.sigmoid(h)             # SiLU


def time_mlp(te, w1, b1, w2, b2):
    """Fused time_init: SiLU(SiLU(te @ w1 + b1) @ w2 + b2); te: (B, E) -> (B, Hp)."""
    b, e = te.shape
    hp = w1.shape[1]
    return pl.pallas_call(
        _time_mlp_kernel,
        out_shape=jax.ShapeDtypeStruct((b, hp), F32),
        in_specs=[_full_spec((b, e)), _full_spec((e, hp)), _full_spec((1, hp)),
                  _full_spec((hp, hp)), _full_spec((1, hp))],
        out_specs=_full_spec((b, hp)),
        compiler_params=pltpu.CompilerParams(vmem_limit_bytes=_vmem_limit_bytes()),
    )(te, w1, b1, w2, b2)


def _time_proj_kernel(temb_ref, w_ref, b_ref, o_ref):
    o_ref[0] = jnp.dot(temb_ref[...].astype(BF16), w_ref[0],
                       preferred_element_type=F32) + b_ref[0]


def time_block_proj(t_emb, tw_stack, tb_stack):
    """Precompute t_blk[n] = t_emb @ time_w[n] + time_b[n] for every block.
    t_emb: (B, Hp), tw_stack: (nb, Hp, Hp) bf16, tb_stack: (nb, 1, Hp) -> (nb, B, Hp)."""
    nb, hp, _ = tw_stack.shape
    b = t_emb.shape[0]
    return pl.pallas_call(
        _time_proj_kernel,
        out_shape=jax.ShapeDtypeStruct((nb, b, hp), F32),
        grid=(nb,),
        in_specs=[pl.BlockSpec((b, hp), lambda n: (0, 0)),
                  pl.BlockSpec((1, hp, hp), lambda n: (n, 0, 0)),
                  pl.BlockSpec((1, 1, hp), lambda n: (n, 0, 0))],
        out_specs=pl.BlockSpec((1, b, hp), lambda n: (n, 0, 0)),
        compiler_params=pltpu.CompilerParams(
            dimension_semantics=("parallel",),
            vmem_limit_bytes=_vmem_limit_bytes()),
    )(t_emb, tw_stack, tb_stack)


def _out_head_kernel(s_ref, w1_ref, b1_ref, w2_ref, b2_ref, xin_ref, o_ref):
    h = jnp.dot(s_ref[...].astype(BF16), w1_ref[...],
                preferred_element_type=F32) + b1_ref[...]
    h = jnp.maximum(h, 0.0)
    o_ref[...] = (jnp.dot(h.astype(BF16), w2_ref[...],
                          preferred_element_type=F32)
                  + b2_ref[...] + xin_ref[...])      # init_skip residual fused


def out_head(s, w1, b1, w2, b2, xin_pad):
    """Fused out_linear: (skip @ w1 + b1).relu() @ w2 + b2 + input ; lane-dense."""
    n, hp = s.shape
    dp = w2.shape[1]
    rt = _pick_row_tile(n)
    return pl.pallas_call(
        _out_head_kernel,
        out_shape=jax.ShapeDtypeStruct((n, dp), F32),
        grid=(n // rt,),
        in_specs=[pl.BlockSpec((rt, hp), lambda i: (i, 0)),
                  pl.BlockSpec((hp, hp), lambda i: (0, 0)),
                  pl.BlockSpec((1, hp), lambda i: (0, 0)),
                  pl.BlockSpec((hp, dp), lambda i: (0, 0)),
                  pl.BlockSpec((1, dp), lambda i: (0, 0)),
                  pl.BlockSpec((rt, dp), lambda i: (i, 0))],
        out_specs=pl.BlockSpec((rt, dp), lambda i: (i, 0)),
        compiler_params=pltpu.CompilerParams(
            dimension_semantics=("parallel",),
            vmem_limit_bytes=_vmem_limit_bytes()),
    )(s, w1, b1, w2, b2, xin_pad)


# --------------------------------------------------------------------------- #
# single fused S4 residual stack: ONE pallas_call for all blocks
#   grid = (batch_tiles, n_blocks); x carried in VMEM scratch, skip accumulated
#   in the resident output block.
# --------------------------------------------------------------------------- #
def _make_stack_kernel(*, h_true, seq_len, eps, has_features):
    def kernel(*refs):
        if has_features:
            (x0_ref, t_ref, feat_ref,
             lng_ref, lnb_ref, kf_ref, kb_ref, dv_ref,
             s4w_ref, s4b_ref, few_ref, feb_ref,
             c12w_ref, c12b_ref, skip_ref, x_sc) = refs
        else:
            (x0_ref, t_ref,
             lng_ref, lnb_ref, kf_ref, kb_ref, dv_ref,
             s4w_ref, s4b_ref,
             c12w_ref, c12b_ref, skip_ref, x_sc) = refs
            feat_ref = few_ref = feb_ref = None

        blk = pl.program_id(1)

        @pl.when(blk == 0)
        def _():
            x_sc[...] = x0_ref[...]                          # carried activation
            skip_ref[...] = jnp.zeros_like(skip_ref)         # skip accumulator

        bb, lseq, hp = x_sc.shape
        rows = bb * lseq

        x = x_sc[...]                                        # (Bb, L, Hp) f32
        xt = x + t_ref[0]                                    # (Bb, 1, Hp) bcast over L

        # --- LayerNorm over true hidden dim (padded lanes are zero => inert) ---
        inv_h = 1.0 / h_true
        mu = jnp.sum(xt, axis=-1, keepdims=True) * inv_h
        ex2 = jnp.sum(xt * xt, axis=-1, keepdims=True) * inv_h
        var = jnp.maximum(ex2 - mu * mu, 0.0)
        z = (xt - mu) * jax.lax.rsqrt(var + eps) * lng_ref[0] + lnb_ref[0]

        # --- bidirectional depthwise (per-channel) sequence conv ---
        #   y[n,h] = sum_{d>=0} kf[d,h]*z[n-d,h] + sum_{d>=1} kb[d-1,h]*z[n+d,h]
        # computed on the flat (Bb*L, Hp) slab via masked circular rolls (XLU);
        # the mask kills wrapped / cross-sequence rows. Two accumulators shorten
        # the serial VALU chain.
        zf = z.reshape(rows, hp)
        pos = jax.lax.broadcasted_iota(jnp.int32, (rows, hp), 0) % seq_len
        zeros = jnp.zeros((rows, hp), F32)
        acc_f = zf * kf_ref[0, 0, :]
        acc_b = zeros
        for d in range(1, seq_len):                          # static unroll
            fwd = pltpu.roll(zf, d, 0)                       # zf[n-d] (circular)
            acc_f = acc_f + jnp.where(pos >= d, fwd, zeros) * kf_ref[0, d, :]
            bwd = pltpu.roll(zf, rows - d, 0)                # zf[n+d] (circular)
            acc_b = acc_b + jnp.where(pos < seq_len - d, bwd, zeros) * kb_ref[0, d - 1, :]

        y = acc_f + acc_b + zf * dv_ref[0]                   # S4 "D" skip
        # TODO(synk): reference S4 uses exact (erf) GELU; tanh approximation here.
        y = jax.nn.gelu(y)
        y = jnp.dot(y.astype(BF16), s4w_ref[0],
                    preferred_element_type=F32) + s4b_ref[0]  # S4 output proj
        out = y + xt.reshape(rows, hp)                        # S4Layer residual

        # --- feature encoder (1x1 conv over features), trace-time optional ---
        if has_features:
            f = feat_ref[...].reshape(rows, feat_ref.shape[-1])
            out = out + jnp.dot(f.astype(BF16), few_ref[0],
                                preferred_element_type=F32) + feb_ref[0]

        # --- tanh*sigmoid gate; fused (Hp, 2Hp) matmul for both 1x1 convs ---
        g = jnp.tanh(out) * jax.nn.sigmoid(out)
        o12 = jnp.dot(g.astype(BF16), c12w_ref[0],
                      preferred_element_type=F32) + c12b_ref[0]
        out1 = o12[:, :hp] + x.reshape(rows, hp)              # residual to block input
        out2 = o12[:, hp:]

        x_sc[...] = out1.reshape(bb, lseq, hp)                 # carry to next block
        skip_ref[...] = skip_ref[...] + out2.reshape(bb, lseq, hp)

    return kernel


def s4_stack(x, t_all, features, params, *, h_true, seq_len):
    """Run all residual blocks in one fused pallas_call.
    x: (B, L, Hp), t_all: (nb, B, 1, Hp), features: (B, L, F) or None.
    Returns skip sum (B, L, Hp)."""
    B, L, Hp = x.shape
    nb = params["blk_ln_g"].shape[0]
    vmem_limit = _vmem_limit_bytes()
    Bb = _pick_batch_tile(B, L, Hp, vmem_limit)
    has_features = features is not None

    act = pl.BlockSpec((Bb, L, Hp), lambda bt, blk: (bt, 0, 0))
    vec_spec = pl.BlockSpec((1, 1, Hp), lambda bt, blk: (blk, 0, 0))
    tap_spec = pl.BlockSpec((1, L, Hp), lambda bt, blk: (blk, 0, 0))
    sq_spec = pl.BlockSpec((1, Hp, Hp), lambda bt, blk: (blk, 0, 0))

    in_specs = [act,
                pl.BlockSpec((1, Bb, 1, Hp), lambda bt, blk: (blk, bt, 0, 0))]
    args = [x, t_all]
    if has_features:
        Fd = features.shape[-1]
        in_specs.append(pl.BlockSpec((Bb, L, Fd), lambda bt, blk: (bt, 0, 0)))
        args.append(features)
    in_specs += [vec_spec, vec_spec, tap_spec, tap_spec, vec_spec, sq_spec, vec_spec]
    args += [params["blk_ln_g"], params["blk_ln_b"],
             params["blk_k_fwd"], params["blk_k_bwd"], params["blk_s4_D"],
             params["blk_s4_w"], params["blk_s4_b"]]
    if has_features:
        Fd = features.shape[-1]
        in_specs += [pl.BlockSpec((1, Fd, Hp), lambda bt, blk: (blk, 0, 0)), vec_spec]
        args += [params["blk_fe_w"], params["blk_fe_b"]]
    in_specs += [pl.BlockSpec((1, Hp, 2 * Hp), lambda bt, blk: (blk, 0, 0)),
                 pl.BlockSpec((1, 1, 2 * Hp), lambda bt, blk: (blk, 0, 0))]
    args += [params["blk_c12_w"], params["blk_c12_b"]]

    kern = _make_stack_kernel(h_true=h_true, seq_len=seq_len, eps=1e-5,
                              has_features=has_features)
    return pl.pallas_call(
        kern,
        out_shape=jax.ShapeDtypeStruct((B, L, Hp), F32),
        grid=(B // Bb, nb),
        in_specs=in_specs,
        out_specs=act,
        scratch_shapes=[pltpu.VMEM((Bb, L, Hp), F32)],
        compiler_params=pltpu.CompilerParams(
            dimension_semantics=("parallel", "arbitrary"),
            vmem_limit_bytes=vmem_limit),
    )(*args)


# --------------------------------------------------------------------------- #
# plain-JAX glue: embeddings, parameter setup / padding, forward
# --------------------------------------------------------------------------- #
def sinusoidal_embedding(t, dim):
    half = dim // 2
    denom = max(half - 1, 1)
    freq = jnp.exp(jnp.arange(half, dtype=F32) * -(math.log(10000.0) / denom))
    arg = t[:, None] * freq[None, :]
    return jnp.concatenate([jnp.sin(arg), jnp.cos(arg)], axis=-1)


def init_params(key, input_dim, hidden, output_dim, step_emb, n_blocks,
                n_feat, seq_len):
    keys = iter(jax.random.split(key, 128))
    scale = 0.05

    def dense(din, dout):
        return (scale * jax.random.normal(next(keys), (din, dout), F32),
                scale * jax.random.normal(next(keys), (dout,), F32))

    p = {}
    p["in_w"], p["in_b"] = dense(input_dim, hidden)
    p["t1_w"], p["t1_b"] = dense(step_emb, hidden)
    p["t2_w"], p["t2_b"] = dense(hidden, hidden)
    p["o1_w"], p["o1_b"] = dense(hidden, hidden)
    p["o2_w"], p["o2_b"] = dense(hidden, output_dim)

    blocks = []
    for _ in range(n_blocks):
        bp = {}
        bp["ln_g"] = jnp.ones((hidden,), F32)
        bp["ln_b"] = jnp.zeros((hidden,), F32)
        bp["k_fwd"] = scale * jax.random.normal(next(keys), (hidden, seq_len))
        bp["k_bwd"] = scale * jax.random.normal(next(keys), (hidden, seq_len))
        bp["s4_D"] = scale * jax.random.normal(next(keys), (hidden,))
        bp["s4_out_w"], bp["s4_out_b"] = dense(hidden, hidden)
        bp["time_w"], bp["time_b"] = dense(hidden, hidden)
        bp["c1_w"], bp["c1_b"] = dense(hidden, hidden)
        bp["c2_w"], bp["c2_b"] = dense(hidden, hidden)
        bp["fe_w"], bp["fe_b"] = dense(n_feat, hidden)
        blocks.append(bp)
    p["blocks"] = blocks
    return p


def prepare_params(raw, lane=LANE):
    """Zero-pad hidden / output dims to 128-lane multiples (padded entries stay
    inert through the network), cast matmul weights to bf16, stack per-block
    weights along a leading (n_blocks, ...) axis and fuse c1/c2 into one matmul."""
    H = raw["in_w"].shape[1]
    Hp = _round_up(H, lane)
    Dout = raw["o2_w"].shape[1]
    Dp = _round_up(Dout, lane)

    def wmat(a, cols):
        return _pad_to(a, (a.shape[0], cols)).astype(BF16)

    def wsq(a):
        return _pad_to(a, (Hp, Hp)).astype(BF16)

    def vec(a, cols):
        return _pad_to(a.reshape(1, -1), (1, cols)).astype(F32)

    p = {
        "in_w": wmat(raw["in_w"], Hp), "in_b": vec(raw["in_b"], Hp),
        "t1_w": wmat(raw["t1_w"], Hp), "t1_b": vec(raw["t1_b"], Hp),
        "t2_w": wsq(raw["t2_w"]), "t2_b": vec(raw["t2_b"], Hp),
        "o1_w": wsq(raw["o1_w"]), "o1_b": vec(raw["o1_b"], Hp),
        "o2_w": _pad_to(raw["o2_w"], (Hp, Dp)).astype(BF16),
        "o2_b": vec(raw["o2_b"], Dp),
    }

    blocks = raw["blocks"]
    L = blocks[0]["k_fwd"].shape[1]

    def stack(fn):
        return jnp.stack([fn(rb) for rb in blocks], axis=0)

    p["blk_time_w"] = stack(lambda rb: wsq(rb["time_w"]))
    p["blk_time_b"] = stack(lambda rb: vec(rb["time_b"], Hp))
    p["blk_ln_g"] = stack(lambda rb: vec(rb["ln_g"], Hp))
    p["blk_ln_b"] = stack(lambda rb: vec(rb["ln_b"], Hp))
    p["blk_k_fwd"] = stack(lambda rb: _pad_to(rb["k_fwd"].T, (L, Hp)).astype(F32))
    p["blk_k_bwd"] = stack(lambda rb: _pad_to(rb["k_bwd"].T, (L, Hp)).astype(F32))
    p["blk_s4_D"] = stack(lambda rb: vec(rb["s4_D"], Hp))
    p["blk_s4_w"] = stack(lambda rb: wsq(rb["s4_out_w"]))
    p["blk_s4_b"] = stack(lambda rb: vec(rb["s4_out_b"], Hp))
    p["blk_fe_w"] = stack(lambda rb: wmat(rb["fe_w"], Hp))
    p["blk_fe_b"] = stack(lambda rb: vec(rb["fe_b"], Hp))
    # fused out_linear1 / out_linear2: one (Hp, 2*Hp) matmul (fills 256-wide MXU)
    p["blk_c12_w"] = stack(lambda rb: jnp.concatenate(
        [wsq(rb["c1_w"]), wsq(rb["c2_w"])], axis=1))
    p["blk_c12_b"] = stack(lambda rb: jnp.concatenate(
        [vec(rb["c1_b"], Hp), vec(rb["c2_b"], Hp)], axis=1))
    return p


def backbone_forward(params, x_in, t, features=None, *, hidden_dim, output_dim):
    """x_in: (B, L, input_dim), t: (B,), features: (B, L, num_features) or None."""
    B, L, Din = x_in.shape
    Hp = params["in_w"].shape[1]
    Dp = params["o2_w"].shape[1]
    rows = B * L

    # input_init: Linear + ReLU
    x = linear_act(x_in.reshape(rows, Din), params["in_w"], params["in_b"],
                   act="relu").reshape(B, L, Hp)

    # step_embedding + time_init (fused) + hoisted per-block time_linear
    te = sinusoidal_embedding(t, params["t1_w"].shape[0])
    t_emb = time_mlp(te, params["t1_w"], params["t1_b"],
                     params["t2_w"], params["t2_b"])                 # (B, Hp)
    nb = params["blk_time_w"].shape[0]
    t_all = time_block_proj(t_emb, params["blk_time_w"],
                            params["blk_time_b"]).reshape(nb, B, 1, Hp)

    # all residual blocks fused in one call; returns the summed skip
    skip = s4_stack(x, t_all, features, params, h_true=hidden_dim, seq_len=L)

    # out_linear (Linear + ReLU + Linear) with the init_skip residual fused
    x_in_pad = _pad_to(x_in.reshape(rows, Din), (rows, Dp))
    o = out_head(skip.reshape(rows, Hp), params["o1_w"], params["o1_b"],
                 params["o2_w"], params["o2_b"], x_in_pad)
    return o[:, :output_dim].reshape(B, L, output_dim)


if __name__ == "__main__":
    B, L = 2, 16
    input_dim, hidden_dim, output_dim = 4, 32, 4
    step_emb = 16
    num_blocks, num_features = 2, 3

    key = jax.random.PRNGKey(0)
    k_x, k_t, k_f, k_p = jax.random.split(key, 4)
    x_in = jax.random.normal(k_x, (B, L, input_dim), F32)
    t = jnp.abs(jax.random.normal(k_t, (B,), F32)) * 10.0
    features = jax.random.normal(k_f, (B, L, num_features), F32)

    raw = init_params(k_p, input_dim, hidden_dim, output_dim, step_emb,
                      num_blocks, num_features, L)
    params = prepare_params(raw)

    fwd = jax.jit(partial(backbone_forward,
                          hidden_dim=hidden_dim, output_dim=output_dim))
    out = fwd(params, x_in, t, features)
    out = jax.block_until_ready(out)
    assert out.shape == (B, L, output_dim), out.shape
    assert bool(jnp.all(jnp.isfinite(out)))
    print("KERNEL_OK")
</pallas_src>

<mosaic_0001>
module attributes {stable_mosaic.version = 11 : i64} {
  func.func @_time_mlp_kernel(%arg0: memref<2x16xf32, #tpu.memory_space<vmem>>, %arg1: memref<16x128xbf16, #tpu.memory_space<vmem>>, %arg2: memref<1x128xf32, #tpu.memory_space<vmem>>, %arg3: memref<128x128xbf16, #tpu.memory_space<vmem>>, %arg4: memref<1x128xf32, #tpu.memory_space<vmem>>, %arg5: memref<2x128xf32, #tpu.memory_space<vmem>>) attributes {dimension_semantics = [], scalar_prefetch = 0 : i64, scratch_operands = 0 : i64, tpu.core_type = #tpu.core_type<tc>} {
    %c0 = arith.constant 0 : index
    %c0_0 = arith.constant 0 : index
    %0 = vector.load %arg0[%c0, %c0_0] : memref<2x16xf32, #tpu.memory_space<vmem>>, vector<2x16xf32>
    %1 = arith.truncf %0 : vector<2x16xf32> to vector<2x16xbf16>
    %c0_1 = arith.constant 0 : index
    %c0_2 = arith.constant 0 : index
    %2 = vector.load %arg1[%c0_1, %c0_2] : memref<16x128xbf16, #tpu.memory_space<vmem>>, vector<16x128xbf16>
    %cst = arith.constant dense<0.000000e+00> : vector<2x128xf32>
    %3 = tpu.matmul %1, %2, %cst {dimension_numbers = #tpu.dot_dimension_numbers<[1], [0], [0], [1], [0, 0, 1, 1], [], []>} : vector<2x16xbf16>, vector<16x128xbf16>, vector<2x128xf32> -> vector<2x128xf32>
    %c0_3 = arith.constant 0 : index
    %c0_4 = arith.constant 0 : index
    %4 = vector.load %arg2[%c0_3, %c0_4] : memref<1x128xf32, #tpu.memory_space<vmem>>, vector<1x128xf32>
    %5 = vector.broadcast %4 : vector<1x128xf32> to vector<2x128xf32>
    %6 = arith.addf %3, %5 : vector<2x128xf32>
    %7 = arith.negf %6 : vector<2x128xf32>
    %8 = math.exp %7 : vector<2x128xf32>
    %cst_5 = arith.constant 1.000000e+00 : f32
    %9 = vector.broadcast %cst_5 : f32 to vector<2x128xf32>
    %10 = arith.addf %9, %8 : vector<2x128xf32>
    %11 = arith.divf %9, %10 : vector<2x128xf32>
    %12 = arith.mulf %6, %11 : vector<2x128xf32>
    %13 = arith.truncf %12 : vector<2x128xf32> to vector<2x128xbf16>
    %c0_6 = arith.constant 0 : index
    %c0_7 = arith.constant 0 : index
    %14 = vector.load %arg3[%c0_6, %c0_7] : memref<128x128xbf16, #tpu.memory_space<vmem>>, vector<128x128xbf16>
    %cst_8 = arith.constant dense<0.000000e+00> : vector<2x128xf32>
    %15 = tpu.matmul %13, %14, %cst_8 {dimension_numbers = #tpu.dot_dimension_numbers<[1], [0], [0], [1], [0, 0, 1, 1], [], []>} : vector<2x128xbf16>, vector<128x128xbf16>, vector<2x128xf32> -> vector<2x128xf32>
    %c0_9 = arith.constant 0 : index
    %c0_10 = arith.constant 0 : index
    %16 = vector.load %arg4[%c0_9, %c0_10] : memref<1x128xf32, #tpu.memory_space<vmem>>, vector<1x128xf32>
    %17 = vector.broadcast %16 : vector<1x128xf32> to vector<2x128xf32>
    %18 = arith.addf %15, %17 : vector<2x128xf32>
    %19 = arith.negf %18 : vector<2x128xf32>
    %20 = math.exp %19 : vector<2x128xf32>
    %cst_11 = arith.constant 1.000000e+00 : f32
    %21 = vector.broadcast %cst_11 : f32 to vector<2x128xf32>
    %22 = arith.addf %21, %20 : vector<2x128xf32>
    %23 = arith.divf %21, %22 : vector<2x128xf32>
    %24 = arith.mulf %18, %23 : vector<2x128xf32>
    %c0_12 = arith.constant 0 : index
    %c0_13 = arith.constant 0 : index
    %25 = vector.load %arg5[%c0_12, %c0_13] : memref<2x128xf32, #tpu.memory_space<vmem>>, vector<2x128xf32>
    tpu.vector_store %arg5[%c0_12, %c0_13], %24 {strides = array<i32>} : memref<2x128xf32, #tpu.memory_space<vmem>>, vector<2x128xf32>,
    return
  }
}

module attributes {stable_mosaic.version = 11 : i64} {
  func.func @_time_proj_kernel(%arg0: i32, %arg1: memref<2x128xf32, #tpu.memory_space<vmem>>, %arg2: memref<1x128x128xbf16, #tpu.memory_space<vmem>>, %arg3: memref<1x1x128xf32, #tpu.memory_space<vmem>>, %arg4: memref<1x2x128xf32, #tpu.memory_space<vmem>>) attributes {dimension_semantics = [#tpu.dimension_semantics<parallel>], iteration_bounds = array<i64: 2>, scalar_prefetch = 0 : i64, scratch_operands = 0 : i64, tpu.core_type = #tpu.core_type<tc>, window_params = [{pipeline_mode = #tpu.pipeline_mode<synchronous>, transform_indices = @transform_0, window_bounds = array<i64: 2, 128>}, {transform_indices = @transform_1, window_bounds = array<i64: 1, 128, 128>}, {transform_indices = @transform_2, window_bounds = array<i64: 1, 1, 128>}, {transform_indices = @transform_3, window_bounds = array<i64: 1, 2, 128>}]} {
    %c0 = arith.constant 0 : index
    %c0_0 = arith.constant 0 : index
    %0 = vector.load %arg1[%c0, %c0_0] : memref<2x128xf32, #tpu.memory_space<vmem>>, vector<2x128xf32>
    %1 = arith.truncf %0 : vector<2x128xf32> to vector<2x128xbf16>
    %c0_1 = arith.constant 0 : index
    %c0_2 = arith.constant 0 : index
    %c0_3 = arith.constant 0 : index
    %2 = vector.load %arg2[%c0_1, %c0_2, %c0_3] : memref<1x128x128xbf16, #tpu.memory_space<vmem>>, vector<1x128x128xbf16>
    %3 = vector.shape_cast %2 : vector<1x128x128xbf16> to vector<128x128xbf16>
    %cst = arith.constant dense<0.000000e+00> : vector<2x128xf32>
    %4 = tpu.matmul %1, %3, %cst {dimension_numbers = #tpu.dot_dimension_numbers<[1], [0], [0], [1], [0, 0, 1, 1], [], []>} : vector<2x128xbf16>, vector<128x128xbf16>, vector<2x128xf32> -> vector<2x128xf32>
    %c0_4 = arith.constant 0 : index
    %c0_5 = arith.constant 0 : index
    %c0_6 = arith.constant 0 : index
    %5 = vector.load %arg3[%c0_4, %c0_5, %c0_6] : memref<1x1x128xf32, #tpu.memory_space<vmem>>, vector<1x1x128xf32>
    %6 = vector.shape_cast %5 : vector<1x1x128xf32> to vector<1x128xf32>
    %7 = vector.broadcast %6 : vector<1x128xf32> to vector<2x128xf32>
    %8 = arith.addf %4, %7 : vector<2x128xf32>
    %c0_7 = arith.constant 0 : index
    %c0_8 = arith.constant 0 : index
    %c0_9 = arith.constant 0 : index
    %9 = vector.load %arg4[%c0_7, %c0_8, %c0_9] : memref<1x2x128xf32, #tpu.memory_space<vmem>>, vector<1x2x128xf32>
    %10 = vector.shape_cast %9 : vector<1x2x128xf32> to vector<2x128xf32>
    %11 = vector.shape_cast %8 : vector<2x128xf32> to vector<1x2x128xf32>
    tpu.vector_store %arg4[%c0_7, %c0_8, %c0_9], %11 {strides = array<i32>} : memref<1x2x128xf32, #tpu.memory_space<vmem>>, vector<1x2x128xf32>,
    return
  }
  func.func @transform_0(%arg0: i32) -> (i32, i32) {
    %c0_i32 = arith.constant 0 : i32
    %c0_i32_0 = arith.constant 0 : i32
    %c0_i32_1 = arith.constant 0 : i32
    return %c0_i32, %c0_i32_0 : i32, i32
  }
  func.func @transform_1(%arg0: i32) -> (i32, i32, i32) {
    %c0_i32 = arith.constant 0 : i32
    %c0_i32_0 = arith.constant 0 : i32
    %c0_i32_1 = arith.constant 0 : i32
    return %arg0, %c0_i32, %c0_i32_0 : i32, i32, i32
  }
  func.func @transform_2(%arg0: i32) -> (i32, i32, i32) {
    %c0_i32 = arith.constant 0 : i32
    %c0_i32_0 = arith.constant 0 : i32
    %c0_i32_1 = arith.constant 0 : i32
    return %arg0, %c0_i32, %c0_i32_0 : i32, i32, i32
  }
  func.func @transform_3(%arg0: i32) -> (i32, i32, i32) {
    %c0_i32 = arith.constant 0 : i32
    %c0_i32_0 = arith.constant 0 : i32
    %c0_i32_1 = arith.constant 0 : i32
    return %arg0, %c0_i32, %c0_i32_0 : i32, i32, i32
  }
}

module attributes {stable_mosaic.version = 11 : i64} {
  func.func @_linear_act_kernel(%arg0: i32, %arg1: memref<32x4xf32, #tpu.memory_space<vmem>>, %arg2: memref<4x128xbf16, #tpu.memory_space<vmem>>, %arg3: memref<1x128xf32, #tpu.memory_space<vmem>>, %arg4: memref<32x128xf32, #tpu.memory_space<vmem>>) attributes {dimension_semantics = [#tpu.dimension_semantics<parallel>], iteration_bounds = array<i64: 1>, scalar_prefetch = 0 : i64, scratch_operands = 0 : i64, tpu.core_type = #tpu.core_type<tc>, window_params = [{transform_indices = @transform_0, window_bounds = array<i64: 32, 4>}, {pipeline_mode = #tpu.pipeline_mode<synchronous>, transform_indices = @transform_1, window_bounds = array<i64: 4, 128>}, {pipeline_mode = #tpu.pipeline_mode<synchronous>, transform_indices = @transform_2, window_bounds = array<i64: 1, 128>}, {transform_indices = @transform_3, window_bounds = array<i64: 32, 128>}]} {
    %c0 = arith.constant 0 : index
    %c0_0 = arith.constant 0 : index
    %0 = vector.load %arg1[%c0, %c0_0] : memref<32x4xf32, #tpu.memory_space<vmem>>, vector<32x4xf32>
    %1 = arith.truncf %0 : vector<32x4xf32> to vector<32x4xbf16>
    %c0_1 = arith.constant 0 : index
    %c0_2 = arith.constant 0 : index
    %2 = vector.load %arg2[%c0_1, %c0_2] : memref<4x128xbf16, #tpu.memory_space<vmem>>, vector<4x128xbf16>
    %cst = arith.constant dense<0.000000e+00> : vector<32x128xf32>
    %3 = tpu.matmul %1, %2, %cst {dimension_numbers = #tpu.dot_dimension_numbers<[1], [0], [0], [1], [0, 0, 1, 1], [], []>} : vector<32x4xbf16>, vector<4x128xbf16>, vector<32x128xf32> -> vector<32x128xf32>
    %c0_3 = arith.constant 0 : index
    %c0_4 = arith.constant 0 : index
    %4 = vector.load %arg3[%c0_3, %c0_4] : memref<1x128xf32, #tpu.memory_space<vmem>>, vector<1x128xf32>
    %5 = vector.broadcast %4 : vector<1x128xf32> to vector<32x128xf32>
    %6 = arith.addf %3, %5 : vector<32x128xf32>
    %cst_5 = arith.constant 0.000000e+00 : f32
    %7 = vector.broadcast %cst_5 : f32 to vector<32x128xf32>
    %8 = arith.maximumf %6, %7 : vector<32x128xf32>
    %c0_6 = arith.constant 0 : index
    %c0_7 = arith.constant 0 : index
    %9 = vector.load %arg4[%c0_6, %c0_7] : memref<32x128xf32, #tpu.memory_space<vmem>>, vector<32x128xf32>
    tpu.vector_store %arg4[%c0_6, %c0_7], %8 {strides = array<i32>} : memref<32x128xf32, #tpu.memory_space<vmem>>, vector<32x128xf32>,
    return
  }
  func.func @transform_0(%arg0: i32) -> (i32, i32) {
    %c0_i32 = arith.constant 0 : i32
    %c0_i32_0 = arith.constant 0 : i32
    return %arg0, %c0_i32 : i32, i32
  }
  func.func @transform_1(%arg0: i32) -> (i32, i32) {
    %c0_i32 = arith.constant 0 : i32
    %c0_i32_0 = arith.constant 0 : i32
    %c0_i32_1 = arith.constant 0 : i32
    return %c0_i32, %c0_i32_0 : i32, i32
  }
  func.func @transform_2(%arg0: i32) -> (i32, i32) {
    %c0_i32 = arith.constant 0 : i32
    %c0_i32_0 = arith.constant 0 : i32
    %c0_i32_1 = arith.constant 0 : i32
    return %c0_i32, %c0_i32_0 : i32, i32
  }
  func.func @transform_3(%arg0: i32) -> (i32, i32) {
    %c0_i32 = arith.constant 0 : i32
    %c0_i32_0 = arith.constant 0 : i32
    return %arg0, %c0_i32 : i32, i32
  }
}

module attributes {stable_mosaic.version = 11 : i64} {
  func.func @kernel(%arg0: i32, %arg1: i32, %arg2: memref<2x16x128xf32, #tpu.memory_space<vmem>>, %arg3: memref<1x2x1x128xf32, #tpu.memory_space<vmem>>, %arg4: memref<2x16x3xf32, #tpu.memory_space<vmem>>, %arg5: memref<1x1x128xf32, #tpu.memory_space<vmem>>, %arg6: memref<1x1x128xf32, #tpu.memory_space<vmem>>, %arg7: memref<1x16x128xf32, #tpu.memory_space<vmem>>, %arg8: memref<1x16x128xf32, #tpu.memory_space<vmem>>, %arg9: memref<1x1x128xf32, #tpu.memory_space<vmem>>, %arg10: memref<1x128x128xbf16, #tpu.memory_space<vmem>>, %arg11: memref<1x1x128xf32, #tpu.memory_space<vmem>>, %arg12: memref<1x3x128xbf16, #tpu.memory_space<vmem>>, %arg13: memref<1x1x128xf32, #tpu.memory_space<vmem>>, %arg14: memref<1x128x256xbf16, #tpu.memory_space<vmem>>, %arg15: memref<1x1x256xf32, #tpu.memory_space<vmem>>, %arg16: memref<2x16x128xf32, #tpu.memory_space<vmem>>, %arg17: memref<2x16x128xf32, #tpu.memory_space<vmem>>) attributes {dimension_semantics = [#tpu.dimension_semantics<parallel>, #tpu.dimension_semantics<arbitrary>], iteration_bounds = array<i64: 1, 2>, scalar_prefetch = 0 : i64, scratch_operands = 1 : i64, tpu.core_type = #tpu.core_type<tc>, window_params = [{transform_indices = @transform_0, window_bounds = array<i64: 2, 16, 128>}, {transform_indices = @transform_1, window_bounds = array<i64: 1, 2, 1, 128>}, {transform_indices = @transform_2, window_bounds = array<i64: 2, 16, 3>}, {transform_indices = @transform_3, window_bounds = array<i64: 1, 1, 128>}, {transform_indices = @transform_4, window_bounds = array<i64: 1, 1, 128>}, {transform_indices = @transform_5, window_bounds = array<i64: 1, 16, 128>}, {transform_indices = @transform_6, window_bounds = array<i64: 1, 16, 128>}, {transform_indices = @transform_7, window_bounds = array<i64: 1, 1, 128>}, {transform_indices = @transform_8, window_bounds = array<i64: 1, 128, 128>}, {transform_indices = @transform_9, window_bounds = array<i64: 1, 1, 128>}, {transform_indices = @transform_10, window_bounds = array<i64: 1, 3, 128>}, {transform_indices = @transform_11, window_bounds = array<i64: 1, 1, 128>}, {transform_indices = @transform_12, window_bounds = array<i64: 1, 128, 256>}, {transform_indices = @transform_13, window_bounds = array<i64: 1, 1, 256>}, {transform_indices = @transform_14, window_bounds = array<i64: 2, 16, 128>}]} {
    %c0_i32 = arith.constant 0 : i32
    %0 = arith.cmpi eq, %arg1, %c0_i32 : i32
    %1 = arith.extui %0 : i1 to i32
    %c0_i32_0 = arith.constant 0 : i32
    %2 = arith.cmpi ne, %1, %c0_i32_0 : i32
    scf.if %2 {
      %c0_173 = arith.constant 0 : index
      %c0_174 = arith.constant 0 : index
      %c0_175 = arith.constant 0 : index
      %427 = vector.load %arg2[%c0_173, %c0_174, %c0_175] : memref<2x16x128xf32, #tpu.memory_space<vmem>>, vector<2x16x128xf32>
      %c0_176 = arith.constant 0 : index
      %c0_177 = arith.constant 0 : index
      %c0_178 = arith.constant 0 : index
      %428 = vector.load %arg17[%c0_176, %c0_177, %c0_178] : memref<2x16x128xf32, #tpu.memory_space<vmem>>, vector<2x16x128xf32>
      tpu.vector_store %arg17[%c0_176, %c0_177, %c0_178], %427 {strides = array<i32>} : memref<2x16x128xf32, #tpu.memory_space<vmem>>, vector<2x16x128xf32>,
      %cst_179 = arith.constant 0.000000e+00 : f32
      %429 = vector.broadcast %cst_179 : f32 to vector<2x16x128xf32>
      %c0_180 = arith.constant 0 : index
      %c0_181 = arith.constant 0 : index
      %c0_182 = arith.constant 0 : index
      %430 = vector.load %arg16[%c0_180, %c0_181, %c0_182] : memref<2x16x128xf32, #tpu.memory_space<vmem>>, vector<2x16x128xf32>
      tpu.vector_store %arg16[%c0_180, %c0_181, %c0_182], %429 {strides = array<i32>} : memref<2x16x128xf32, #tpu.memory_space<vmem>>, vector<2x16x128xf32>,
    } else {
    }
    %c0 = arith.constant 0 : index
    %c0_1 = arith.constant 0 : index
    %c0_2 = arith.constant 0 : index
    %3 = vector.load %arg17[%c0, %c0_1, %c0_2] : memref<2x16x128xf32, #tpu.memory_space<vmem>>, vector<2x16x128xf32>
    %c0_3 = arith.constant 0 : index
    %c0_4 = arith.constant 0 : index
    %c0_5 = arith.constant 0 : index
    %c0_6 = arith.constant 0 : index
    %4 = vector.load %arg3[%c0_3, %c0_4, %c0_5, %c0_6] : memref<1x2x1x128xf32, #tpu.memory_space<vmem>>, vector<1x2x1x128xf32>
    %5 = vector.shape_cast %4 : vector<1x2x1x128xf32> to vector<2x1x128xf32>
    %6 = vector.broadcast %5 : vector<2x1x128xf32> to vector<2x16x128xf32>
    %7 = arith.addf %3, %6 : vector<2x16x128xf32>
    %cst = arith.constant dense<0.000000e+00> : vector<2x16xf32>
    %8 = vector.multi_reduction <add>, %7, %cst [2] : vector<2x16x128xf32> to vector<2x16xf32>
    %9 = vector.shape_cast %8 : vector<2x16xf32> to vector<2x16x1xf32>
    %cst_7 = arith.constant 3.125000e-02 : f32
    %10 = vector.broadcast %cst_7 : f32 to vector<2x16x1xf32>
    %11 = arith.mulf %9, %10 : vector<2x16x1xf32>
    %12 = arith.mulf %7, %7 : vector<2x16x128xf32>
    %cst_8 = arith.constant dense<0.000000e+00> : vector<2x16xf32>
    %13 = vector.multi_reduction <add>, %12, %cst_8 [2] : vector<2x16x128xf32> to vector<2x16xf32>
    %14 = vector.shape_cast %13 : vector<2x16xf32> to vector<2x16x1xf32>
    %cst_9 = arith.constant 3.125000e-02 : f32
    %15 = vector.broadcast %cst_9 : f32 to vector<2x16x1xf32>
    %16 = arith.mulf %14, %15 : vector<2x16x1xf32>
    %17 = arith.mulf %11, %11 : vector<2x16x1xf32>
    %18 = arith.subf %16, %17 : vector<2x16x1xf32>
    %cst_10 = arith.constant 0.000000e+00 : f32
    %19 = vector.broadcast %cst_10 : f32 to vector<2x16x1xf32>
    %20 = arith.maximumf %18, %19 : vector<2x16x1xf32>
    %21 = vector.broadcast %11 : vector<2x16x1xf32> to vector<2x16x128xf32>
    %22 = arith.subf %7, %21 : vector<2x16x128xf32>
    %cst_11 = arith.constant 9.99999974E-6 : f32
    %23 = vector.broadcast %cst_11 : f32 to vector<2x16x1xf32>
    %24 = arith.addf %20, %23 : vector<2x16x1xf32>
    %25 = math.rsqrt %24 : vector<2x16x1xf32>
    %26 = vector.broadcast %25 : vector<2x16x1xf32> to vector<2x16x128xf32>
    %27 = arith.mulf %22, %26 : vector<2x16x128xf32>
    %c0_12 = arith.constant 0 : index
    %c0_13 = arith.constant 0 : index
    %c0_14 = arith.constant 0 : index
    %28 = vector.load %arg5[%c0_12, %c0_13, %c0_14] : memref<1x1x128xf32, #tpu.memory_space<vmem>>, vector<1x1x128xf32>
    %29 = vector.shape_cast %28 : vector<1x1x128xf32> to vector<1x128xf32>
    %30 = vector.shape_cast %29 : vector<1x128xf32> to vector<1x1x128xf32>
    %31 = vector.broadcast %30 : vector<1x1x128xf32> to vector<2x16x128xf32>
    %32 = arith.mulf %27, %31 : vector<2x16x128xf32>
    %c0_15 = arith.constant 0 : index
    %c0_16 = arith.constant 0 : index
    %c0_17 = arith.constant 0 : index
    %33 = vector.load %arg6[%c0_15, %c0_16, %c0_17] : memref<1x1x128xf32, #tpu.memory_space<vmem>>, vector<1x1x128xf32>
    %34 = vector.shape_cast %33 : vector<1x1x128xf32> to vector<1x128xf32>
    %35 = vector.shape_cast %34 : vector<1x128xf32> to vector<1x1x128xf32>
    %36 = vector.broadcast %35 : vector<1x1x128xf32> to vector<2x16x128xf32>
    %37 = arith.addf %32, %36 : vector<2x16x128xf32>
    %38 = vector.shape_cast %37 : vector<2x16x128xf32> to vector<32x128xf32>
    %39 = tpu.iota {dimensions = array<i32: 0>} : vector<32x128xi32>
    %c16_i32 = arith.constant 16 : i32
    %c0_i32_18 = arith.constant 0 : i32
    %40 = arith.cmpi eq, %c16_i32, %c0_i32_18 : i32
    %c1_i32 = arith.constant 1 : i32
    %41 = arith.select %40, %c1_i32, %c16_i32 : i32
    %42 = vector.broadcast %41 : i32 to vector<32x128xi32>
    %43 = arith.remsi %39, %42 : vector<32x128xi32>
    %c0_i32_19 = arith.constant 0 : i32
    %44 = vector.broadcast %c0_i32_19 : i32 to vector<32x128xi32>
    %45 = arith.cmpi ne, %43, %44 : vector<32x128xi32>
    %c0_i32_20 = arith.constant 0 : i32
    %46 = vector.broadcast %c0_i32_20 : i32 to vector<32x128xi32>
    %47 = arith.cmpi slt, %43, %46 : vector<32x128xi32>
    %c0_i32_21 = arith.constant 0 : i32
    %48 = arith.cmpi slt, %41, %c0_i32_21 : i32
    %49 = vector.broadcast %48 : i1 to vector<32x128xi1>
    %50 = vector.broadcast %49 : vector<32x128xi1> to vector<32x128xi1>
    %51 = arith.xori %47, %50 : vector<32x128xi1>
    %52 = arith.andi %51, %45 : vector<32x128xi1>
    %53 = vector.broadcast %41 : i32 to vector<32x128xi32>
    %54 = arith.addi %43, %53 : vector<32x128xi32>
    %55 = arith.select %52, %54, %43 : vector<32x128xi1>, vector<32x128xi32>
    %cst_22 = arith.constant 0.000000e+00 : f32
    %56 = vector.broadcast %cst_22 : f32 to vector<32x128xf32>
    %c0_23 = arith.constant 0 : index
    %c0_24 = arith.constant 0 : index
    %c0_25 = arith.constant 0 : index
    %57 = vector.load %arg7[%c0_23, %c0_24, %c0_25] : memref<1x16x128xf32, #tpu.memory_space<vmem>>, vector<1x1x128xf32>
    %58 = vector.shape_cast %57 : vector<1x1x128xf32> to vector<128xf32>
    %59 = vector.shape_cast %58 : vector<128xf32> to vector<1x128xf32>
    %60 = vector.broadcast %59 : vector<1x128xf32> to vector<32x128xf32>
    %61 = arith.mulf %38, %60 : vector<32x128xf32>
    %c1_i32_26 = arith.constant 1 : i32
    %62 = tpu.dynamic_rotate %38 by %c1_i32_26 dim 0 : vector<32x128xf32>, i32 -> vector<32x128xf32>
    %c1_i32_27 = arith.constant 1 : i32
    %63 = vector.broadcast %c1_i32_27 : i32 to vector<32x128xi32>
    %64 = arith.cmpi sge, %55, %63 : vector<32x128xi32>
    %65 = arith.select %64, %62, %56 : vector<32x128xi1>, vector<32x128xf32>
    %c0_28 = arith.constant 0 : index
    %c1 = arith.constant 1 : index
    %c0_29 = arith.constant 0 : index
    %66 = vector.load %arg7[%c0_28, %c1, %c0_29] : memref<1x16x128xf32, #tpu.memory_space<vmem>>, vector<1x1x128xf32>
    %67 = vector.shape_cast %66 : vector<1x1x128xf32> to vector<128xf32>
    %68 = vector.shape_cast %67 : vector<128xf32> to vector<1x128xf32>
    %69 = vector.broadcast %68 : vector<1x128xf32> to vector<32x128xf32>
    %70 = arith.mulf %65, %69 : vector<32x128xf32>
    %71 = arith.addf %61, %70 : vector<32x128xf32>
    %c31_i32 = arith.constant 31 : i32
    %72 = tpu.dynamic_rotate %38 by %c31_i32 dim 0 : vector<32x128xf32>, i32 -> vector<32x128xf32>
    %c15_i32 = arith.constant 15 : i32
    %73 = vector.broadcast %c15_i32 : i32 to vector<32x128xi32>
    %74 = arith.cmpi slt, %55, %73 : vector<32x128xi32>
    %75 = arith.select %74, %72, %56 : vector<32x128xi1>, vector<32x128xf32>
    %c0_30 = arith.constant 0 : index
    %c0_31 = arith.constant 0 : index
    %c0_32 = arith.constant 0 : index
    %76 = vector.load %arg8[%c0_30, %c0_31, %c0_32] : memref<1x16x128xf32, #tpu.memory_space<vmem>>, vector<1x1x128xf32>
    %77 = vector.shape_cast %76 : vector<1x1x128xf32> to vector<128xf32>
    %78 = vector.shape_cast %77 : vector<128xf32> to vector<1x128xf32>
    %79 = vector.broadcast %78 : vector<1x128xf32> to vector<32x128xf32>
    %80 = arith.mulf %75, %79 : vector<32x128xf32>
    %81 = arith.addf %56, %80 : vector<32x128xf32>
    %c2_i32 = arith.constant 2 : i32
    %82 = tpu.dynamic_rotate %38 by %c2_i32 dim 0 : vector<32x128xf32>, i32 -> vector<32x128xf32>
    %c2_i32_33 = arith.constant 2 : i32
    %83 = vector.broadcast %c2_i32_33 : i32 to vector<32x128xi32>
    %84 = arith.cmpi sge, %55, %83 : vector<32x128xi32>
    %85 = arith.select %84, %82, %56 : vector<32x128xi1>, vector<32x128xf32>
    %c0_34 = arith.constant 0 : index
    %c2 = arith.constant 2 : index
    %c0_35 = arith.constant 0 : index
    %86 = vector.load %arg7[%c0_34, %c2, %c0_35] : memref<1x16x128xf32, #tpu.memory_space<vmem>>, vector<1x1x128xf32>
    %87 = vector.shape_cast %86 : vector<1x1x128xf32> to vector<128xf32>
    %88 = vector.shape_cast %87 : vector<128xf32> to vector<1x128xf32>
    %89 = vector.broadcast %88 : vector<1x128xf32> to vector<32x128xf32>
    %90 = arith.mulf %85, %89 : vector<32x128xf32>
    %91 = arith.addf %71, %90 : vector<32x128xf32>
    %c30_i32 = arith.constant 30 : i32
    %92 = tpu.dynamic_rotate %38 by %c30_i32 dim 0 : vector<32x128xf32>, i32 -> vector<32x128xf32>
    %c14_i32 = arith.constant 14 : i32
    %93 = vector.broadcast %c14_i32 : i32 to vector<32x128xi32>
    %94 = arith.cmpi slt, %55, %93 : vector<32x128xi32>
    %95 = arith.select %94, %92, %56 : vector<32x128xi1>, vector<32x128xf32>
    %c0_36 = arith.constant 0 : index
    %c1_37 = arith.constant 1 : index
    %c0_38 = arith.constant 0 : index
    %96 = vector.load %arg8[%c0_36, %c1_37, %c0_38] : memref<1x16x128xf32, #tpu.memory_space<vmem>>, vector<1x1x128xf32>
    %97 = vector.shape_cast %96 : vector<1x1x128xf32> to vector<128xf32>
    %98 = vector.shape_cast %97 : vector<128xf32> to vector<1x128xf32>
    %99 = vector.broadcast %98 : vector<1x128xf32> to vector<32x128xf32>
    %100 = arith.mulf %95, %99 : vector<32x128xf32>
    %101 = arith.addf %81, %100 : vector<32x128xf32>
    %c3_i32 = arith.constant 3 : i32
    %102 = tpu.dynamic_rotate %38 by %c3_i32 dim 0 : vector<32x128xf32>, i32 -> vector<32x128xf32>
    %c3_i32_39 = arith.constant 3 : i32
    %103 = vector.broadcast %c3_i32_39 : i32 to vector<32x128xi32>
    %104 = arith.cmpi sge, %55, %103 : vector<32x128xi32>
    %105 = arith.select %104, %102, %56 : vector<32x128xi1>, vector<32x128xf32>
    %c0_40 = arith.constant 0 : index
    %c3 = arith.constant 3 : index
    %c0_41 = arith.constant 0 : index
    %106 = vector.load %arg7[%c0_40, %c3, %c0_41] : memref<1x16x128xf32, #tpu.memory_space<vmem>>, vector<1x1x128xf32>
    %107 = vector.shape_cast %106 : vector<1x1x128xf32> to vector<128xf32>
    %108 = vector.shape_cast %107 : vector<128xf32> to vector<1x128xf32>
    %109 = vector.broadcast %108 : vector<1x128xf32> to vector<32x128xf32>
    %110 = arith.mulf %105, %109 : vector<32x128xf32>
    %111 = arith.addf %91, %110 : vector<32x128xf32>
    %c29_i32 = arith.constant 29 : i32
    %112 = tpu.dynamic_rotate %38 by %c29_i32 dim 0 : vector<32x128xf32>, i32 -> vector<32x128xf32>
    %c13_i32 = arith.constant 13 : i32
    %113 = vector.broadcast %c13_i32 : i32 to vector<32x128xi32>
    %114 = arith.cmpi slt, %55, %113 : vector<32x128xi32>
    %115 = arith.select %114, %112, %56 : vector<32x128xi1>, vector<32x128xf32>
    %c0_42 = arith.constant 0 : index
    %c2_43 = arith.constant 2 : index
    %c0_44 = arith.constant 0 : index
    %116 = vector.load %arg8[%c0_42, %c2_43, %c0_44] : memref<1x16x128xf32, #tpu.memory_space<vmem>>, vector<1x1x128xf32>
    %117 = vector.shape_cast %116 : vector<1x1x128xf32> to vector<128xf32>
    %118 = vector.shape_cast %117 : vector<128xf32> to vector<1x128xf32>
    %119 = vector.broadcast %118 : vector<1x128xf32> to vector<32x128xf32>
    %120 = arith.mulf %115, %119 : vector<32x128xf32>
    %121 = arith.addf %101, %120 : vector<32x128xf32>
    %c4_i32 = arith.constant 4 : i32
    %122 = tpu.dynamic_rotate %38 by %c4_i32 dim 0 : vector<32x128xf32>, i32 -> vector<32x128xf32>
    %c4_i32_45 = arith.constant 4 : i32
    %123 = vector.broadcast %c4_i32_45 : i32 to vector<32x128xi32>
    %124 = arith.cmpi sge, %55, %123 : vector<32x128xi32>
    %125 = arith.select %124, %122, %56 : vector<32x128xi1>, vector<32x128xf32>
    %c0_46 = arith.constant 0 : index
    %c4 = arith.constant 4 : index
    %c0_47 = arith.constant 0 : index
    %126 = vector.load %arg7[%c0_46, %c4, %c0_47] : memref<1x16x128xf32, #tpu.memory_space<vmem>>, vector<1x1x128xf32>
    %127 = vector.shape_cast %126 : vector<1x1x128xf32> to vector<128xf32>
    %128 = vector.shape_cast %127 : vector<128xf32> to vector<1x128xf32>
    %129 = vector.broadcast %128 : vector<1x128xf32> to vector<32x128xf32>
    %130 = arith.mulf %125, %129 : vector<32x128xf32>
    %131 = arith.addf %111, %130 : vector<32x128xf32>
    %c28_i32 = arith.constant 28 : i32
    %132 = tpu.dynamic_rotate %38 by %c28_i32 dim 0 : vector<32x128xf32>, i32 -> vector<32x128xf32>
    %c12_i32 = arith.constant 12 : i32
    %133 = vector.broadcast %c12_i32 : i32 to vector<32x128xi32>
    %134 = arith.cmpi slt, %55, %133 : vector<32x128xi32>
    %135 = arith.select %134, %132, %56 : vector<32x128xi1>, vector<32x128xf32>
    %c0_48 = arith.constant 0 : index
    %c3_49 = arith.constant 3 : index
    %c0_50 = arith.constant 0 : index
    %136 = vector.load %arg8[%c0_48, %c3_49, %c0_50] : memref<1x16x128xf32, #tpu.memory_space<vmem>>, vector<1x1x128xf32>
    %137 = vector.shape_cast %136 : vector<1x1x128xf32> to vector<128xf32>
    %138 = vector.shape_cast %137 : vector<128xf32> to vector<1x128xf32>
    %139 = vector.broadcast %138 : vector<1x128xf32> to vector<32x128xf32>
    %140 = arith.mulf %135, %139 : vector<32x128xf32>
    %141 = arith.addf %121, %140 : vector<32x128xf32>
    %c5_i32 = arith.constant 5 : i32
    %142 = tpu.dynamic_rotate %38 by %c5_i32 dim 0 : vector<32x128xf32>, i32 -> vector<32x128xf32>
    %c5_i32_51 = arith.constant 5 : i32
    %143 = vector.broadcast %c5_i32_51 : i32 to vector<32x128xi32>
    %144 = arith.cmpi sge, %55, %143 : vector<32x128xi32>
    %145 = arith.select %144, %142, %56 : vector<32x128xi1>, vector<32x128xf32>
    %c0_52 = arith.constant 0 : index
    %c5 = arith.constant 5 : index
    %c0_53 = arith.constant 0 : index
    %146 = vector.load %arg7[%c0_52, %c5, %c0_53] : memref<1x16x128xf32, #tpu.memory_space<vmem>>, vector<1x1x128xf32>
    %147 = vector.shape_cast %146 : vector<1x1x128xf32> to vector<128xf32>
    %148 = vector.shape_cast %147 : vector<128xf32> to vector<1x128xf32>
    %149 = vector.broadcast %148 : vector<1x128xf32> to vector<32x128xf32>
    %150 = arith.mulf %145, %149 : vector<32x128xf32>
    %151 = arith.addf %131, %150 : vector<32x128xf32>
    %c27_i32 = arith.constant 27 : i32
    %152 = tpu.dynamic_rotate %38 by %c27_i32 dim 0 : vector<32x128xf32>, i32 -> vector<32x128xf32>
    %c11_i32 = arith.constant 11 : i32
    %153 = vector.broadcast %c11_i32 : i32 to vector<32x128xi32>
    %154 = arith.cmpi slt, %55, %153 : vector<32x128xi32>
    %155 = arith.select %154, %152, %56 : vector<32x128xi1>, vector<32x128xf32>
    %c0_54 = arith.constant 0 : index
    %c4_55 = arith.constant 4 : index
    %c0_56 = arith.constant 0 : index
    %156 = vector.load %arg8[%c0_54, %c4_55, %c0_56] : memref<1x16x128xf32, #tpu.memory_space<vmem>>, vector<1x1x128xf32>
    %157 = vector.shape_cast %156 : vector<1x1x128xf32> to vector<128xf32>
    %158 = vector.shape_cast %157 : vector<128xf32> to vector<1x128xf32>
    %159 = vector.broadcast %158 : vector<1x128xf32> to vector<32x128xf32>
    %160 = arith.mulf %155, %159 : vector<32x128xf32>
    %161 = arith.addf %141, %160 : vector<32x128xf32>
    %c6_i32 = arith.constant 6 : i32
    %162 = tpu.dynamic_rotate %38 by %c6_i32 dim 0 : vector<32x128xf32>, i32 -> vector<32x128xf32>
    %c6_i32_57 = arith.constant 6 : i32
    %163 = vector.broadcast %c6_i32_57 : i32 to vector<32x128xi32>
    %164 = arith.cmpi sge, %55, %163 : vector<32x128xi32>
    %165 = arith.select %164, %162, %56 : vector<32x128xi1>, vector<32x128xf32>
    %c0_58 = arith.constant 0 : index
    %c6 = arith.constant 6 : index
    %c0_59 = arith.constant 0 : index
    %166 = vector.load %arg7[%c0_58, %c6, %c0_59] : memref<1x16x128xf32, #tpu.memory_space<vmem>>, vector<1x1x128xf32>
    %167 = vector.shape_cast %166 : vector<1x1x128xf32> to vector<128xf32>
    %168 = vector.shape_cast %167 : vector<128xf32> to vector<1x128xf32>
    %169 = vector.broadcast %168 : vector<1x128xf32> to vector<32x128xf32>
    %170 = arith.mulf %165, %169 : vector<32x128xf32>
    %171 = arith.addf %151, %170 : vector<32x128xf32>
    %c26_i32 = arith.constant 26 : i32
    %172 = tpu.dynamic_rotate %38 by %c26_i32 dim 0 : vector<32x128xf32>, i32 -> vector<32x128xf32>
    %c10_i32 = arith.constant 10 : i32
    %173 = vector.broadcast %c10_i32 : i32 to vector<32x128xi32>
    %174 = arith.cmpi slt, %55, %173 : vector<32x128xi32>
    %175 = arith.select %174, %172, %56 : vector<32x128xi1>, vector<32x128xf32>
    %c0_60 = arith.constant 0 : index
    %c5_61 = arith.constant 5 : index
    %c0_62 = arith.constant 0 : index
    %176 = vector.load %arg8[%c0_60, %c5_61, %c0_62] : memref<1x16x128xf32, #tpu.memory_space<vmem>>, vector<1x1x128xf32>
    %177 = vector.shape_cast %176 : vector<1x1x128xf32> to vector<128xf32>
    %178 = vector.shape_cast %177 : vector<128xf32> to vector<1x128xf32>
    %179 = vector.broadcast %178 : vector<1x128xf32> to vector<32x128xf32>
    %180 = arith.mulf %175, %179 : vector<32x128xf32>
    %181 = arith.addf %161, %180 : vector<32x128xf32>
    %c7_i32 = arith.constant 7 : i32
    %182 = tpu.dynamic_rotate %38 by %c7_i32 dim 0 : vector<32x128xf32>, i32 -> vector<32x128xf32>
    %c7_i32_63 = arith.constant 7 : i32
    %183 = vector.broadcast %c7_i32_63 : i32 to vector<32x128xi32>
    %184 = arith.cmpi sge, %55, %183 : vector<32x128xi32>
    %185 = arith.select %184, %182, %56 : vector<32x128xi1>, vector<32x128xf32>
    %c0_64 = arith.constant 0 : index
    %c7 = arith.constant 7 : index
    %c0_65 = arith.constant 0 : index
    %186 = vector.load %arg7[%c0_64, %c7, %c0_65] : memref<1x16x128xf32, #tpu.memory_space<vmem>>, vector<1x1x128xf32>
    %187 = vector.shape_cast %186 : vector<1x1x128xf32> to vector<128xf32>
    %188 = vector.shape_cast %187 : vector<128xf32> to vector<1x128xf32>
    %189 = vector.broadcast %188 : vector<1x128xf32> to vector<32x128xf32>
    %190 = arith.mulf %185, %189 : vector<32x128xf32>
    %191 = arith.addf %171, %190 : vector<32x128xf32>
    %c25_i32 = arith.constant 25 : i32
    %192 = tpu.dynamic_rotate %38 by %c25_i32 dim 0 : vector<32x128xf32>, i32 -> vector<32x128xf32>
    %c9_i32 = arith.constant 9 : i32
    %193 = vector.broadcast %c9_i32 : i32 to vector<32x128xi32>
    %194 = arith.cmpi slt, %55, %193 : vector<32x128xi32>
    %195 = arith.select %194, %192, %56 : vector<32x128xi1>, vector<32x128xf32>
    %c0_66 = arith.constant 0 : index
    %c6_67 = arith.constant 6 : index
    %c0_68 = arith.constant 0 : index
    %196 = vector.load %arg8[%c0_66, %c6_67, %c0_68] : memref<1x16x128xf32, #tpu.memory_space<vmem>>, vector<1x1x128xf32>
    %197 = vector.shape_cast %196 : vector<1x1x128xf32> to vector<128xf32>
    %198 = vector.shape_cast %197 : vector<128xf32> to vector<1x128xf32>
    %199 = vector.broadcast %198 : vector<1x128xf32> to vector<32x128xf32>
    %200 = arith.mulf %195, %199 : vector<32x128xf32>
    %201 = arith.addf %181, %200 : vector<32x128xf32>
    %c8_i32 = arith.constant 8 : i32
    %202 = tpu.dynamic_rotate %38 by %c8_i32 dim 0 : vector<32x128xf32>, i32 -> vector<32x128xf32>
    %c8_i32_69 = arith.constant 8 : i32
    %203 = vector.broadcast %c8_i32_69 : i32 to vector<32x128xi32>
    %204 = arith.cmpi sge, %55, %203 : vector<32x128xi32>
    %205 = arith.select %204, %202, %56 : vector<32x128xi1>, vector<32x128xf32>
    %c0_70 = arith.constant 0 : index
    %c8 = arith.constant 8 : index
    %c0_71 = arith.constant 0 : index
    %206 = vector.load %arg7[%c0_70, %c8, %c0_71] : memref<1x16x128xf32, #tpu.memory_space<vmem>>, vector<1x1x128xf32>
    %207 = vector.shape_cast %206 : vector<1x1x128xf32> to vector<128xf32>
    %208 = vector.shape_cast %207 : vector<128xf32> to vector<1x128xf32>
    %209 = vector.broadcast %208 : vector<1x128xf32> to vector<32x128xf32>
    %210 = arith.mulf %205, %209 : vector<32x128xf32>
    %211 = arith.addf %191, %210 : vector<32x128xf32>
    %c24_i32 = arith.constant 24 : i32
    %212 = tpu.dynamic_rotate %38 by %c24_i32 dim 0 : vector<32x128xf32>, i32 -> vector<32x128xf32>
    %c8_i32_72 = arith.constant 8 : i32
    %213 = vector.broadcast %c8_i32_72 : i32 to vector<32x128xi32>
    %214 = arith.cmpi slt, %55, %213 : vector<32x128xi32>
    %215 = arith.select %214, %212, %56 : vector<32x128xi1>, vector<32x128xf32>
    %c0_73 = arith.constant 0 : index
    %c7_74 = arith.constant 7 : index
    %c0_75 = arith.constant 0 : index
    %216 = vector.load %arg8[%c0_73, %c7_74, %c0_75] : memref<1x16x128xf32, #tpu.memory_space<vmem>>, vector<1x1x128xf32>
    %217 = vector.shape_cast %216 : vector<1x1x128xf32> to vector<128xf32>
    %218 = vector.shape_cast %217 : vector<128xf32> to vector<1x128xf32>
    %219 = vector.broadcast %218 : vector<1x128xf32> to vector<32x128xf32>
    %220 = arith.mulf %215, %219 : vector<32x128xf32>
    %221 = arith.addf %201, %220 : vector<32x128xf32>
    %c9_i32_76 = arith.constant 9 : i32
    %222 = tpu.dynamic_rotate %38 by %c9_i32_76 dim 0 : vector<32x128xf32>, i32 -> vector<32x128xf32>
    %c9_i32_77 = arith.constant 9 : i32
    %223 = vector.broadcast %c9_i32_77 : i32 to vector<32x128xi32>
    %224 = arith.cmpi sge, %55, %223 : vector<32x128xi32>
    %225 = arith.select %224, %222, %56 : vector<32x128xi1>, vector<32x128xf32>
    %c0_78 = arith.constant 0 : index
    %c9 = arith.constant 9 : index
    %c0_79 = arith.constant 0 : index
    %226 = vector.load %arg7[%c0_78, %c9, %c0_79] : memref<1x16x128xf32, #tpu.memory_space<vmem>>, vector<1x1x128xf32>
    %227 = vector.shape_cast %226 : vector<1x1x128xf32> to vector<128xf32>
    %228 = vector.shape_cast %227 : vector<128xf32> to vector<1x128xf32>
    %229 = vector.broadcast %228 : vector<1x128xf32> to vector<32x128xf32>
    %230 = arith.mulf %225, %229 : vector<32x128xf32>
    %231 = arith.addf %211, %230 : vector<32x128xf32>
    %c23_i32 = arith.constant 23 : i32
    %232 = tpu.dynamic_rotate %38 by %c23_i32 dim 0 : vector<32x128xf32>, i32 -> vector<32x128xf32>
    %c7_i32_80 = arith.constant 7 : i32
    %233 = vector.broadcast %c7_i32_80 : i32 to vector<32x128xi32>
    %234 = arith.cmpi slt, %55, %233 : vector<32x128xi32>
    %235 = arith.select %234, %232, %56 : vector<32x128xi1>, vector<32x128xf32>
    %c0_81 = arith.constant 0 : index
    %c8_82 = arith.constant 8 : index
    %c0_83 = arith.constant 0 : index
    %236 = vector.load %arg8[%c0_81, %c8_82, %c0_83] : memref<1x16x128xf32, #tpu.memory_space<vmem>>, vector<1x1x128xf32>
    %237 = vector.shape_cast %236 : vector<1x1x128xf32> to vector<128xf32>
    %238 = vector.shape_cast %237 : vector<128xf32> to vector<1x128xf32>
    %239 = vector.broadcast %238 : vector<1x128xf32> to vector<32x128xf32>
    %240 = arith.mulf %235, %239 : vector<32x128xf32>
    %241 = arith.addf %221, %240 : vector<32x128xf32>
    %c10_i32_84 = arith.constant 10 : i32
    %242 = tpu.dynamic_rotate %38 by %c10_i32_84 dim 0 : vector<32x128xf32>, i32 -> vector<32x128xf32>
    %c10_i32_85 = arith.constant 10 : i32
    %243 = vector.broadcast %c10_i32_85 : i32 to vector<32x128xi32>
    %244 = arith.cmpi sge, %55, %243 : vector<32x128xi32>
    %245 = arith.select %244, %242, %56 : vector<32x128xi1>, vector<32x128xf32>
    %c0_86 = arith.constant 0 : index
    %c10 = arith.constant 10 : index
    %c0_87 = arith.constant 0 : index
    %246 = vector.load %arg7[%c0_86, %c10, %c0_87] : memref<1x16x128xf32, #tpu.memory_space<vmem>>, vector<1x1x128xf32>
    %247 = vector.shape_cast %246 : vector<1x1x128xf32> to vector<128xf32>
    %248 = vector.shape_cast %247 : vector<128xf32> to vector<1x128xf32>
    %249 = vector.broadcast %248 : vector<1x128xf32> to vector<32x128xf32>
    %250 = arith.mulf %245, %249 : vector<32x128xf32>
    %251 = arith.addf %231, %250 : vector<32x128xf32>
    %c22_i32 = arith.constant 22 : i32
    %252 = tpu.dynamic_rotate %38 by %c22_i32 dim 0 : vector<32x128xf32>, i32 -> vector<32x128xf32>
    %c6_i32_88 = arith.constant 6 : i32
    %253 = vector.broadcast %c6_i32_88 : i32 to vector<32x128xi32>
    %254 = arith.cmpi slt, %55, %253 : vector<32x128xi32>
    %255 = arith.select %254, %252, %56 : vector<32x128xi1>, vector<32x128xf32>
    %c0_89 = arith.constant 0 : index
    %c9_90 = arith.constant 9 : index
    %c0_91 = arith.constant 0 : index
    %256 = vector.load %arg8[%c0_89, %c9_90, %c0_91] : memref<1x16x128xf32, #tpu.memory_space<vmem>>, vector<1x1x128xf32>
    %257 = vector.shape_cast %256 : vector<1x1x128xf32> to vector<128xf32>
    %258 = vector.shape_cast %257 : vector<128xf32> to vector<1x128xf32>
    %259 = vector.broadcast %258 : vector<1x128xf32> to vector<32x128xf32>
    %260 = arith.mulf %255, %259 : vector<32x128xf32>
    %261 = arith.addf %241, %260 : vector<32x128xf32>
    %c11_i32_92 = arith.constant 11 : i32
    %262 = tpu.dynamic_rotate %38 by %c11_i32_92 dim 0 : vector<32x128xf32>, i32 -> vector<32x128xf32>
    %c11_i32_93 = arith.constant 11 : i32
    %263 = vector.broadcast %c11_i32_93 : i32 to vector<32x128xi32>
    %264 = arith.cmpi sge, %55, %263 : vector<32x128xi32>
    %265 = arith.select %264, %262, %56 : vector<32x128xi1>, vector<32x128xf32>
    %c0_94 = arith.constant 0 : index
    %c11 = arith.constant 11 : index
    %c0_95 = arith.constant 0 : index
    %266 = vector.load %arg7[%c0_94, %c11, %c0_95] : memref<1x16x128xf32, #tpu.memory_space<vmem>>, vector<1x1x128xf32>
    %267 = vector.shape_cast %266 : vector<1x1x128xf32> to vector<128xf32>
    %268 = vector.shape_cast %267 : vector<128xf32> to vector<1x128xf32>
    %269 = vector.broadcast %268 : vector<1x128xf32> to vector<32x128xf32>
    %270 = arith.mulf %265, %269 : vector<32x128xf32>
    %271 = arith.addf %251, %270 : vector<32x128xf32>
    %c21_i32 = arith.constant 21 : i32
    %272 = tpu.dynamic_rotate %38 by %c21_i32 dim 0 : vector<32x128xf32>, i32 -> vector<32x128xf32>
    %c5_i32_96 = arith.constant 5 : i32
    %273 = vector.broadcast %c5_i32_96 : i32 to vector<32x128xi32>
    %274 = arith.cmpi slt, %55, %273 : vector<32x128xi32>
    %275 = arith.select %274, %272, %56 : vector<32x128xi1>, vector<32x128xf32>
    %c0_97 = arith.constant 0 : index
    %c10_98 = arith.constant 10 : index
    %c0_99 = arith.constant 0 : index
    %276 = vector.load %arg8[%c0_97, %c10_98, %c0_99] : memref<1x16x128xf32, #tpu.memory_space<vmem>>, vector<1x1x128xf32>
    %277 = vector.shape_cast %276 : vector<1x1x128xf32> to vector<128xf32>
    %278 = vector.shape_cast %277 : vector<128xf32> to vector<1x128xf32>
    %279 = vector.broadcast %278 : vector<1x128xf32> to vector<32x128xf32>
    %280 = arith.mulf %275, %279 : vector<32x128xf32>
    %281 = arith.addf %261, %280 : vector<32x128xf32>
    %c12_i32_100 = arith.constant 12 : i32
    %282 = tpu.dynamic_rotate %38 by %c12_i32_100 dim 0 : vector<32x128xf32>, i32 -> vector<32x128xf32>
    %c12_i32_101 = arith.constant 12 : i32
    %283 = vector.broadcast %c12_i32_101 : i32 to vector<32x128xi32>
    %284 = arith.cmpi sge, %55, %283 : vector<32x128xi32>
    %285 = arith.select %284, %282, %56 : vector<32x128xi1>, vector<32x128xf32>
    %c0_102 = arith.constant 0 : index
    %c12 = arith.constant 12 : index
    %c0_103 = arith.constant 0 : index
    %286 = vector.load %arg7[%c0_102, %c12, %c0_103] : memref<1x16x128xf32, #tpu.memory_space<vmem>>, vector<1x1x128xf32>
    %287 = vector.shape_cast %286 : vector<1x1x128xf32> to vector<128xf32>
    %288 = vector.shape_cast %287 : vector<128xf32> to vector<1x128xf32>
    %289 = vector.broadcast %288 : vector<1x128xf32> to vector<32x128xf32>
    %290 = arith.mulf %285, %289 : vector<32x128xf32>
    %291 = arith.addf %271, %290 : vector<32x128xf32>
    %c20_i32 = arith.constant 20 : i32
    %292 = tpu.dynamic_rotate %38 by %c20_i32 dim 0 : vector<32x128xf32>, i32 -> vector<32x128xf32>
    %c4_i32_104 = arith.constant 4 : i32
    %293 = vector.broadcast %c4_i32_104 : i32 to vector<32x128xi32>
    %294 = arith.cmpi slt, %55, %293 : vector<32x128xi32>
    %295 = arith.select %294, %292, %56 : vector<32x128xi1>, vector<32x128xf32>
    %c0_105 = arith.constant 0 : index
    %c11_106 = arith.constant 11 : index
    %c0_107 = arith.constant 0 : index
    %296 = vector.load %arg8[%c0_105, %c11_106, %c0_107] : memref<1x16x128xf32, #tpu.memory_space<vmem>>, vector<1x1x128xf32>
    %297 = vector.shape_cast %296 : vector<1x1x128xf32> to vector<128xf32>
    %298 = vector.shape_cast %297 : vector<128xf32> to vector<1x128xf32>
    %299 = vector.broadcast %298 : vector<1x128xf32> to vector<32x128xf32>
    %300 = arith.mulf %295, %299 : vector<32x128xf32>
    %301 = arith.addf %281, %300 : vector<32x128xf32>
    %c13_i32_108 = arith.constant 13 : i32
    %302 = tpu.dynamic_rotate %38 by %c13_i32_108 dim 0 : vector<32x128xf32>, i32 -> vector<32x128xf32>
    %c13_i32_109 = arith.constant 13 : i32
    %303 = vector.broadcast %c13_i32_109 : i32 to vector<32x128xi32>
    %304 = arith.cmpi sge, %55, %303 : vector<32x128xi32>
    %305 = arith.select %304, %302, %56 : vector<32x128xi1>, vector<32x128xf32>
    %c0_110 = arith.constant 0 : index
    %c13 = arith.constant 13 : index
    %c0_111 = arith.constant 0 : index
    %306 = vector.load %arg7[%c0_110, %c13, %c0_111] : memref<1x16x128xf32, #tpu.memory_space<vmem>>, vector<1x1x128xf32>
    %307 = vector.shape_cast %306 : vector<1x1x128xf32> to vector<128xf32>
    %308 = vector.shape_cast %307 : vector<128xf32> to vector<1x128xf32>
    %309 = vector.broadcast %308 : vector<1x128xf32> to vector<32x128xf32>
    %310 = arith.mulf %305, %309 : vector<32x128xf32>
    %311 = arith.addf %291, %310 : vector<32x128xf32>
    %c19_i32 = arith.constant 19 : i32
    %312 = tpu.dynamic_rotate %38 by %c19_i32 dim 0 : vector<32x128xf32>, i32 -> vector<32x128xf32>
    %c3_i32_112 = arith.constant 3 : i32
    %313 = vector.broadcast %c3_i32_112 : i32 to vector<32x128xi32>
    %314 = arith.cmpi slt, %55, %313 : vector<32x128xi32>
    %315 = arith.select %314, %312, %56 : vector<32x128xi1>, vector<32x128xf32>
    %c0_113 = arith.constant 0 : index
    %c12_114 = arith.constant 12 : index
    %c0_115 = arith.constant 0 : index
    %316 = vector.load %arg8[%c0_113, %c12_114, %c0_115] : memref<1x16x128xf32, #tpu.memory_space<vmem>>, vector<1x1x128xf32>
    %317 = vector.shape_cast %316 : vector<1x1x128xf32> to vector<128xf32>
    %318 = vector.shape_cast %317 : vector<128xf32> to vector<1x128xf32>
    %319 = vector.broadcast %318 : vector<1x128xf32> to vector<32x128xf32>
    %320 = arith.mulf %315, %319 : vector<32x128xf32>
    %321 = arith.addf %301, %320 : vector<32x128xf32>
    %c14_i32_116 = arith.constant 14 : i32
    %322 = tpu.dynamic_rotate %38 by %c14_i32_116 dim 0 : vector<32x128xf32>, i32 -> vector<32x128xf32>
    %c14_i32_117 = arith.constant 14 : i32
    %323 = vector.broadcast %c14_i32_117 : i32 to vector<32x128xi32>
    %324 = arith.cmpi sge, %55, %323 : vector<32x128xi32>
    %325 = arith.select %324, %322, %56 : vector<32x128xi1>, vector<32x128xf32>
    %c0_118 = arith.constant 0 : index
    %c14 = arith.constant 14 : index
    %c0_119 = arith.constant 0 : index
    %326 = vector.load %arg7[%c0_118, %c14, %c0_119] : memref<1x16x128xf32, #tpu.memory_space<vmem>>, vector<1x1x128xf32>
    %327 = vector.shape_cast %326 : vector<1x1x128xf32> to vector<128xf32>
    %328 = vector.shape_cast %327 : vector<128xf32> to vector<1x128xf32>
    %329 = vector.broadcast %328 : vector<1x128xf32> to vector<32x128xf32>
    %330 = arith.mulf %325, %329 : vector<32x128xf32>
    %331 = arith.addf %311, %330 : vector<32x128xf32>
    %c18_i32 = arith.constant 18 : i32
    %332 = tpu.dynamic_rotate %38 by %c18_i32 dim 0 : vector<32x128xf32>, i32 -> vector<32x128xf32>
    %c2_i32_120 = arith.constant 2 : i32
    %333 = vector.broadcast %c2_i32_120 : i32 to vector<32x128xi32>
    %334 = arith.cmpi slt, %55, %333 : vector<32x128xi32>
    %335 = arith.select %334, %332, %56 : vector<32x128xi1>, vector<32x128xf32>
    %c0_121 = arith.constant 0 : index
    %c13_122 = arith.constant 13 : index
    %c0_123 = arith.constant 0 : index
    %336 = vector.load %arg8[%c0_121, %c13_122, %c0_123] : memref<1x16x128xf32, #tpu.memory_space<vmem>>, vector<1x1x128xf32>
    %337 = vector.shape_cast %336 : vector<1x1x128xf32> to vector<128xf32>
    %338 = vector.shape_cast %337 : vector<128xf32> to vector<1x128xf32>
    %339 = vector.broadcast %338 : vector<1x128xf32> to vector<32x128xf32>
    %340 = arith.mulf %335, %339 : vector<32x128xf32>
    %341 = arith.addf %321, %340 : vector<32x128xf32>
    %c15_i32_124 = arith.constant 15 : i32
    %342 = tpu.dynamic_rotate %38 by %c15_i32_124 dim 0 : vector<32x128xf32>, i32 -> vector<32x128xf32>
    %c15_i32_125 = arith.constant 15 : i32
    %343 = vector.broadcast %c15_i32_125 : i32 to vector<32x128xi32>
    %344 = arith.cmpi sge, %55, %343 : vector<32x128xi32>
    %345 = arith.select %344, %342, %56 : vector<32x128xi1>, vector<32x128xf32>
    %c0_126 = arith.constant 0 : index
    %c15 = arith.constant 15 : index
    %c0_127 = arith.constant 0 : index
    %346 = vector.load %arg7[%c0_126, %c15, %c0_127] : memref<1x16x128xf32, #tpu.memory_space<vmem>>, vector<1x1x128xf32>
    %347 = vector.shape_cast %346 : vector<1x1x128xf32> to vector<128xf32>
    %348 = vector.shape_cast %347 : vector<128xf32> to vector<1x128xf32>
    %349 = vector.broadcast %348 : vector<1x128xf32> to vector<32x128xf32>
    %350 = arith.mulf %345, %349 : vector<32x128xf32>
    %351 = arith.addf %331, %350 : vector<32x128xf32>
    %c17_i32 = arith.constant 17 : i32
    %352 = tpu.dynamic_rotate %38 by %c17_i32 dim 0 : vector<32x128xf32>, i32 -> vector<32x128xf32>
    %c1_i32_128 = arith.constant 1 : i32
    %353 = vector.broadcast %c1_i32_128 : i32 to vector<32x128xi32>
    %354 = arith.cmpi slt, %55, %353 : vector<32x128xi32>
    %355 = arith.select %354, %352, %56 : vector<32x128xi1>, vector<32x128xf32>
    %c0_129 = arith.constant 0 : index
    %c14_130 = arith.constant 14 : index
    %c0_131 = arith.constant 0 : index
    %356 = vector.load %arg8[%c0_129, %c14_130, %c0_131] : memref<1x16x128xf32, #tpu.memory_space<vmem>>, vector<1x1x128xf32>
    %357 = vector.shape_cast %356 : vector<1x1x128xf32> to vector<128xf32>
    %358 = vector.shape_cast %357 : vector<128xf32> to vector<1x128xf32>
    %359 = vector.broadcast %358 : vector<1x128xf32> to vector<32x128xf32>
    %360 = arith.mulf %355, %359 : vector<32x128xf32>
    %361 = arith.addf %341, %360 : vector<32x128xf32>
    %362 = arith.addf %351, %361 : vector<32x128xf32>
    %c0_132 = arith.constant 0 : index
    %c0_133 = arith.constant 0 : index
    %c0_134 = arith.constant 0 : index
    %363 = vector.load %arg9[%c0_132, %c0_133, %c0_134] : memref<1x1x128xf32, #tpu.memory_space<vmem>>, vector<1x1x128xf32>
    %364 = vector.shape_cast %363 : vector<1x1x128xf32> to vector<1x128xf32>
    %365 = vector.broadcast %364 : vector<1x128xf32> to vector<32x128xf32>
    %366 = arith.mulf %38, %365 : vector<32x128xf32>
    %367 = arith.addf %362, %366 : vector<32x128xf32>
    %368 = arith.mulf %367, %367 : vector<32x128xf32>
    %369 = arith.mulf %367, %368 : vector<32x128xf32>
    %cst_135 = arith.constant 4.471500e-02 : f32
    %370 = vector.broadcast %cst_135 : f32 to vector<32x128xf32>
    %371 = arith.mulf %370, %369 : vector<32x128xf32>
    %372 = arith.addf %367, %371 : vector<32x128xf32>
    %cst_136 = arith.constant 0.797884583 : f32
    %373 = vector.broadcast %cst_136 : f32 to vector<32x128xf32>
    %374 = arith.mulf %373, %372 : vector<32x128xf32>
    %375 = math.tanh %374 : vector<32x128xf32>
    %cst_137 = arith.constant 1.000000e+00 : f32
    %376 = vector.broadcast %cst_137 : f32 to vector<32x128xf32>
    %377 = arith.addf %376, %375 : vector<32x128xf32>
    %cst_138 = arith.constant 5.000000e-01 : f32
    %378 = vector.broadcast %cst_138 : f32 to vector<32x128xf32>
    %379 = arith.mulf %378, %377 : vector<32x128xf32>
    %380 = arith.mulf %367, %379 : vector<32x128xf32>
    %381 = arith.truncf %380 : vector<32x128xf32> to vector<32x128xbf16>
    %c0_139 = arith.constant 0 : index
    %c0_140 = arith.constant 0 : index
    %c0_141 = arith.constant 0 : index
    %382 = vector.load %arg10[%c0_139, %c0_140, %c0_141] : memref<1x128x128xbf16, #tpu.memory_space<vmem>>, vector<1x128x128xbf16>
    %383 = vector.shape_cast %382 : vector<1x128x128xbf16> to vector<128x128xbf16>
    %cst_142 = arith.constant dense<0.000000e+00> : vector<32x128xf32>
    %384 = tpu.matmul %381, %383, %cst_142 {dimension_numbers = #tpu.dot_dimension_numbers<[1], [0], [0], [1], [0, 0, 1, 1], [], []>} : vector<32x128xbf16>, vector<128x128xbf16>, vector<32x128xf32> -> vector<32x128xf32>
    %c0_143 = arith.constant 0 : index
    %c0_144 = arith.constant 0 : index
    %c0_145 = arith.constant 0 : index
    %385 = vector.load %arg11[%c0_143, %c0_144, %c0_145] : memref<1x1x128xf32, #tpu.memory_space<vmem>>, vector<1x1x128xf32>
    %386 = vector.shape_cast %385 : vector<1x1x128xf32> to vector<1x128xf32>
    %387 = vector.broadcast %386 : vector<1x128xf32> to vector<32x128xf32>
    %388 = arith.addf %384, %387 : vector<32x128xf32>
    %389 = vector.shape_cast %7 : vector<2x16x128xf32> to vector<32x128xf32>
    %390 = arith.addf %388, %389 : vector<32x128xf32>
    %c0_146 = arith.constant 0 : index
    %c0_147 = arith.constant 0 : index
    %c0_148 = arith.constant 0 : index
    %391 = vector.load %arg4[%c0_146, %c0_147, %c0_148] : memref<2x16x3xf32, #tpu.memory_space<vmem>>, vector<2x16x3xf32>
    %392 = vector.shape_cast %391 : vector<2x16x3xf32> to vector<32x3xf32>
    %393 = arith.truncf %392 : vector<32x3xf32> to vector<32x3xbf16>
    %c0_149 = arith.constant 0 : index
    %c0_150 = arith.constant 0 : index
    %c0_151 = arith.constant 0 : index
    %394 = vector.load %arg12[%c0_149, %c0_150, %c0_151] : memref<1x3x128xbf16, #tpu.memory_space<vmem>>, vector<1x3x128xbf16>
    %395 = vector.shape_cast %394 : vector<1x3x128xbf16> to vector<3x128xbf16>
    %cst_152 = arith.constant dense<0.000000e+00> : vector<32x128xf32>
    %396 = tpu.matmul %393, %395, %cst_152 {dimension_numbers = #tpu.dot_dimension_numbers<[1], [0], [0], [1], [0, 0, 1, 1], [], []>} : vector<32x3xbf16>, vector<3x128xbf16>, vector<32x128xf32> -> vector<32x128xf32>
    %397 = arith.addf %390, %396 : vector<32x128xf32>
    %c0_153 = arith.constant 0 : index
    %c0_154 = arith.constant 0 : index
    %c0_155 = arith.constant 0 : index
    %398 = vector.load %arg13[%c0_153, %c0_154, %c0_155] : memref<1x1x128xf32, #tpu.memory_space<vmem>>, vector<1x1x128xf32>
    %399 = vector.shape_cast %398 : vector<1x1x128xf32> to vector<1x128xf32>
    %400 = vector.broadcast %399 : vector<1x128xf32> to vector<32x128xf32>
    %401 = arith.addf %397, %400 : vector<32x128xf32>
    %402 = math.tanh %401 : vector<32x128xf32>
    %403 = arith.negf %401 : vector<32x128xf32>
    %404 = math.exp %403 : vector<32x128xf32>
    %cst_156 = arith.constant 1.000000e+00 : f32
    %405 = vector.broadcast %cst_156 : f32 to vector<32x128xf32>
    %406 = arith.addf %405, %404 : vector<32x128xf32>
    %407 = arith.divf %405, %406 : vector<32x128xf32>
    %408 = arith.mulf %402, %407 : vector<32x128xf32>
    %409 = arith.truncf %408 : vector<32x128xf32> to vector<32x128xbf16>
    %c0_157 = arith.constant 0 : index
    %c0_158 = arith.constant 0 : index
    %c0_159 = arith.constant 0 : index
    %410 = vector.load %arg14[%c0_157, %c0_158, %c0_159] : memref<1x128x256xbf16, #tpu.memory_space<vmem>>, vector<1x128x256xbf16>
    %411 = vector.shape_cast %410 : vector<1x128x256xbf16> to vector<128x256xbf16>
    %cst_160 = arith.constant dense<0.000000e+00> : vector<32x256xf32>
    %412 = tpu.matmul %409, %411, %cst_160 {dimension_numbers = #tpu.dot_dimension_numbers<[1], [0], [0], [1], [0, 0, 1, 1], [], []>} : vector<32x128xbf16>, vector<128x256xbf16>, vector<32x256xf32> -> vector<32x256xf32>
    %c0_161 = arith.constant 0 : index
    %c0_162 = arith.constant 0 : index
    %c0_163 = arith.constant 0 : index
    %413 = vector.load %arg15[%c0_161, %c0_162, %c0_163] : memref<1x1x256xf32, #tpu.memory_space<vmem>>, vector<1x1x256xf32>
    %414 = vector.shape_cast %413 : vector<1x1x256xf32> to vector<1x256xf32>
    %415 = vector.broadcast %414 : vector<1x256xf32> to vector<32x256xf32>
    %416 = arith.addf %412, %415 : vector<32x256xf32>
    %417 = vector.extract_strided_slice %416 {offsets = [0, 0], sizes = [32, 128], strides = [1, 1]} : vector<32x256xf32> to vector<32x128xf32>
    %418 = vector.shape_cast %3 : vector<2x16x128xf32> to vector<32x128xf32>
    %419 = arith.addf %417, %418 : vector<32x128xf32>
    %420 = vector.extract_strided_slice %416 {offsets = [0, 128], sizes = [32, 128], strides = [1, 1]} : vector<32x256xf32> to vector<32x128xf32>
    %421 = vector.shape_cast %419 : vector<32x128xf32> to vector<2x16x128xf32>
    %c0_164 = arith.constant 0 : index
    %c0_165 = arith.constant 0 : index
    %c0_166 = arith.constant 0 : index
    %422 = vector.load %arg17[%c0_164, %c0_165, %c0_166] : memref<2x16x128xf32, #tpu.memory_space<vmem>>, vector<2x16x128xf32>
    tpu.vector_store %arg17[%c0_164, %c0_165, %c0_166], %421 {strides = array<i32>} : memref<2x16x128xf32, #tpu.memory_space<vmem>>, vector<2x16x128xf32>,
    %c0_167 = arith.constant 0 : index
    %c0_168 = arith.constant 0 : index
    %c0_169 = arith.constant 0 : index
    %423 = vector.load %arg16[%c0_167, %c0_168, %c0_169] : memref<2x16x128xf32, #tpu.memory_space<vmem>>, vector<2x16x128xf32>
    %424 = vector.shape_cast %420 : vector<32x128xf32> to vector<2x16x128xf32>
    %425 = arith.addf %423, %424 : vector<2x16x128xf32>
    %c0_170 = arith.constant 0 : index
    %c0_171 = arith.constant 0 : index
    %c0_172 = arith.constant 0 : index
    %426 = vector.load %arg16[%c0_170, %c0_171, %c0_172] : memref<2x16x128xf32, #tpu.memory_space<vmem>>, vector<2x16x128xf32>
    tpu.vector_store %arg16[%c0_170, %c0_171, %c0_172], %425 {strides = array<i32>} : memref<2x16x128xf32, #tpu.memory_space<vmem>>, vector<2x16x128xf32>,
    return
  }
  func.func @transform_0(%arg0: i32, %arg1: i32) -> (i32, i32, i32) {
    %c0_i32 = arith.constant 0 : i32
    %c0_i32_0 = arith.constant 0 : i32
    %c0_i32_1 = arith.constant 0 : i32
    return %arg0, %c0_i32, %c0_i32_0 : i32, i32, i32
  }
  func.func @transform_1(%arg0: i32, %arg1: i32) -> (i32, i32, i32, i32) {
    %c0_i32 = arith.constant 0 : i32
    %c0_i32_0 = arith.constant 0 : i32
    %c0_i32_1 = arith.constant 0 : i32
    return %arg1, %arg0, %c0_i32, %c0_i32_0 : i32, i32, i32, i32
  }
  func.func @transform_2(%arg0: i32, %arg1: i32) -> (i32, i32, i32) {
    %c0_i32 = arith.constant 0 : i32
    %c0_i32_0 = arith.constant 0 : i32
    %c0_i32_1 = arith.constant 0 : i32
    return %arg0, %c0_i32, %c0_i32_0 : i32, i32, i32
  }
  func.func @transform_3(%arg0: i32, %arg1: i32) -> (i32, i32, i32) {
    %c0_i32 = arith.constant 0 : i32
    %c0_i32_0 = arith.constant 0 : i32
    %c0_i32_1 = arith.constant 0 : i32
    return %arg1, %c0_i32, %c0_i32_0 : i32, i32, i32
  }
  func.func @transform_4(%arg0: i32, %arg1: i32) -> (i32, i32, i32) {
    %c0_i32 = arith.constant 0 : i32
    %c0_i32_0 = arith.constant 0 : i32
    %c0_i32_1 = arith.constant 0 : i32
    return %arg1, %c0_i32, %c0_i32_0 : i32, i32, i32
  }
  func.func @transform_5(%arg0: i32, %arg1: i32) -> (i32, i32, i32) {
    %c0_i32 = arith.constant 0 : i32
    %c0_i32_0 = arith.constant 0 : i32
    %c0_i32_1 = arith.constant 0 : i32
    return %arg1, %c0_i32, %c0_i32_0 : i32, i32, i32
  }
  func.func @transform_6(%arg0: i32, %arg1: i32) -> (i32, i32, i32) {
    %c0_i32 = arith.constant 0 : i32
    %c0_i32_0 = arith.constant 0 : i32
    %c0_i32_1 = arith.constant 0 : i32
    return %arg1, %c0_i32, %c0_i32_0 : i32, i32, i32
  }
  func.func @transform_7(%arg0: i32, %arg1: i32) -> (i32, i32, i32) {
    %c0_i32 = arith.constant 0 : i32
    %c0_i32_0 = arith.constant 0 : i32
    %c0_i32_1 = arith.constant 0 : i32
    return %arg1, %c0_i32, %c0_i32_0 : i32, i32, i32
  }
  func.func @transform_8(%arg0: i32, %arg1: i32) -> (i32, i32, i32) {
    %c0_i32 = arith.constant 0 : i32
    %c0_i32_0 = arith.constant 0 : i32
    %c0_i32_1 = arith.constant 0 : i32
    return %arg1, %c0_i32, %c0_i32_0 : i32, i32, i32
  }
  func.func @transform_9(%arg0: i32, %arg1: i32) -> (i32, i32, i32) {
    %c0_i32 = arith.constant 0 : i32
    %c0_i32_0 = arith.constant 0 : i32
    %c0_i32_1 = arith.constant 0 : i32
    return %arg1, %c0_i32, %c0_i32_0 : i32, i32, i32
  }
  func.func @transform_10(%arg0: i32, %arg1: i32) -> (i32, i32, i32) {
    %c0_i32 = arith.constant 0 : i32
    %c0_i32_0 = arith.constant 0 : i32
    %c0_i32_1 = arith.constant 0 : i32
    return %arg1, %c0_i32, %c0_i32_0 : i32, i32, i32
  }
  func.func @transform_11(%arg0: i32, %arg1: i32) -> (i32, i32, i32) {
    %c0_i32 = arith.constant 0 : i32
    %c0_i32_0 = arith.constant 0 : i32
    %c0_i32_1 = arith.constant 0 : i32
    return %arg1, %c0_i32, %c0_i32_0 : i32, i32, i32
  }
  func.func @transform_12(%arg0: i32, %arg1: i32) -> (i32, i32, i32) {
    %c0_i32 = arith.constant 0 : i32
    %c0_i32_0 = arith.constant 0 : i32
    %c0_i32_1 = arith.constant 0 : i32
    return %arg1, %c0_i32, %c0_i32_0 : i32, i32, i32
  }
  func.func @transform_13(%arg0: i32, %arg1: i32) -> (i32, i32, i32) {
    %c0_i32 = arith.constant 0 : i32
    %c0_i32_0 = arith.constant 0 : i32
    %c0_i32_1 = arith.constant 0 : i32
    return %arg1, %c0_i32, %c0_i32_0 : i32, i32, i32
  }
  func.func @transform_14(%arg0: i32, %arg1: i32) -> (i32, i32, i32) {
    %c0_i32 = arith.constant 0 : i32
    %c0_i32_0 = arith.constant 0 : i32
    %c0_i32_1 = arith.constant 0 : i32
    return %arg0, %c0_i32, %c0_i32_0 : i32, i32, i32
  }
}

module attributes {stable_mosaic.version = 11 : i64} {
  func.func @_out_head_kernel(%arg0: i32, %arg1: memref<32x128xf32, #tpu.memory_space<vmem>>, %arg2: memref<128x128xbf16, #tpu.memory_space<vmem>>, %arg3: memref<1x128xf32, #tpu.memory_space<vmem>>, %arg4: memref<128x128xbf16, #tpu.memory_space<vmem>>, %arg5: memref<1x128xf32, #tpu.memory_space<vmem>>, %arg6: memref<32x128xf32, #tpu.memory_space<vmem>>, %arg7: memref<32x128xf32, #tpu.memory_space<vmem>>) attributes {dimension_semantics = [#tpu.dimension_semantics<parallel>], iteration_bounds = array<i64: 1>, scalar_prefetch = 0 : i64, scratch_operands = 0 : i64, tpu.core_type = #tpu.core_type<tc>, window_params = [{transform_indices = @transform_0, window_bounds = array<i64: 32, 128>}, {pipeline_mode = #tpu.pipeline_mode<synchronous>, transform_indices = @transform_1, window_bounds = array<i64: 128, 128>}, {pipeline_mode = #tpu.pipeline_mode<synchronous>, transform_indices = @transform_2, window_bounds = array<i64: 1, 128>}, {pipeline_mode = #tpu.pipeline_mode<synchronous>, transform_indices = @transform_3, window_bounds = array<i64: 128, 128>}, {pipeline_mode = #tpu.pipeline_mode<synchronous>, transform_indices = @transform_4, window_bounds = array<i64: 1, 128>}, {transform_indices = @transform_5, window_bounds = array<i64: 32, 128>}, {transform_indices = @transform_6, window_bounds = array<i64: 32, 128>}]} {
    %c0 = arith.constant 0 : index
    %c0_0 = arith.constant 0 : index
    %0 = vector.load %arg1[%c0, %c0_0] : memref<32x128xf32, #tpu.memory_space<vmem>>, vector<32x128xf32>
    %1 = arith.truncf %0 : vector<32x128xf32> to vector<32x128xbf16>
    %c0_1 = arith.constant 0 : index
    %c0_2 = arith.constant 0 : index
    %2 = vector.load %arg2[%c0_1, %c0_2] : memref<128x128xbf16, #tpu.memory_space<vmem>>, vector<128x128xbf16>
    %cst = arith.constant dense<0.000000e+00> : vector<32x128xf32>
    %3 = tpu.matmul %1, %2, %cst {dimension_numbers = #tpu.dot_dimension_numbers<[1], [0], [0], [1], [0, 0, 1, 1], [], []>} : vector<32x128xbf16>, vector<128x128xbf16>, vector<32x128xf32> -> vector<32x128xf32>
    %c0_3 = arith.constant 0 : index
    %c0_4 = arith.constant 0 : index
    %4 = vector.load %arg3[%c0_3, %c0_4] : memref<1x128xf32, #tpu.memory_space<vmem>>, vector<1x128xf32>
    %5 = vector.broadcast %4 : vector<1x128xf32> to vector<32x128xf32>
    %6 = arith.addf %3, %5 : vector<32x128xf32>
    %cst_5 = arith.constant 0.000000e+00 : f32
    %7 = vector.broadcast %cst_5 : f32 to vector<32x128xf32>
    %8 = arith.maximumf %6, %7 : vector<32x128xf32>
    %9 = arith.truncf %8 : vector<32x128xf32> to vector<32x128xbf16>
    %c0_6 = arith.constant 0 : index
    %c0_7 = arith.constant 0 : index
    %10 = vector.load %arg4[%c0_6, %c0_7] : memref<128x128xbf16, #tpu.memory_space<vmem>>, vector<128x128xbf16>
    %cst_8 = arith.constant dense<0.000000e+00> : vector<32x128xf32>
    %11 = tpu.matmul %9, %10, %cst_8 {dimension_numbers = #tpu.dot_dimension_numbers<[1], [0], [0], [1], [0, 0, 1, 1], [], []>} : vector<32x128xbf16>, vector<128x128xbf16>, vector<32x128xf32> -> vector<32x128xf32>
    %c0_9 = arith.constant 0 : index
    %c0_10 = arith.constant 0 : index
    %12 = vector.load %arg5[%c0_9, %c0_10] : memref<1x128xf32, #tpu.memory_space<vmem>>, vector<1x128xf32>
    %13 = vector.broadcast %12 : vector<1x128xf32> to vector<32x128xf32>
    %14 = arith.addf %11, %13 : vector<32x128xf32>
    %c0_11 = arith.constant 0 : index
    %c0_12 = arith.constant 0 : index
    %15 = vector.load %arg6[%c0_11, %c0_12] : memref<32x128xf32, #tpu.memory_space<vmem>>, vector<32x128xf32>
    %16 = arith.addf %14, %15 : vector<32x128xf32>
    %c0_13 = arith.constant 0 : index
    %c0_14 = arith.constant 0 : index
    %17 = vector.load %arg7[%c0_13, %c0_14] : memref<32x128xf32, #tpu.memory_space<vmem>>, vector<32x128xf32>
    tpu.vector_store %arg7[%c0_13, %c0_14], %16 {strides = array<i32>} : memref<32x128xf32, #tpu.memory_space<vmem>>, vector<32x128xf32>,
    return
  }
  func.func @transform_0(%arg0: i32) -> (i32, i32) {
    %c0_i32 = arith.constant 0 : i32
    %c0_i32_0 = arith.constant 0 : i32
    return %arg0, %c0_i32 : i32, i32
  }
  func.func @transform_1(%arg0: i32) -> (i32, i32) {
    %c0_i32 = arith.constant 0 : i32
    %c0_i32_0 = arith.constant 0 : i32
    %c0_i32_1 = arith.constant 0 : i32
    return %c0_i32, %c0_i32_0 : i32, i32
  }
  func.func @transform_2(%arg0: i32) -> (i32, i32) {
    %c0_i32 = arith.constant 0 : i32
    %c0_i32_0 = arith.constant 0 : i32
    %c0_i32_1 = arith.constant 0 : i32
    return %c0_i32, %c0_i32_0 : i32, i32
  }
  func.func @transform_3(%arg0: i32) -> (i32, i32) {
    %c0_i32 = arith.constant 0 : i32
    %c0_i32_0 = arith.constant 0 : i32
    %c0_i32_1 = arith.constant 0 : i32
    return %c0_i32, %c0_i32_0 : i32, i32
  }
  func.func @transform_4(%arg0: i32) -> (i32, i32) {
    %c0_i32 = arith.constant 0 : i32
    %c0_i32_0 = arith.constant 0 : i32
    %c0_i32_1 = arith.constant 0 : i32
    return %c0_i32, %c0_i32_0 : i32, i32
  }
  func.func @transform_5(%arg0: i32) -> (i32, i32) {
    %c0_i32 = arith.constant 0 : i32
    %c0_i32_0 = arith.constant 0 : i32
    return %arg0, %c0_i32 : i32, i32
  }
  func.func @transform_6(%arg0: i32) -> (i32, i32) {
    %c0_i32 = arith.constant 0 : i32
    %c0_i32_0 = arith.constant 0 : i32
    return %arg0, %c0_i32 : i32, i32
  }
}

</mosaic_0001>

<llo_original>
// kernel: backbone_forward.6
$region0: #{backbone_forward.6}
  #allocation0 [shape = 'u32[]', space=smem, size = 0x4, offset = 0x4, fixed_abs, tag = 'smem constant byte address 0x4 - core index']
  #allocation1 [shape = 'u32[144,128]{1,0:T(1,128)}', space=vmem, size = 0x12000, scoped, tag = 'internal scratch']
  %s0 = inlined_call_operand.vmem [shape: f32[2,16], index: 0, kind: input, shape index: {}]
  %s1 = inlined_call_operand.vmem [shape: bf16[16,128], index: 1, kind: input, shape index: {}]
  %s2 = inlined_call_operand.vmem [shape: f32[1,128], index: 2, kind: input, shape index: {}]
  %s3 = inlined_call_operand.hbm [shape: bf16[128,128], index: 3, kind: input, shape index: {}]
  %s4 = inlined_call_operand.vmem [shape: f32[1,128], index: 4, kind: input, shape index: {}]
  %s5 = inlined_call_operand.vmem [shape: f32[2,128], index: 5, kind: output, shape index: {}]
  %s6 = sld [smem:[#allocation0]]
  $region34: #{backbone_forward.6} parent=0
    _
  %s8 = ssub.s32 1, %s6
  %s9 = scalar_select 0, %s8, %s6
  $region1: #{backbone_forward.6} parent=0
    #allocation2 [shape = 'u8[32768]{0}', space=vmem, size = 0x8000, scoped, tag = 'input window, operand 3, single buffered']
    #allocation3 [shape = 's32[1]{0}', space=sflag, size = 0x4, scoped, tag = 'scoped memory for backbone_forward.6']
    %10 = vsyncpa [#allocation3], 0
    // Predicated region
    $region2: #{backbone_forward.6} parent=1 // pred_check
      _
    $region3: #{backbone_forward.6} parent=1 // pred_check_branch
      %12 = sbr.rel (0) target = $region5
    $region4: #{backbone_forward.6} parent=1 // pred_region
      _
    $region5: #{backbone_forward.6} parent=1 // pred_fallthru
      _
    // Predicated region
    $region6: #{backbone_forward.6} parent=1 // pred_check
      _
    $region7: #{backbone_forward.6} parent=1 // pred_check_branch
      %14 = sbr.rel (0) target = $region9
    $region8: #{backbone_forward.6} parent=1 // pred_region
      _
    $region9: #{backbone_forward.6} parent=1 // pred_fallthru
      _
    // Predicated region
    $region10: #{backbone_forward.6} parent=1 // pred_check
      _
    $region11: #{backbone_forward.6} parent=1 // pred_check_branch
      %16 = sbr.rel (0) target = $region13
    $region12: #{backbone_forward.6} parent=1 // pred_region
      _
    $region13: #{backbone_forward.6} parent=1 // pred_fallthru
      _
    // Predicated region
    $region14: #{backbone_forward.6} parent=1 // pred_check
      _
    $region15: #{backbone_forward.6} parent=1 // pred_check_branch
      %18 = sbr.rel (0) target = $region17
    $region16: #{backbone_forward.6} parent=1 // pred_region
      %s20 = ssub.s32 1024, 1024
      %21 = vsyncadd [#allocation3], %s20
      %s22 = sshll.u32 [#allocation2], 4
      %s23 = int_to_ptr.vmem [resolvable:$true] %s22
      %28 = dma.hbm_to_vmem [thread:$0]  %s3, 1024, %s23, [#allocation3], 64, 64, 4
    $region17: #{backbone_forward.6} parent=1 // pred_fallthru
      _
    // Predicated region
    $region18: #{backbone_forward.6} parent=1 // pred_check
      _
    $region19: #{backbone_forward.6} parent=1 // pred_check_branch
      %30 = sbr.rel (0) target = $region21
    $region20: #{backbone_forward.6} parent=1 // pred_region
      _
    $region21: #{backbone_forward.6} parent=1 // pred_fallthru
      _
    // Predicated region
    $region22: #{backbone_forward.6} parent=1 // pred_check
      _
    $region23: #{backbone_forward.6} parent=1 // pred_check_branch
      %32 = sbr.rel (0) target = $region25
    $region24: #{backbone_forward.6} parent=1 // pred_region
      %33 = dma.done [#allocation3], 1024
    $region25: #{backbone_forward.6} parent=1 // pred_fallthru
      _
    %v35 = vld [vmem:[%s0] sm:$0x3]
    %v36 = vpack.c.bf16 %v35, %v35
    %v37 = vld [vmem:[%s1] sm:$0xf]
    %v38 = vld [vmem:[%s1 + $0x4] sm:$0xf]
    %v39 = vld [vmem:[%s2] sm:$0x1]
    %v41 = vlaneseq
    %v42 = vshrl.u32 %v41, 7
    %v43 = vsub.s32 0, %v42
    %v44 = vrot.slane %v39, %v43
    %v48 = vunpack.c.l.b16 %v37
    %v49 = vunpack.c.l.b16 %v38
    %v50 = vpack.c.b16 %v49, %v48
    %vm52 = vcmask 130048
    %v54 = vsel %vm52, %v36, 0
    %56 = vmatprep.subr.bf16.mxu0 0
    %57 = vmatpush1.bf16.msra.mxu0 %v50
    %58 = vmatprep.subr.bf16.mxu0 0
    %59 = vmatpush1.bf16.msra.mxu0 0
    %60 = vmatprep.subr.bf16.mxu0 0
    %61 = vmatpush1.bf16.msra.mxu0 0
    %62 = vmatprep.subr.bf16.mxu0 0
    %63 = vmatpush1.bf16.msra.mxu0 0
    %64 = vmatprep.subr.bf16.mxu0 0
    %65 = vmatpush1.bf16.msra.mxu0 0
    %66 = vmatprep.subr.bf16.mxu0 0
    %67 = vmatpush1.bf16.msra.mxu0 0
    %68 = vmatprep.subr.bf16.mxu0 0
    %69 = vmatpush1.bf16.msra.mxu0 0
    %70 = vmatprep.subr.bf16.mxu0 0
    %71 = vmatpush1.bf16.msra.mxu0 0
    %72 = vmatprep.subr.bf16.mxu0 0
    %73 = vmatpush1.bf16.msra.mxu0 0
    %74 = vmatprep.subr.bf16.mxu0 0
    %75 = vmatpush1.bf16.msra.mxu0 0
    %76 = vmatprep.subr.bf16.mxu0 0
    %77 = vmatpush1.bf16.msra.mxu0 0
    %78 = vmatprep.subr.bf16.mxu0 0
    %79 = vmatpush1.bf16.msra.mxu0 0
    %80 = vmatprep.subr.bf16.mxu0 0
    %81 = vmatpush1.bf16.msra.mxu0 0
    %82 = vmatprep.subr.bf16.mxu0 0
    %83 = vmatpush1.bf16.msra.mxu0 0
    %84 = vmatprep.subr.bf16.mxu0 0
    %85 = vmatpush1.bf16.msra.mxu0 0
    %86 = vmatprep.subr.bf16.mxu0 0
    %87 = vmatpush1.bf16.msra.mxu0 0
    %88 = vmatprep.mubr.bf16.mxu0 0
    %89 = vmatmul.mubr.bf16.gmra.mrb[0].mxu0 %v54
    %v90 = vpop.f32.mrb[0].mxu0
    %v91 = vadd.f32 %v44, %v90
    %v92 = vpop.f32.mrb[0].mxu0
    %v93 = vpop.f32.mrb[0].mxu0
    %v94 = vpop.f32.mrb[0].mxu0
    %95 = vdwg.mxu0
    %v96 = vxor.u32 %v91, 2147483648
    %v97 = vmul.f32 %v96, 1.442695
    %v98 = vpow.pop %v97
    %v99 = vadd.f32 %v98, 1.0
    %v100 = vrcp.pop %v99
    %v101 = vmul.f32 1.0, %v100
    %v102 = vmul.f32 %v91, %v101
    %v103 = vpack.c.bf16 %v102, %v102
    %v104 = vld [vmem:[#allocation2] sm:$0xf]
    %v105 = vld [vmem:[#allocation2 + $0x4] sm:$0xf]
    %v106 = vld [vmem:[#allocation2 + $0x8] sm:$0xf]
    %v107 = vld [vmem:[#allocation2 + $0xc] sm:$0xf]
    %v108 = vld [vmem:[#allocation2 + $0x10] sm:$0xf]
    %v109 = vld [vmem:[#allocation2 + $0x14] sm:$0xf]
    %v110 = vld [vmem:[#allocation2 + $0x18] sm:$0xf]
    %v111 = vld [vmem:[#allocation2 + $0x1c] sm:$0xf]
    %v112 = vld [vmem:[#allocation2 + $0x20] sm:$0xf]
    %v113 = vld [vmem:[#allocation2 + $0x24] sm:$0xf]
    %v114 = vld [vmem:[#allocation2 + $0x28] sm:$0xf]
    %v115 = vld [vmem:[#allocation2 + $0x2c] sm:$0xf]
    %v116 = vld [vmem:[#allocation2 + $0x30] sm:$0xf]
    %v117 = vld [vmem:[#allocation2 + $0x34] sm:$0xf]
    %v118 = vld [vmem:[#allocation2 + $0x38] sm:$0xf]
    %v119 = vld [vmem:[#allocation2 + $0x3c] sm:$0xf]
    %v120 = vld [vmem:[%s4] sm:$0x1]
    %v122 = vlaneseq
    %v123 = vshrl.u32 %v122, 7
    %v124 = vsub.s32 0, %v123
    %v125 = vrot.slane %v120, %v124
    %v143 = vunpack.c.l.b16 %v104
    %v144 = vunpack.c.l.b16 %v105
    %v145 = vunpack.c.l.b16 %v106
    %v146 = vunpack.c.l.b16 %v107
    %v147 = vunpack.c.l.b16 %v108
    %v148 = vunpack.c.l.b16 %v109
    %v149 = vunpack.c.l.b16 %v110
    %v150 = vunpack.c.l.b16 %v111
    %v151 = vunpack.c.l.b16 %v112
    %v152 = vunpack.c.l.b16 %v113
    %v153 = vunpack.c.l.b16 %v114
    %v154 = vunpack.c.l.b16 %v115
    %v155 = vunpack.c.l.b16 %v116
    %v156 = vunpack.c.l.b16 %v117
    %v157 = vunpack.c.l.b16 %v118
    %v158 = vunpack.c.l.b16 %v119
    %v159 = vpack.c.b16 %v144, %v143
    %v160 = vpack.c.b16 %v146, %v145
    %v161 = vpack.c.b16 %v148, %v147
    %v162 = vpack.c.b16 %v150, %v149
    %v163 = vpack.c.b16 %v152, %v151
    %v164 = vpack.c.b16 %v154, %v153
    %v165 = vpack.c.b16 %v156, %v155
    %v166 = vpack.c.b16 %v158, %v157
    %175 = vmatprep.subr.bf16.mxu0 0
    %176 = vmatpush1.bf16.msra.mxu0 %v159
    %177 = vmatprep.subr.bf16.mxu0 0
    %178 = vmatpush1.bf16.msra.mxu0 %v160
    %179 = vmatprep.subr.bf16.mxu0 0
    %180 = vmatpush1.bf16.msra.mxu0 %v161
    %181 = vmatprep.subr.bf16.mxu0 0
    %182 = vmatpush1.bf16.msra.mxu0 %v162
    %183 = vmatprep.subr.bf16.mxu0 0
    %184 = vmatpush1.bf16.msra.mxu0 %v163
    %185 = vmatprep.subr.bf16.mxu0 0
    %186 = vmatpush1.bf16.msra.mxu0 %v164
    %187 = vmatprep.subr.bf16.mxu0 0
    %188 = vmatpush1.bf16.msra.mxu0 %v165
    %189 = vmatprep.subr.bf16.mxu0 0
    %190 = vmatpush1.bf16.msra.mxu0 %v166
    %191 = vmatprep.subr.bf16.mxu0 0
    %192 = vmatpush1.bf16.msra.mxu0 0
    %193 = vmatprep.subr.bf16.mxu0 0
    %194 = vmatpush1.bf16.msra.mxu0 0
    %195 = vmatprep.subr.bf16.mxu0 0
    %196 = vmatpush1.bf16.msra.mxu0 0
    %197 = vmatprep.subr.bf16.mxu0 0
    %198 = vmatpush1.bf16.msra.mxu0 0
    %199 = vmatprep.subr.bf16.mxu0 0
    %200 = vmatpush1.bf16.msra.mxu0 0
    %201 = vmatprep.subr.bf16.mxu0 0
    %202 = vmatpush1.bf16.msra.mxu0 0
    %203 = vmatprep.subr.bf16.mxu0 0
    %204 = vmatpush1.bf16.msra.mxu0 0
    %205 = vmatprep.subr.bf16.mxu0 0
    %206 = vmatpush1.bf16.msra.mxu0 0
    %207 = vmatprep.mubr.bf16.mxu0 0
    %208 = vmatmul.mubr.bf16.gmra.mrb[0].mxu0 %v103
    %v209 = vpop.f32.mrb[0].mxu0
    %v210 = vadd.f32 %v125, %v209
    %v211 = vpop.f32.mrb[0].mxu0
    %v212 = vpop.f32.mrb[0].mxu0
    %v213 = vpop.f32.mrb[0].mxu0
    %214 = vdwg.mxu0
    %v215 = vxor.u32 %v210, 2147483648
    %v216 = vmul.f32 %v215, 1.442695
    %v217 = vpow.pop %v216
    %v218 = vadd.f32 %v217, 1.0
    %v219 = vrcp.pop %v218
    %v220 = vmul.f32 1.0, %v219
    %v221 = vmul.f32 %v210, %v220
    %222 = vst [vmem:[%s5] sm:$0x3] %v221
    // Predicated region
    $region26: #{backbone_forward.6} parent=1 // pred_check
      _
    $region27: #{backbone_forward.6} parent=1 // pred_check_branch
      %224 = sbr.rel (0) target = $region29
    $region28: #{backbone_forward.6} parent=1 // pred_region
      _
    $region29: #{backbone_forward.6} parent=1 // pred_fallthru
      _
    // Predicated region
    $region30: #{backbone_forward.6} parent=1 // pred_check
      _
    $region31: #{backbone_forward.6} parent=1 // pred_check_branch
      %226 = sbr.rel (0) target = $region33
    $region32: #{backbone_forward.6} parent=1 // pred_region
      _
    $region33: #{backbone_forward.6} parent=1 // pred_fallthru
      _
    %227 = vsyncpa [#allocation3], 1

// kernel: backbone_forward.7
$region0: #{backbone_forward.7}
  #allocation0 [shape = 'u32[]', space=smem, size = 0x4, offset = 0x4, fixed_abs, tag = 'smem constant byte address 0x4 - core index']
  #allocation1 [shape = 'u32[144,128]{1,0:T(1,128)}', space=vmem, size = 0x12000, scoped, tag = 'internal scratch']
  %s0 = inlined_call_operand.vmem [shape: f32[2,128], index: 0, kind: input, shape index: {}]
  %s1 = inlined_call_operand.vmem [shape: bf16[2,128,128], index: 1, kind: input, shape index: {}]
  %s2 = inlined_call_operand.vmem [shape: f32[2,1,128], index: 2, kind: input, shape index: {}]
  %s3 = inlined_call_operand.vmem [shape: f32[2,2,128], index: 3, kind: output, shape index: {}]
  %s4 = sld [smem:[#allocation0]]
  $region45: #{backbone_forward.7} parent=0
    _
  %s6 = ssub.s32 1, %s4
  %s7 = scalar_select 0, %s6, %s4
  loop: start=0, step=1, limit=4
  $region2: #{backbone_forward.7} parent=0 // loop_pre_header
    _
  $region3: #{backbone_forward.7} parent=0 // loop_header
    %s9 = sphi 0, %s13
    %p10 = scmp.ge.s32.totalorder %s9, 4
    %s17 = sphi 0, %s17
    %s19 = sphi 0, %s17
    %s20 = sphi 0, %s19
    %s34 = sphi 0, %s20
    %s40 = sphi 0, %s42
    %s43 = sphi 0, %s40
    %s44 = sphi 0, %s43
    %s60 = sphi 0, %s44
    %s66 = sphi 0, %s68
    %s69 = sphi 0, %s66
    %s70 = sphi 0, %s69
    %s86 = sphi 0, %s70
    %s92 = sphi 0, %s94
    %s95 = sphi 0, %s92
    %s96 = sphi 0, %s95
    %s112 = sphi 0, %s96
  $region4: #{backbone_forward.7} parent=0 // loop_header_branch
    %12 = sbr.rel (%p10) target = $region8
  $region5: #{backbone_forward.7} parent=0 // loop_body
    %s14 = ssub.s32 %s9, 1
    %s15 = ssub.s32 %s9, 2
    %s16 = sadd.s32 %s9, 1
    %s18 = sadd.s32 %s17, 1
    %p21 = scmp.eq.s32.totalorder %s9, 1
    %p22 = scmp.ne.s32.totalorder %s17, %s19
    %p23 = scmp.eq.s32.totalorder %s9, 0
    %p24 = por %p22, %p23
    %p25 = scmp.ne.s32.totalorder %s17, %s19
    %p26 = scmp.eq.s32.totalorder %s14, 1
    %p27 = por %p25, %p26
    %p28 = scmp.ne.s32.totalorder %s19, %s20
    %p29 = scmp.eq.s32.totalorder %s14, 0
    %p30 = por %p28, %p29
    %p31 = scmp.ne.s32.totalorder %s19, %s20
    %p32 = scmp.eq.s32.totalorder %s15, 1
    %p33 = por %p31, %p32
    %p35 = scmp.ne.s32.totalorder %s20, %s34
    %p36 = scmp.eq.s32.totalorder %s15, 0
    %p37 = por %p35, %p36
    %s38 = ssub.s32 %s9, %s16
    %p39 = scmp.eq.s32.totalorder %s38, 0
    %s41 = sadd.s32 %s40, 1
    %s42 = scalar_select %p39, %s40, %s41
    %p45 = pneg %p39
    %p46 = scmp.eq.s32.totalorder %s9, 1
    %p47 = por %p45, %p46
    %p48 = scmp.ne.s32.totalorder %s40, %s43
    %p49 = scmp.eq.s32.totalorder %s9, 0
    %p50 = por %p48, %p49
    %p51 = scmp.ne.s32.totalorder %s40, %s43
    %p52 = scmp.eq.s32.totalorder %s14, 1
    %p53 = por %p51, %p52
    %p54 = scmp.ne.s32.totalorder %s43, %s44
    %p55 = scmp.eq.s32.totalorder %s14, 0
    %p56 = por %p54, %p55
    %p57 = scmp.ne.s32.totalorder %s43, %s44
    %p58 = scmp.eq.s32.totalorder %s15, 1
    %p59 = por %p57, %p58
    %p61 = scmp.ne.s32.totalorder %s44, %s60
    %p62 = scmp.eq.s32.totalorder %s15, 0
    %p63 = por %p61, %p62
    %s64 = ssub.s32 %s9, %s16
    %p65 = scmp.eq.s32.totalorder %s64, 0
    %s67 = sadd.s32 %s66, 1
    %s68 = scalar_select %p65, %s66, %s67
    %p71 = pneg %p65
    %p72 = scmp.eq.s32.totalorder %s9, 1
    %p73 = por %p71, %p72
    %p74 = scmp.ne.s32.totalorder %s66, %s69
    %p75 = scmp.eq.s32.totalorder %s9, 0
    %p76 = por %p74, %p75
    %p77 = scmp.ne.s32.totalorder %s66, %s69
    %p78 = scmp.eq.s32.totalorder %s14, 1
    %p79 = por %p77, %p78
    %p80 = scmp.ne.s32.totalorder %s69, %s70
    %p81 = scmp.eq.s32.totalorder %s14, 0
    %p82 = por %p80, %p81
    %p83 = scmp.ne.s32.totalorder %s69, %s70
    %p84 = scmp.eq.s32.totalorder %s15, 1
    %p85 = por %p83, %p84
    %p87 = scmp.ne.s32.totalorder %s70, %s86
    %p88 = scmp.eq.s32.totalorder %s15, 0
    %p89 = por %p87, %p88
    %s90 = ssub.s32 %s9, %s16
    %p91 = scmp.eq.s32.totalorder %s90, 0
    %s93 = sadd.s32 %s92, 1
    %s94 = scalar_select %p91, %s92, %s93
    %p97 = pneg %p91
    %p98 = scmp.eq.s32.totalorder %s9, 1
    %p99 = por %p97, %p98
    %p100 = scmp.ne.s32.totalorder %s92, %s95
    %p101 = scmp.eq.s32.totalorder %s9, 0
    %p102 = por %p100, %p101
    %p103 = scmp.ne.s32.totalorder %s92, %s95
    %p104 = scmp.eq.s32.totalorder %s14, 1
    %p105 = por %p103, %p104
    %p106 = scmp.ne.s32.totalorder %s95, %s96
    %p107 = scmp.eq.s32.totalorder %s14, 0
    %p108 = por %p106, %p107
    %p109 = scmp.ne.s32.totalorder %s95, %s96
    %p110 = scmp.eq.s32.totalorder %s15, 1
    %p111 = por %p109, %p110
    %p113 = scmp.ne.s32.totalorder %s96, %s112
    %p114 = scmp.eq.s32.totalorder %s15, 0
    %p115 = por %p113, %p114
    %p116 = scmp.le.s32.totalorder 1, %s9
    %p117 = scmp.lt.s32.totalorder %s9, 3
    %p118 = pnand %p116, %p117
    %p119 = pneg %p118
    // Predicated region
    $region9: #{backbone_forward.7} parent=5 // pred_check
      _
    $region10: #{backbone_forward.7} parent=5 // pred_check_branch
      %121 = sbr.rel (%p118) target = $region12
    $region11: #{backbone_forward.7} parent=5 // pred_region
      %s122 = ssub.s32 %s9, 1
      // Predicated region
      $region13: #{backbone_forward.7} parent=11 // pred_check
        %p123 = pneg %p30
      $region14: #{backbone_forward.7} parent=11 // pred_check_branch
        %125 = sbr.rel (%p123) target = $region16
      $region15: #{backbone_forward.7} parent=11 // pred_region
        _
      $region16: #{backbone_forward.7} parent=11 // pred_fallthru
        _
    $region12: #{backbone_forward.7} parent=5 // pred_fallthru
      _
    %p126 = scmp.lt.s32.totalorder %s9, 2
    // Predicated region
    $region17: #{backbone_forward.7} parent=5 // pred_check
      %p127 = pneg %p126
    $region18: #{backbone_forward.7} parent=5 // pred_check_branch
      %129 = sbr.rel (%p127) target = $region20
    $region19: #{backbone_forward.7} parent=5 // pred_region
      // Predicated region
      $region21: #{backbone_forward.7} parent=19 // pred_check
        %p130 = pneg %p50
      $region22: #{backbone_forward.7} parent=19 // pred_check_branch
        %132 = sbr.rel (%p130) target = $region24
      $region23: #{backbone_forward.7} parent=19 // pred_region
        %p133 = scmp.lt.s32.totalorder %s9, 1
        %s134 = scalar_select %p133, %s9, 1
        %s135 = smul.addr %s134, 16
        %s136 = smul.addr %s135, 4
        %s137 = scalar_lea.vmem %s1, %s136
      $region24: #{backbone_forward.7} parent=19 // pred_fallthru
        _
      // Predicated region
      $region25: #{backbone_forward.7} parent=19 // pred_check
        %p138 = pneg %p76
      $region26: #{backbone_forward.7} parent=19 // pred_check_branch
        %140 = sbr.rel (%p138) target = $region28
      $region27: #{backbone_forward.7} parent=19 // pred_region
        %p141 = scmp.lt.s32.totalorder %s9, 1
        %s142 = scalar_select %p141, %s9, 1
        %s143 = scalar_lea.vmem %s2, %s142
      $region28: #{backbone_forward.7} parent=19 // pred_fallthru
        _
    $region20: #{backbone_forward.7} parent=5 // pred_fallthru
      _
    %p144 = scmp.le.s32.totalorder 1, %s9
    %p145 = scmp.lt.s32.totalorder %s9, 3
    %p146 = pnand %p144, %p145
    %p147 = pneg %p146
    // Predicated region
    $region29: #{backbone_forward.7} parent=5 // pred_check
      _
    $region30: #{backbone_forward.7} parent=5 // pred_check_branch
      %149 = sbr.rel (%p146) target = $region32
    $region31: #{backbone_forward.7} parent=5 // pred_region
      %s150 = ssub.s32 %s9, 1
      %p151 = pneg %p30
      %p152 = pneg %p27
      %p153 = scmp.lt.s32.totalorder %s14, 1
      %s154 = scalar_select %p153, %s14, 1
      %s155 = smul.addr %s154, 16
      %s156 = smul.addr %s155, 4
      %s157 = scalar_lea.vmem %s1, %s156
      %p158 = pneg %p56
      %p159 = pneg %p53
      %p160 = scmp.lt.s32.totalorder %s14, 1
      %s161 = scalar_select %p160, %s14, 1
      %s162 = scalar_lea.vmem %s2, %s161
      %p163 = pneg %p82
      %p164 = pneg %p79
      %p165 = pneg %p108
      %p166 = pneg %p105
      %p167 = scmp.lt.s32.totalorder %s14, 1
      %s168 = scalar_select %p167, %s14, 1
      %s169 = smul.addr %s168, 2
      %s170 = scalar_lea.vmem %s3, %s169
      %p171 = scmp.lt.s32.totalorder %s14, 1
      %s172 = scalar_select %p171, %s14, 1
      %s173 = smul.addr %s172, 16
      %s174 = smul.addr %s173, 4
      %s175 = scalar_lea.vmem %s1, %s174
      %p176 = scmp.lt.s32.totalorder %s14, 1
      %s177 = scalar_select %p176, %s14, 1
      %s178 = scalar_lea.vmem %s2, %s177
      %p179 = scmp.lt.s32.totalorder %s14, 1
      %s180 = scalar_select %p179, %s14, 1
      %s181 = smul.addr %s180, 2
      %s182 = scalar_lea.vmem %s3, %s181
      %v184 = vld [vmem:[%s0] sm:$0x3]
      %v185 = vpack.c.bf16 %v184, %v184
      %v186 = vld [vmem:[%s175] sm:$0xf]
      %v187 = vld [vmem:[%s175 + $0x4] sm:$0xf]
      %v188 = vld [vmem:[%s175 + $0x8] sm:$0xf]
      %v189 = vld [vmem:[%s175 + $0xc] sm:$0xf]
      %v190 = vld [vmem:[%s175 + $0x10] sm:$0xf]
      %v191 = vld [vmem:[%s175 + $0x14] sm:$0xf]
      %v192 = vld [vmem:[%s175 + $0x18] sm:$0xf]
      %v193 = vld [vmem:[%s175 + $0x1c] sm:$0xf]
      %v194 = vld [vmem:[%s175 + $0x20] sm:$0xf]
      %v195 = vld [vmem:[%s175 + $0x24] sm:$0xf]
      %v196 = vld [vmem:[%s175 + $0x28] sm:$0xf]
      %v197 = vld [vmem:[%s175 + $0x2c] sm:$0xf]
      %v198 = vld [vmem:[%s175 + $0x30] sm:$0xf]
      %v199 = vld [vmem:[%s175 + $0x34] sm:$0xf]
      %v200 = vld [vmem:[%s175 + $0x38] sm:$0xf]
      %v201 = vld [vmem:[%s175 + $0x3c] sm:$0xf]
      %v202 = vld [vmem:[%s178] sm:$0x1]
      %v204 = vlaneseq
      %v205 = vshrl.u32 %v204, 7
      %v206 = vsub.s32 0, %v205
      %v207 = vrot.slane %v202, %v206
      %v225 = vunpack.c.l.b16 %v186
      %v226 = vunpack.c.l.b16 %v187
      %v227 = vunpack.c.l.b16 %v188
      %v228 = vunpack.c.l.b16 %v189
      %v229 = vunpack.c.l.b16 %v190
      %v230 = vunpack.c.l.b16 %v191
      %v231 = vunpack.c.l.b16 %v192
      %v232 = vunpack.c.l.b16 %v193
      %v233 = vunpack.c.l.b16 %v194
      %v234 = vunpack.c.l.b16 %v195
      %v235 = vunpack.c.l.b16 %v196
      %v236 = vunpack.c.l.b16 %v197
      %v237 = vunpack.c.l.b16 %v198
      %v238 = vunpack.c.l.b16 %v199
      %v239 = vunpack.c.l.b16 %v200
      %v240 = vunpack.c.l.b16 %v201
      %v241 = vpack.c.b16 %v226, %v225
      %v242 = vpack.c.b16 %v228, %v227
      %v243 = vpack.c.b16 %v230, %v229
      %v244 = vpack.c.b16 %v232, %v231
      %v245 = vpack.c.b16 %v234, %v233
      %v246 = vpack.c.b16 %v236, %v235
      %v247 = vpack.c.b16 %v238, %v237
      %v248 = vpack.c.b16 %v240, %v239
      %257 = vmatprep.subr.bf16.mxu0 0
      %258 = vmatpush1.bf16.msra.mxu0 %v241
      %259 = vmatprep.subr.bf16.mxu0 0
      %260 = vmatpush1.bf16.msra.mxu0 %v242
      %261 = vmatprep.subr.bf16.mxu0 0
      %262 = vmatpush1.bf16.msra.mxu0 %v243
      %263 = vmatprep.subr.bf16.mxu0 0
      %264 = vmatpush1.bf16.msra.mxu0 %v244
      %265 = vmatprep.subr.bf16.mxu0 0
      %266 = vmatpush1.bf16.msra.mxu0 %v245
      %267 = vmatprep.subr.bf16.mxu0 0
      %268 = vmatpush1.bf16.msra.mxu0 %v246
      %269 = vmatprep.subr.bf16.mxu0 0
      %270 = vmatpush1.bf16.msra.mxu0 %v247
      %271 = vmatprep.subr.bf16.mxu0 0
      %272 = vmatpush1.bf16.msra.mxu0 %v248
      %273 = vmatprep.subr.bf16.mxu0 0
      %274 = vmatpush1.bf16.msra.mxu0 0
      %275 = vmatprep.subr.bf16.mxu0 0
      %276 = vmatpush1.bf16.msra.mxu0 0
      %277 = vmatprep.subr.bf16.mxu0 0
      %278 = vmatpush1.bf16.msra.mxu0 0
      %279 = vmatprep.subr.bf16.mxu0 0
      %280 = vmatpush1.bf16.msra.mxu0 0
      %281 = vmatprep.subr.bf16.mxu0 0
      %282 = vmatpush1.bf16.msra.mxu0 0
      %283 = vmatprep.subr.bf16.mxu0 0
      %284 = vmatpush1.bf16.msra.mxu0 0
      %285 = vmatprep.subr.bf16.mxu0 0
      %286 = vmatpush1.bf16.msra.mxu0 0
      %287 = vmatprep.subr.bf16.mxu0 0
      %288 = vmatpush1.bf16.msra.mxu0 0
      %289 = vmatprep.mubr.bf16.mxu0 0
      %290 = vmatmul.mubr.bf16.gmra.mrb[0].mxu0 %v185
      %v291 = vpop.f32.mrb[0].mxu0
      %v292 = vadd.f32 %v207, %v291
      %v293 = vpop.f32.mrb[0].mxu0
      %v294 = vpop.f32.mrb[0].mxu0
      %v295 = vpop.f32.mrb[0].mxu0
      %296 = vdwg.mxu0
      %297 = vst [vmem:[%s182] sm:$0x3] %v292
      %p298 = scmp.lt.s32.totalorder %s14, 1
      %s299 = scalar_select %p298, %s14, 1
      %s300 = smul.addr %s299, 2
      %s301 = scalar_lea.vmem %s3, %s300
      // Predicated region
      $region33: #{backbone_forward.7} parent=31 // pred_check
        %p302 = pneg %p105
      $region34: #{backbone_forward.7} parent=31 // pred_check_branch
        %304 = sbr.rel (%p302) target = $region36
      $region35: #{backbone_forward.7} parent=31 // pred_region
        _
      $region36: #{backbone_forward.7} parent=31 // pred_fallthru
        _
    $region32: #{backbone_forward.7} parent=5 // pred_fallthru
      _
    %p305 = scmp.le.s32.totalorder 2, %s9
    // Predicated region
    $region37: #{backbone_forward.7} parent=5 // pred_check
      %p306 = pneg %p305
    $region38: #{backbone_forward.7} parent=5 // pred_check_branch
      %308 = sbr.rel (%p306) target = $region40
    $region39: #{backbone_forward.7} parent=5 // pred_region
      %s309 = ssub.s32 %s9, 2
      // Predicated region
      $region41: #{backbone_forward.7} parent=39 // pred_check
        %p310 = pneg %p111
      $region42: #{backbone_forward.7} parent=39 // pred_check_branch
        %312 = sbr.rel (%p310) target = $region44
      $region43: #{backbone_forward.7} parent=39 // pred_region
        %p313 = scmp.lt.s32.totalorder %s15, 1
        %s314 = scalar_select %p313, %s15, 1
        %s315 = smul.addr %s314, 2
        %s316 = scalar_lea.vmem %s3, %s315
      $region44: #{backbone_forward.7} parent=39 // pred_fallthru
        _
    $region40: #{backbone_forward.7} parent=5 // pred_fallthru
      _
  $region6: #{backbone_forward.7} parent=0 // loop_footer
    %s13 = sadd.s32 1, %s9
  $region7: #{backbone_forward.7} parent=0 // loop_footer_branch
    %8 = sbr.rel target = $region3
  $region8: #{backbone_forward.7} parent=0 // loop_exit
    _

// kernel: backbone_forward.5
$region0: #{backbone_forward.5}
  #allocation0 [shape = 'u32[]', space=smem, size = 0x4, offset = 0x4, fixed_abs, tag = 'smem constant byte address 0x4 - core index']
  #allocation1 [shape = 'u32[144,128]{1,0:T(1,128)}', space=vmem, size = 0x12000, scoped, tag = 'internal scratch']
  %s0 = inlined_call_operand.vmem [shape: f32[32,4], index: 0, kind: input, shape index: {}]
  %s1 = inlined_call_operand.hbm [shape: bf16[4,128], index: 1, kind: input, shape index: {}]
  %s2 = inlined_call_operand.hbm [shape: f32[1,128], index: 2, kind: input, shape index: {}]
  %s3 = inlined_call_operand.vmem [shape: f32[32,128], index: 3, kind: output, shape index: {}]
  %s4 = sld [smem:[#allocation0]]
  $region30: #{backbone_forward.5} parent=0
    _
  %s6 = ssub.s32 1, %s4
  %s7 = scalar_select 0, %s6, %s4
  $region1: #{backbone_forward.5} parent=0
    #allocation2 [shape = 'u8[1024]{0}', space=vmem, size = 0x400, scoped, tag = 'input window, operand 1, single buffered']
    #allocation3 [shape = 's32[1]{0}', space=sflag, size = 0x4, scoped, tag = 'scoped memory for backbone_forward.5']
    #allocation4 [shape = 'u8[512]{0}', space=vmem, size = 0x400, scoped, tag = 'input window, operand 2, single buffered']
    #allocation5 [shape = 's32[1]{0}', space=sflag, size = 0x4, scoped, tag = 'scoped memory for backbone_forward.5']
    %8 = vsyncpa [#allocation3], 0
    %9 = vsyncpa [#allocation5], 0
    // Predicated region
    $region2: #{backbone_forward.5} parent=1 // pred_check
      _
    $region3: #{backbone_forward.5} parent=1 // pred_check_branch
      %11 = sbr.rel (0) target = $region5
    $region4: #{backbone_forward.5} parent=1 // pred_region
      _
    $region5: #{backbone_forward.5} parent=1 // pred_fallthru
      _
    // Predicated region
    $region6: #{backbone_forward.5} parent=1 // pred_check
      _
    $region7: #{backbone_forward.5} parent=1 // pred_check_branch
      %13 = sbr.rel (0) target = $region9
    $region8: #{backbone_forward.5} parent=1 // pred_region
      %s15 = ssub.s32 32, 32
      %16 = vsyncadd [#allocation3], %s15
      %s18 = sshll.u32 [#allocation2], 4
      %s19 = int_to_ptr.vmem [resolvable:$true] %s18
      %21 = dma.hbm_to_vmem [thread:$0]  %s1, 32, %s19, [#allocation3]
    $region9: #{backbone_forward.5} parent=1 // pred_fallthru
      _
    // Predicated region
    $region10: #{backbone_forward.5} parent=1 // pred_check
      _
    $region11: #{backbone_forward.5} parent=1 // pred_check_branch
      %23 = sbr.rel (0) target = $region13
    $region12: #{backbone_forward.5} parent=1 // pred_region
      %s25 = ssub.s32 16, 16
      %26 = vsyncadd [#allocation5], %s25
      %s28 = sshll.u32 [#allocation4], 4
      %s29 = int_to_ptr.vmem [resolvable:$true] %s28
      %31 = dma.hbm_to_vmem [thread:$0]  %s2, 16, %s29, [#allocation5]
    $region13: #{backbone_forward.5} parent=1 // pred_fallthru
      _
    // Predicated region
    $region14: #{backbone_forward.5} parent=1 // pred_check
      _
    $region15: #{backbone_forward.5} parent=1 // pred_check_branch
      %33 = sbr.rel (0) target = $region17
    $region16: #{backbone_forward.5} parent=1 // pred_region
      %34 = dma.done [#allocation3], 32
    $region17: #{backbone_forward.5} parent=1 // pred_fallthru
      _
    // Predicated region
    $region18: #{backbone_forward.5} parent=1 // pred_check
      _
    $region19: #{backbone_forward.5} parent=1 // pred_check_branch
      %36 = sbr.rel (0) target = $region21
    $region20: #{backbone_forward.5} parent=1 // pred_region
      %37 = dma.done [#allocation5], 16
    $region21: #{backbone_forward.5} parent=1 // pred_fallthru
      _
    %v39 = vld [vmem:[%s0] sm:$0xff]
    %v40 = vld [vmem:[%s0 + $0x8] sm:$0xff]
    %v41 = vld [vmem:[%s0 + $0x10] sm:$0xff]
    %v42 = vld [vmem:[%s0 + $0x18] sm:$0xff]
    %v43 = vpack.c.bf16 %v40, %v39
    %v44 = vpack.c.bf16 %v42, %v41
    %v45 = vld [vmem:[#allocation2] sm:$0x3]
    %v46 = vld [vmem:[#allocation4] sm:$0x1]
    %v48 = vlaneseq
    %v49 = vshrl.u32 %v48, 7
    %v50 = vsub.s32 0, %v49
    %v51 = vrot.slane %v46, %v50
    %vm53 = vcmask 31744
    %v55 = vsel %vm53, %v43, 0
    %v58 = vsel %vm53, %v44, 0
    %vm60 = vcmask 1041408
    %v62 = vsel %vm60, %v45, 0
    %64 = vmatprep.subr.bf16.mxu0 0
    %65 = vmatpush1.bf16.msra.mxu0 %v62
    %66 = vmatprep.subr.bf16.mxu0 0
    %67 = vmatpush1.bf16.msra.mxu0 0
    %68 = vmatprep.subr.bf16.mxu0 0
    %69 = vmatpush1.bf16.msra.mxu0 0
    %70 = vmatprep.subr.bf16.mxu0 0
    %71 = vmatpush1.bf16.msra.mxu0 0
    %72 = vmatprep.subr.bf16.mxu0 0
    %73 = vmatpush1.bf16.msra.mxu0 0
    %74 = vmatprep.subr.bf16.mxu0 0
    %75 = vmatpush1.bf16.msra.mxu0 0
    %76 = vmatprep.subr.bf16.mxu0 0
    %77 = vmatpush1.bf16.msra.mxu0 0
    %78 = vmatprep.subr.bf16.mxu0 0
    %79 = vmatpush1.bf16.msra.mxu0 0
    %80 = vmatprep.subr.bf16.mxu0 0
    %81 = vmatpush1.bf16.msra.mxu0 0
    %82 = vmatprep.subr.bf16.mxu0 0
    %83 = vmatpush1.bf16.msra.mxu0 0
    %84 = vmatprep.subr.bf16.mxu0 0
    %85 = vmatpush1.bf16.msra.mxu0 0
    %86 = vmatprep.subr.bf16.mxu0 0
    %87 = vmatpush1.bf16.msra.mxu0 0
    %88 = vmatprep.subr.bf16.mxu0 0
    %89 = vmatpush1.bf16.msra.mxu0 0
    %90 = vmatprep.subr.bf16.mxu0 0
    %91 = vmatpush1.bf16.msra.mxu0 0
    %92 = vmatprep.subr.bf16.mxu0 0
    %93 = vmatpush1.bf16.msra.mxu0 0
    %94 = vmatprep.subr.bf16.mxu0 0
    %95 = vmatpush1.bf16.msra.mxu0 0
    %96 = vmatprep.mubr.bf16.mxu0 0
    %97 = vmatmul.mubr.bf16.gmra.mrb[0].mxu0 %v55
    %v98 = vpop.f32.mrb[0].mxu0
    %v99 = vadd.f32 %v51, %v98
    %v100 = vpop.f32.mrb[0].mxu0
    %v101 = vpop.f32.mrb[0].mxu0
    %v102 = vadd.f32 %v51, %v101
    %v103 = vpop.f32.mrb[0].mxu0
    %104 = vmatprep.mubr.bf16.mxu0 0
    %105 = vmatmul.mubr.bf16.gmra.mrb[0].mxu0 %v58
    %v106 = vpop.f32.mrb[0].mxu0
    %v107 = vadd.f32 %v51, %v106
    %v108 = vpop.f32.mrb[0].mxu0
    %v109 = vpop.f32.mrb[0].mxu0
    %v110 = vadd.f32 %v51, %v109
    %v111 = vpop.f32.mrb[0].mxu0
    %112 = vdwg.mxu0
    %v113 = vmax.f32 %v99, 0.0
    %v114 = vmax.f32 %v102, 0.0
    %v115 = vmax.f32 %v107, 0.0
    %v116 = vmax.f32 %v110, 0.0
    %117 = vst [vmem:[%s3] sm:$0xff] %v113
    %118 = vst [vmem:[%s3 + $0x8] sm:$0xff] %v114
    %119 = vst [vmem:[%s3 + $0x10] sm:$0xff] %v115
    %120 = vst [vmem:[%s3 + $0x18] sm:$0xff] %v116
    // Predicated region
    $region22: #{backbone_forward.5} parent=1 // pred_check
      _
    $region23: #{backbone_forward.5} parent=1 // pred_check_branch
      %122 = sbr.rel (0) target = $region25
    $region24: #{backbone_forward.5} parent=1 // pred_region
      _
    $region25: #{backbone_forward.5} parent=1 // pred_fallthru
      _
    // Predicated region
    $region26: #{backbone_forward.5} parent=1 // pred_check
      _
    $region27: #{backbone_forward.5} parent=1 // pred_check_branch
      %124 = sbr.rel (0) target = $region29
    $region28: #{backbone_forward.5} parent=1 // pred_region
      _
    $region29: #{backbone_forward.5} parent=1 // pred_fallthru
      _
    %125 = vsyncpa [#allocation3], 1
    %126 = vsyncpa [#allocation5], 1

// kernel: backbone_forward.9
$region0: #{backbone_forward.9}
  #allocation0 [shape = 'u32[]', space=smem, size = 0x4, offset = 0x4, fixed_abs, tag = 'smem constant byte address 0x4 - core index']
  #allocation1 [shape = 'u32[144,128]{1,0:T(1,128)}', space=vmem, size = 0x12000, scoped, tag = 'internal scratch']
  %s0 = inlined_call_operand.vmem [shape: f32[32,128], index: 0, kind: input, shape index: {}]
  %s1 = inlined_call_operand.vmem [shape: bf16[128,128], index: 1, kind: input, shape index: {}]
  %s2 = inlined_call_operand.vmem [shape: f32[1,128], index: 2, kind: input, shape index: {}]
  %s3 = inlined_call_operand.vmem [shape: bf16[128,128], index: 3, kind: input, shape index: {}]
  %s4 = inlined_call_operand.vmem [shape: f32[1,128], index: 4, kind: input, shape index: {}]
  %s5 = inlined_call_operand.vmem [shape: f32[32,128], index: 5, kind: input, shape index: {}]
  %s6 = inlined_call_operand.vmem [shape: f32[32,128], index: 6, kind: output, shape index: {}]
  %s7 = sld [smem:[#allocation0]]
  $region34: #{backbone_forward.9} parent=0
    _
  %s9 = ssub.s32 1, %s7
  %s10 = scalar_select 0, %s9, %s7
  // Predicated region
  $region2: #{backbone_forward.9} parent=0 // pred_check
    _
  $region3: #{backbone_forward.9} parent=0 // pred_check_branch
    %12 = sbr.rel (0) target = $region5
  $region4: #{backbone_forward.9} parent=0 // pred_region
    _
  $region5: #{backbone_forward.9} parent=0 // pred_fallthru
    _
  // Predicated region
  $region6: #{backbone_forward.9} parent=0 // pred_check
    _
  $region7: #{backbone_forward.9} parent=0 // pred_check_branch
    %14 = sbr.rel (0) target = $region9
  $region8: #{backbone_forward.9} parent=0 // pred_region
    _
  $region9: #{backbone_forward.9} parent=0 // pred_fallthru
    _
  // Predicated region
  $region10: #{backbone_forward.9} parent=0 // pred_check
    _
  $region11: #{backbone_forward.9} parent=0 // pred_check_branch
    %16 = sbr.rel (0) target = $region13
  $region12: #{backbone_forward.9} parent=0 // pred_region
    _
  $region13: #{backbone_forward.9} parent=0 // pred_fallthru
    _
  // Predicated region
  $region14: #{backbone_forward.9} parent=0 // pred_check
    _
  $region15: #{backbone_forward.9} parent=0 // pred_check_branch
    %18 = sbr.rel (0) target = $region17
  $region16: #{backbone_forward.9} parent=0 // pred_region
    _
  $region17: #{backbone_forward.9} parent=0 // pred_fallthru
    _
  // Predicated region
  $region18: #{backbone_forward.9} parent=0 // pred_check
    _
  $region19: #{backbone_forward.9} parent=0 // pred_check_branch
    %20 = sbr.rel (0) target = $region21
  $region20: #{backbone_forward.9} parent=0 // pred_region
    _
  $region21: #{backbone_forward.9} parent=0 // pred_fallthru
    _
  // Predicated region
  $region22: #{backbone_forward.9} parent=0 // pred_check
    _
  $region23: #{backbone_forward.9} parent=0 // pred_check_branch
    %22 = sbr.rel (0) target = $region25
  $region24: #{backbone_forward.9} parent=0 // pred_region
    _
  $region25: #{backbone_forward.9} parent=0 // pred_fallthru
    _
  %v24 = vld [vmem:[%s0] sm:$0xff]
  %v25 = vld [vmem:[%s0 + $0x8] sm:$0xff]
  %v26 = vld [vmem:[%s0 + $0x10] sm:$0xff]
  %v27 = vld [vmem:[%s0 + $0x18] sm:$0xff]
  %v28 = vpack.c.bf16 %v25, %v24
  %v29 = vpack.c.bf16 %v27, %v26
  %v30 = vld [vmem:[%s1] sm:$0xf]
  %v31 = vld [vmem:[%s1 + $0x4] sm:$0xf]
  %v32 = vld [vmem:[%s1 + $0x8] sm:$0xf]
  %v33 = vld [vmem:[%s1 + $0xc] sm:$0xf]
  %v34 = vld [vmem:[%s1 + $0x10] sm:$0xf]
  %v35 = vld [vmem:[%s1 + $0x14] sm:$0xf]
  %v36 = vld [vmem:[%s1 + $0x18] sm:$0xf]
  %v37 = vld [vmem:[%s1 + $0x1c] sm:$0xf]
  %v38 = vld [vmem:[%s1 + $0x20] sm:$0xf]
  %v39 = vld [vmem:[%s1 + $0x24] sm:$0xf]
  %v40 = vld [vmem:[%s1 + $0x28] sm:$0xf]
  %v41 = vld [vmem:[%s1 + $0x2c] sm:$0xf]
  %v42 = vld [vmem:[%s1 + $0x30] sm:$0xf]
  %v43 = vld [vmem:[%s1 + $0x34] sm:$0xf]
  %v44 = vld [vmem:[%s1 + $0x38] sm:$0xf]
  %v45 = vld [vmem:[%s1 + $0x3c] sm:$0xf]
  %v46 = vld [vmem:[%s2] sm:$0x1]
  %v48 = vlaneseq
  %v49 = vshrl.u32 %v48, 7
  %v50 = vsub.s32 0, %v49
  %v51 = vrot.slane %v46, %v50
  %v69 = vunpack.c.l.b16 %v30
  %v70 = vunpack.c.l.b16 %v31
  %v71 = vunpack.c.l.b16 %v32
  %v72 = vunpack.c.l.b16 %v33
  %v73 = vunpack.c.l.b16 %v34
  %v74 = vunpack.c.l.b16 %v35
  %v75 = vunpack.c.l.b16 %v36
  %v76 = vunpack.c.l.b16 %v37
  %v77 = vunpack.c.l.b16 %v38
  %v78 = vunpack.c.l.b16 %v39
  %v79 = vunpack.c.l.b16 %v40
  %v80 = vunpack.c.l.b16 %v41
  %v81 = vunpack.c.l.b16 %v42
  %v82 = vunpack.c.l.b16 %v43
  %v83 = vunpack.c.l.b16 %v44
  %v84 = vunpack.c.l.b16 %v45
  %v85 = vpack.c.b16 %v70, %v69
  %v86 = vpack.c.b16 %v72, %v71
  %v87 = vpack.c.b16 %v74, %v73
  %v88 = vpack.c.b16 %v76, %v75
  %v89 = vpack.c.b16 %v78, %v77
  %v90 = vpack.c.b16 %v80, %v79
  %v91 = vpack.c.b16 %v82, %v81
  %v92 = vpack.c.b16 %v84, %v83
  %101 = vmatprep.subr.bf16.mxu0 0
  %102 = vmatpush1.bf16.msra.mxu0 %v85
  %103 = vmatprep.subr.bf16.mxu0 0
  %104 = vmatpush1.bf16.msra.mxu0 %v86
  %105 = vmatprep.subr.bf16.mxu0 0
  %106 = vmatpush1.bf16.msra.mxu0 %v87
  %107 = vmatprep.subr.bf16.mxu0 0
  %108 = vmatpush1.bf16.msra.mxu0 %v88
  %109 = vmatprep.subr.bf16.mxu0 0
  %110 = vmatpush1.bf16.msra.mxu0 %v89
  %111 = vmatprep.subr.bf16.mxu0 0
  %112 = vmatpush1.bf16.msra.mxu0 %v90
  %113 = vmatprep.subr.bf16.mxu0 0
  %114 = vmatpush1.bf16.msra.mxu0 %v91
  %115 = vmatprep.subr.bf16.mxu0 0
  %116 = vmatpush1.bf16.msra.mxu0 %v92
  %117 = vmatprep.subr.bf16.mxu0 0
  %118 = vmatpush1.bf16.msra.mxu0 0
  %119 = vmatprep.subr.bf16.mxu0 0
  %120 = vmatpush1.bf16.msra.mxu0 0
  %121 = vmatprep.subr.bf16.mxu0 0
  %122 = vmatpush1.bf16.msra.mxu0 0
  %123 = vmatprep.subr.bf16.mxu0 0
  %124 = vmatpush1.bf16.msra.mxu0 0
  %125 = vmatprep.subr.bf16.mxu0 0
  %126 = vmatpush1.bf16.msra.mxu0 0
  %127 = vmatprep.subr.bf16.mxu0 0
  %128 = vmatpush1.bf16.msra.mxu0 0
  %129 = vmatprep.subr.bf16.mxu0 0
  %130 = vmatpush1.bf16.msra.mxu0 0
  %131 = vmatprep.subr.bf16.mxu0 0
  %132 = vmatpush1.bf16.msra.mxu0 0
  %133 = vmatprep.mubr.bf16.mxu0 0
  %134 = vmatmul.mubr.bf16.gmra.mrb[0].mxu0 %v28
  %v135 = vpop.f32.mrb[0].mxu0
  %v136 = vadd.f32 %v51, %v135
  %v137 = vpop.f32.mrb[0].mxu0
  %v138 = vpop.f32.mrb[0].mxu0
  %v139 = vadd.f32 %v51, %v138
  %v140 = vpop.f32.mrb[0].mxu0
  %141 = vmatprep.mubr.bf16.mxu0 0
  %142 = vmatmul.mubr.bf16.gmra.mrb[0].mxu0 %v29
  %v143 = vpop.f32.mrb[0].mxu0
  %v144 = vadd.f32 %v51, %v143
  %v145 = vpop.f32.mrb[0].mxu0
  %v146 = vpop.f32.mrb[0].mxu0
  %v147 = vadd.f32 %v51, %v146
  %v148 = vpop.f32.mrb[0].mxu0
  %149 = vdwg.mxu0
  %v150 = vmax.f32 %v136, 0.0
  %v151 = vmax.f32 %v139, 0.0
  %v152 = vmax.f32 %v144, 0.0
  %v153 = vmax.f32 %v147, 0.0
  %v154 = vpack.c.bf16 %v151, %v150
  %v155 = vpack.c.bf16 %v153, %v152
  %v156 = vld [vmem:[%s3] sm:$0xf]
  %v157 = vld [vmem:[%s3 + $0x4] sm:$0xf]
  %v158 = vld [vmem:[%s3 + $0x8] sm:$0xf]
  %v159 = vld [vmem:[%s3 + $0xc] sm:$0xf]
  %v160 = vld [vmem:[%s3 + $0x10] sm:$0xf]
  %v161 = vld [vmem:[%s3 + $0x14] sm:$0xf]
  %v162 = vld [vmem:[%s3 + $0x18] sm:$0xf]
  %v163 = vld [vmem:[%s3 + $0x1c] sm:$0xf]
  %v164 = vld [vmem:[%s3 + $0x20] sm:$0xf]
  %v165 = vld [vmem:[%s3 + $0x24] sm:$0xf]
  %v166 = vld [vmem:[%s3 + $0x28] sm:$0xf]
  %v167 = vld [vmem:[%s3 + $0x2c] sm:$0xf]
  %v168 = vld [vmem:[%s3 + $0x30] sm:$0xf]
  %v169 = vld [vmem:[%s3 + $0x34] sm:$0xf]
  %v170 = vld [vmem:[%s3 + $0x38] sm:$0xf]
  %v171 = vld [vmem:[%s3 + $0x3c] sm:$0xf]
  %v172 = vld [vmem:[%s4] sm:$0x1]
  %v174 = vlaneseq
  %v175 = vshrl.u32 %v174, 7
  %v176 = vsub.s32 0, %v175
  %v177 = vrot.slane %v172, %v176
  %v195 = vunpack.c.l.b16 %v156
  %v196 = vunpack.c.l.b16 %v157
  %v197 = vunpack.c.l.b16 %v158
  %v198 = vunpack.c.l.b16 %v159
  %v199 = vunpack.c.l.b16 %v160
  %v200 = vunpack.c.l.b16 %v161
  %v201 = vunpack.c.l.b16 %v162
  %v202 = vunpack.c.l.b16 %v163
  %v203 = vunpack.c.l.b16 %v164
  %v204 = vunpack.c.l.b16 %v165
  %v205 = vunpack.c.l.b16 %v166
  %v206 = vunpack.c.l.b16 %v167
  %v207 = vunpack.c.l.b16 %v168
  %v208 = vunpack.c.l.b16 %v169
  %v209 = vunpack.c.l.b16 %v170
  %v210 = vunpack.c.l.b16 %v171
  %v211 = vpack.c.b16 %v196, %v195
  %v212 = vpack.c.b16 %v198, %v197
  %v213 = vpack.c.b16 %v200, %v199
  %v214 = vpack.c.b16 %v202, %v201
  %v215 = vpack.c.b16 %v204, %v203
  %v216 = vpack.c.b16 %v206, %v205
  %v217 = vpack.c.b16 %v208, %v207
  %v218 = vpack.c.b16 %v210, %v209
  %227 = vmatprep.subr.bf16.mxu0 0
  %228 = vmatpush1.bf16.msra.mxu0 %v211
  %229 = vmatprep.subr.bf16.mxu0 0
  %230 = vmatpush1.bf16.msra.mxu0 %v212
  %231 = vmatprep.subr.bf16.mxu0 0
  %232 = vmatpush1.bf16.msra.mxu0 %v213
  %233 = vmatprep.subr.bf16.mxu0 0
  %234 = vmatpush1.bf16.msra.mxu0 %v214
  %235 = vmatprep.subr.bf16.mxu0 0
  %236 = vmatpush1.bf16.msra.mxu0 %v215
  %237 = vmatprep.subr.bf16.mxu0 0
  %238 = vmatpush1.bf16.msra.mxu0 %v216
  %239 = vmatprep.subr.bf16.mxu0 0
  %240 = vmatpush1.bf16.msra.mxu0 %v217
  %241 = vmatprep.subr.bf16.mxu0 0
  %242 = vmatpush1.bf16.msra.mxu0 %v218
  %243 = vmatprep.subr.bf16.mxu0 0
  %244 = vmatpush1.bf16.msra.mxu0 0
  %245 = vmatprep.subr.bf16.mxu0 0
  %246 = vmatpush1.bf16.msra.mxu0 0
  %247 = vmatprep.subr.bf16.mxu0 0
  %248 = vmatpush1.bf16.msra.mxu0 0
  %249 = vmatprep.subr.bf16.mxu0 0
  %250 = vmatpush1.bf16.msra.mxu0 0
  %251 = vmatprep.subr.bf16.mxu0 0
  %252 = vmatpush1.bf16.msra.mxu0 0
  %253 = vmatprep.subr.bf16.mxu0 0
  %254 = vmatpush1.bf16.msra.mxu0 0
  %255 = vmatprep.subr.bf16.mxu0 0
  %256 = vmatpush1.bf16.msra.mxu0 0
  %257 = vmatprep.subr.bf16.mxu0 0
  %258 = vmatpush1.bf16.msra.mxu0 0
  %259 = vmatprep.mubr.bf16.mxu0 0
  %260 = vmatmul.mubr.bf16.gmra.mrb[0].mxu0 %v154
  %v261 = vpop.f32.mrb[0].mxu0
  %v262 = vadd.f32 %v177, %v261
  %v263 = vpop.f32.mrb[0].mxu0
  %v264 = vpop.f32.mrb[0].mxu0
  %v265 = vadd.f32 %v177, %v264
  %v266 = vpop.f32.mrb[0].mxu0
  %267 = vmatprep.mubr.bf16.mxu0 0
  %268 = vmatmul.mubr.bf16.gmra.mrb[0].mxu0 %v155
  %v269 = vpop.f32.mrb[0].mxu0
  %v270 = vadd.f32 %v177, %v269
  %v271 = vpop.f32.mrb[0].mxu0
  %v272 = vpop.f32.mrb[0].mxu0
  %v273 = vadd.f32 %v177, %v272
  %v274 = vpop.f32.mrb[0].mxu0
  %275 = vdwg.mxu0
  %v276 = vld [vmem:[%s5] sm:$0xff]
  %v277 = vld [vmem:[%s5 + $0x8] sm:$0xff]
  %v278 = vld [vmem:[%s5 + $0x10] sm:$0xff]
  %v279 = vld [vmem:[%s5 + $0x18] sm:$0xff]
  %v280 = vadd.f32 %v262, %v276
  %v281 = vadd.f32 %v265, %v277
  %v282 = vadd.f32 %v270, %v278
  %v283 = vadd.f32 %v273, %v279
  %284 = vst [vmem:[%s6] sm:$0xff] %v280
  %285 = vst [vmem:[%s6 + $0x8] sm:$0xff] %v281
  %286 = vst [vmem:[%s6 + $0x10] sm:$0xff] %v282
  %287 = vst [vmem:[%s6 + $0x18] sm:$0xff] %v283
  // Predicated region
  $region26: #{backbone_forward.9} parent=0 // pred_check
    _
  $region27: #{backbone_forward.9} parent=0 // pred_check_branch
    %289 = sbr.rel (0) target = $region29
  $region28: #{backbone_forward.9} parent=0 // pred_region
    _
  $region29: #{backbone_forward.9} parent=0 // pred_fallthru
    _
  // Predicated region
  $region30: #{backbone_forward.9} parent=0 // pred_check
    _
  $region31: #{backbone_forward.9} parent=0 // pred_check_branch
    %291 = sbr.rel (0) target = $region33
  $region32: #{backbone_forward.9} parent=0 // pred_region
    _
  $region33: #{backbone_forward.9} parent=0 // pred_fallthru
    _

// kernel: backbone_forward.8
$region0: #{backbone_forward.8}
  #allocation0 [shape = 'u32[]', space=smem, size = 0x4, offset = 0x4, fixed_abs, tag = 'smem constant byte address 0x4 - core index']
  #allocation1 [shape = 'u32[144,128]{1,0:T(1,128)}', space=vmem, size = 0x12000, scoped, tag = 'internal scratch']
  #allocation2 [shape = 'f32[2,16,128]{2,1,0:T(8,128)}', space=vmem, size = 0x4000, scoped, tag = 'scratch operand']
  %s0 = inlined_call_operand.vmem [shape: f32[2,16,128], index: 0, kind: input, shape index: {}]
  %s1 = inlined_call_operand.vmem [shape: f32[2,2,1,128], index: 1, kind: input, shape index: {}]
  %s2 = inlined_call_operand.vmem [shape: f32[2,16,3], index: 2, kind: input, shape index: {}]
  %s3 = inlined_call_operand.vmem [shape: f32[2,1,128], index: 3, kind: input, shape index: {}]
  %s4 = inlined_call_operand.vmem [shape: f32[2,1,128], index: 4, kind: input, shape index: {}]
  %s5 = inlined_call_operand.vmem [shape: f32[2,16,128], index: 5, kind: input, shape index: {}]
  %s6 = inlined_call_operand.vmem [shape: f32[2,16,128], index: 6, kind: input, shape index: {}]
  %s7 = inlined_call_operand.vmem [shape: f32[2,1,128], index: 7, kind: input, shape index: {}]
  %s8 = inlined_call_operand.hbm [shape: bf16[2,128,128], index: 8, kind: input, shape index: {}]
  %s9 = inlined_call_operand.vmem [shape: f32[2,1,128], index: 9, kind: input, shape index: {}]
  %s10 = inlined_call_operand.vmem [shape: bf16[2,3,128], index: 10, kind: input, shape index: {}]
  %s11 = inlined_call_operand.vmem [shape: f32[2,1,128], index: 11, kind: input, shape index: {}]
  %s12 = inlined_call_operand.vmem [shape: bf16[2,128,256], index: 12, kind: input, shape index: {}]
  %s13 = inlined_call_operand.vmem [shape: f32[2,1,256], index: 13, kind: input, shape index: {}]
  %s14 = inlined_call_operand.vmem [shape: f32[2,16,128], index: 14, kind: output, shape index: {}]
  %s15 = sld [smem:[#allocation0]]
  $region97: #{backbone_forward.8} parent=0
    _
  %s17 = ssub.s32 1, %s15
  %s18 = scalar_select 0, %s17, %s15
  $region1: #{backbone_forward.8} parent=0
    #allocation3 [shape = 'u8[65536]{0}', space=vmem, size = 0x10000, scoped, tag = 'input window, operand 8']
    #allocation4 [shape = 's32[2]{0}', space=sflag, size = 0x8, scoped, tag = 'scoped memory for backbone_forward.8']
    %19 = vsyncpa [#allocation4], 0
    %s20 = scalar_lea.sflag [#allocation4], 1
    %21 = vsyncpa %s20, 0
    loop: start=0, step=1, limit=4
    $region2: #{backbone_forward.8} parent=1 // loop_pre_header
      _
    $region3: #{backbone_forward.8} parent=1 // loop_header
      %s23 = sphi 0, %s27
      %p24 = scmp.ge.s32.totalorder %s23, 4
      %s30 = sphi 0, %s42
      %s31 = sphi 0, %s38
      %s32 = sphi 0, %s30
      %s33 = sphi 0, %s31
      %s34 = sphi 0, %s32
      %s35 = sphi 0, %s33
      %s45 = sphi 0, %s47
      %s48 = sphi 0, %s45
      %s49 = sphi 0, %s48
      %s65 = sphi 0, %s49
      %s73 = sphi 0, %s75
      %s76 = sphi 0, %s73
      %s77 = sphi 0, %s76
      %s93 = sphi 0, %s77
      %s99 = sphi 0, %s101
      %s102 = sphi 0, %s99
      %s103 = sphi 0, %s102
      %s119 = sphi 0, %s103
      %s125 = sphi 0, %s127
      %s128 = sphi 0, %s125
      %s129 = sphi 0, %s128
      %s145 = sphi 0, %s129
      %s151 = sphi 0, %s153
      %s154 = sphi 0, %s151
      %s155 = sphi 0, %s154
      %s171 = sphi 0, %s155
      %s177 = sphi 0, %s179
      %s180 = sphi 0, %s177
      %s181 = sphi 0, %s180
      %s197 = sphi 0, %s181
      %s203 = sphi 0, %s205
      %s206 = sphi 0, %s203
      %s207 = sphi 0, %s206
      %s223 = sphi 0, %s207
      %s229 = sphi 0, %s231
      %s232 = sphi 0, %s229
      %s233 = sphi 0, %s232
      %s249 = sphi 0, %s233
      %s255 = sphi 0, %s257
      %s258 = sphi 0, %s255
      %s259 = sphi 0, %s258
      %s275 = sphi 0, %s259
      %s281 = sphi 0, %s283
      %s284 = sphi 0, %s281
      %s285 = sphi 0, %s284
      %s301 = sphi 0, %s285
      %s307 = sphi 0, %s309
      %s310 = sphi 0, %s307
      %s311 = sphi 0, %s310
      %s327 = sphi 0, %s311
      %s333 = sphi 0, %s335
      %s336 = sphi 0, %s333
      %s337 = sphi 0, %s336
      %s353 = sphi 0, %s337
      %s359 = sphi 0, %s361
      %s362 = sphi 0, %s359
      %s363 = sphi 0, %s362
      %s379 = sphi 0, %s363
      %s385 = sphi 0, %s387
      %s388 = sphi 0, %s385
      %s389 = sphi 0, %s388
      %s405 = sphi 0, %s389
      %s411 = sphi 0, %s413
      %s414 = sphi 0, %s411
      %s415 = sphi 0, %s414
      %s431 = sphi 0, %s415
    $region4: #{backbone_forward.8} parent=1 // loop_header_branch
      %26 = sbr.rel (%p24) target = $region8
    $region5: #{backbone_forward.8} parent=1 // loop_body
      %s28 = ssub.s32 %s23, 1
      %s29 = ssub.s32 %s23, 2
      %s36 = sadd.s32 1, %s31
      %p37 = scmp.ge.s32.totalorder %s36, 2
      %s38 = scalar_select %p37, 0, %s36
      %s39 = sadd.s32 1, %s30
      %s40 = scalar_select %p37, %s39, %s30
      %p41 = scmp.ge.s32.totalorder %s40, 1
      %s42 = scalar_select %p41, 0, %s40
      %s43 = ssub.s32 %s30, %s42
      %p44 = scmp.eq.s32.totalorder %s43, 0
      %s46 = sadd.s32 %s45, 1
      %s47 = scalar_select %p44, %s45, %s46
      %p50 = pneg %p44
      %p51 = scmp.eq.s32.totalorder %s23, 1
      %p52 = por %p50, %p51
      %p53 = scmp.ne.s32.totalorder %s45, %s48
      %p54 = scmp.eq.s32.totalorder %s23, 0
      %p55 = por %p53, %p54
      %p56 = scmp.ne.s32.totalorder %s45, %s48
      %p57 = scmp.eq.s32.totalorder %s28, 1
      %p58 = por %p56, %p57
      %p59 = scmp.ne.s32.totalorder %s48, %s49
      %p60 = scmp.eq.s32.totalorder %s28, 0
      %p61 = por %p59, %p60
      %p62 = scmp.ne.s32.totalorder %s48, %s49
      %p63 = scmp.eq.s32.totalorder %s29, 1
      %p64 = por %p62, %p63
      %p66 = scmp.ne.s32.totalorder %s49, %s65
      %p67 = scmp.eq.s32.totalorder %s29, 0
      %p68 = por %p66, %p67
      %s69 = ssub.s32 %s31, %s38
      %s70 = ssub.s32 %s30, %s42
      %s71 = sor.u32 %s69, %s70
      %p72 = scmp.eq.s32.totalorder %s71, 0
      %s74 = sadd.s32 %s73, 1
      %s75 = scalar_select %p72, %s73, %s74
      %p78 = pneg %p72
      %p79 = scmp.eq.s32.totalorder %s23, 1
      %p80 = por %p78, %p79
      %p81 = scmp.ne.s32.totalorder %s73, %s76
      %p82 = scmp.eq.s32.totalorder %s23, 0
      %p83 = por %p81, %p82
      %p84 = scmp.ne.s32.totalorder %s73, %s76
      %p85 = scmp.eq.s32.totalorder %s28, 1
      %p86 = por %p84, %p85
      %p87 = scmp.ne.s32.totalorder %s76, %s77
      %p88 = scmp.eq.s32.totalorder %s28, 0
      %p89 = por %p87, %p88
      %p90 = scmp.ne.s32.totalorder %s76, %s77
      %p91 = scmp.eq.s32.totalorder %s29, 1
      %p92 = por %p90, %p91
      %p94 = scmp.ne.s32.totalorder %s77, %s93
      %p95 = scmp.eq.s32.totalorder %s29, 0
      %p96 = por %p94, %p95
      %s97 = ssub.s32 %s30, %s42
      %p98 = scmp.eq.s32.totalorder %s97, 0
      %s100 = sadd.s32 %s99, 1
      %s101 = scalar_select %p98, %s99, %s100
      %p104 = pneg %p98
      %p105 = scmp.eq.s32.totalorder %s23, 1
      %p106 = por %p104, %p105
      %p107 = scmp.ne.s32.totalorder %s99, %s102
      %p108 = scmp.eq.s32.totalorder %s23, 0
      %p109 = por %p107, %p108
      %p110 = scmp.ne.s32.totalorder %s99, %s102
      %p111 = scmp.eq.s32.totalorder %s28, 1
      %p112 = por %p110, %p111
      %p113 = scmp.ne.s32.totalorder %s102, %s103
      %p114 = scmp.eq.s32.totalorder %s28, 0
      %p115 = por %p113, %p114
      %p116 = scmp.ne.s32.totalorder %s102, %s103
      %p117 = scmp.eq.s32.totalorder %s29, 1
      %p118 = por %p116, %p117
      %p120 = scmp.ne.s32.totalorder %s103, %s119
      %p121 = scmp.eq.s32.totalorder %s29, 0
      %p122 = por %p120, %p121
      %s123 = ssub.s32 %s31, %s38
      %p124 = scmp.eq.s32.totalorder %s123, 0
      %s126 = sadd.s32 %s125, 1
      %s127 = scalar_select %p124, %s125, %s126
      %p130 = pneg %p124
      %p131 = scmp.eq.s32.totalorder %s23, 1
      %p132 = por %p130, %p131
      %p133 = scmp.ne.s32.totalorder %s125, %s128
      %p134 = scmp.eq.s32.totalorder %s23, 0
      %p135 = por %p133, %p134
      %p136 = scmp.ne.s32.totalorder %s125, %s128
      %p137 = scmp.eq.s32.totalorder %s28, 1
      %p138 = por %p136, %p137
      %p139 = scmp.ne.s32.totalorder %s128, %s129
      %p140 = scmp.eq.s32.totalorder %s28, 0
      %p141 = por %p139, %p140
      %p142 = scmp.ne.s32.totalorder %s128, %s129
      %p143 = scmp.eq.s32.totalorder %s29, 1
      %p144 = por %p142, %p143
      %p146 = scmp.ne.s32.totalorder %s129, %s145
      %p147 = scmp.eq.s32.totalorder %s29, 0
      %p148 = por %p146, %p147
      %s149 = ssub.s32 %s31, %s38
      %p150 = scmp.eq.s32.totalorder %s149, 0
      %s152 = sadd.s32 %s151, 1
      %s153 = scalar_select %p150, %s151, %s152
      %p156 = pneg %p150
      %p157 = scmp.eq.s32.totalorder %s23, 1
      %p158 = por %p156, %p157
      %p159 = scmp.ne.s32.totalorder %s151, %s154
      %p160 = scmp.eq.s32.totalorder %s23, 0
      %p161 = por %p159, %p160
      %p162 = scmp.ne.s32.totalorder %s151, %s154
      %p163 = scmp.eq.s32.totalorder %s28, 1
      %p164 = por %p162, %p163
      %p165 = scmp.ne.s32.totalorder %s154, %s155
      %p166 = scmp.eq.s32.totalorder %s28, 0
      %p167 = por %p165, %p166
      %p168 = scmp.ne.s32.totalorder %s154, %s155
      %p169 = scmp.eq.s32.totalorder %s29, 1
      %p170 = por %p168, %p169
      %p172 = scmp.ne.s32.totalorder %s155, %s171
      %p173 = scmp.eq.s32.totalorder %s29, 0
      %p174 = por %p172, %p173
      %s175 = ssub.s32 %s31, %s38
      %p176 = scmp.eq.s32.totalorder %s175, 0
      %s178 = sadd.s32 %s177, 1
      %s179 = scalar_select %p176, %s177, %s178
      %p182 = pneg %p176
      %p183 = scmp.eq.s32.totalorder %s23, 1
      %p184 = por %p182, %p183
      %p185 = scmp.ne.s32.totalorder %s177, %s180
      %p186 = scmp.eq.s32.totalorder %s23, 0
      %p187 = por %p185, %p186
      %p188 = scmp.ne.s32.totalorder %s177, %s180
      %p189 = scmp.eq.s32.totalorder %s28, 1
      %p190 = por %p188, %p189
      %p191 = scmp.ne.s32.totalorder %s180, %s181
      %p192 = scmp.eq.s32.totalorder %s28, 0
      %p193 = por %p191, %p192
      %p194 = scmp.ne.s32.totalorder %s180, %s181
      %p195 = scmp.eq.s32.totalorder %s29, 1
      %p196 = por %p194, %p195
      %p198 = scmp.ne.s32.totalorder %s181, %s197
      %p199 = scmp.eq.s32.totalorder %s29, 0
      %p200 = por %p198, %p199
      %s201 = ssub.s32 %s31, %s38
      %p202 = scmp.eq.s32.totalorder %s201, 0
      %s204 = sadd.s32 %s203, 1
      %s205 = scalar_select %p202, %s203, %s204
      %p208 = pneg %p202
      %p209 = scmp.eq.s32.totalorder %s23, 1
      %p210 = por %p208, %p209
      %p211 = scmp.ne.s32.totalorder %s203, %s206
      %p212 = scmp.eq.s32.totalorder %s23, 0
      %p213 = por %p211, %p212
      %p214 = scmp.ne.s32.totalorder %s203, %s206
      %p215 = scmp.eq.s32.totalorder %s28, 1
      %p216 = por %p214, %p215
      %p217 = scmp.ne.s32.totalorder %s206, %s207
      %p218 = scmp.eq.s32.totalorder %s28, 0
      %p219 = por %p217, %p218
      %p220 = scmp.ne.s32.totalorder %s206, %s207
      %p221 = scmp.eq.s32.totalorder %s29, 1
      %p222 = por %p220, %p221
      %p224 = scmp.ne.s32.totalorder %s207, %s223
      %p225 = scmp.eq.s32.totalorder %s29, 0
      %p226 = por %p224, %p225
      %s227 = ssub.s32 %s31, %s38
      %p228 = scmp.eq.s32.totalorder %s227, 0
      %s230 = sadd.s32 %s229, 1
      %s231 = scalar_select %p228, %s229, %s230
      %p234 = pneg %p228
      %p235 = scmp.eq.s32.totalorder %s23, 1
      %p236 = por %p234, %p235
      %p237 = scmp.ne.s32.totalorder %s229, %s232
      %p238 = scmp.eq.s32.totalorder %s23, 0
      %p239 = por %p237, %p238
      %p240 = scmp.ne.s32.totalorder %s229, %s232
      %p241 = scmp.eq.s32.totalorder %s28, 1
      %p242 = por %p240, %p241
      %p243 = scmp.ne.s32.totalorder %s232, %s233
      %p244 = scmp.eq.s32.totalorder %s28, 0
      %p245 = por %p243, %p244
      %p246 = scmp.ne.s32.totalorder %s232, %s233
      %p247 = scmp.eq.s32.totalorder %s29, 1
      %p248 = por %p246, %p247
      %p250 = scmp.ne.s32.totalorder %s233, %s249
      %p251 = scmp.eq.s32.totalorder %s29, 0
      %p252 = por %p250, %p251
      %s253 = ssub.s32 %s31, %s38
      %p254 = scmp.eq.s32.totalorder %s253, 0
      %s256 = sadd.s32 %s255, 1
      %s257 = scalar_select %p254, %s255, %s256
      %p260 = pneg %p254
      %p261 = scmp.eq.s32.totalorder %s23, 1
      %p262 = por %p260, %p261
      %p263 = scmp.ne.s32.totalorder %s255, %s258
      %p264 = scmp.eq.s32.totalorder %s23, 0
      %p265 = por %p263, %p264
      %p266 = scmp.ne.s32.totalorder %s255, %s258
      %p267 = scmp.eq.s32.totalorder %s28, 1
      %p268 = por %p266, %p267
      %p269 = scmp.ne.s32.totalorder %s258, %s259
      %p270 = scmp.eq.s32.totalorder %s28, 0
      %p271 = por %p269, %p270
      %p272 = scmp.ne.s32.totalorder %s258, %s259
      %p273 = scmp.eq.s32.totalorder %s29, 1
      %p274 = por %p272, %p273
      %p276 = scmp.ne.s32.totalorder %s259, %s275
      %p277 = scmp.eq.s32.totalorder %s29, 0
      %p278 = por %p276, %p277
      %s279 = ssub.s32 %s31, %s38
      %p280 = scmp.eq.s32.totalorder %s279, 0
      %s282 = sadd.s32 %s281, 1
      %s283 = scalar_select %p280, %s281, %s282
      %p286 = pneg %p280
      %p287 = scmp.eq.s32.totalorder %s23, 1
      %p288 = por %p286, %p287
      %p289 = scmp.ne.s32.totalorder %s281, %s284
      %p290 = scmp.eq.s32.totalorder %s23, 0
      %p291 = por %p289, %p290
      %p292 = scmp.ne.s32.totalorder %s281, %s284
      %p293 = scmp.eq.s32.totalorder %s28, 1
      %p294 = por %p292, %p293
      %p295 = scmp.ne.s32.totalorder %s284, %s285
      %p296 = scmp.eq.s32.totalorder %s28, 0
      %p297 = por %p295, %p296
      %p298 = scmp.ne.s32.totalorder %s284, %s285
      %p299 = scmp.eq.s32.totalorder %s29, 1
      %p300 = por %p298, %p299
      %p302 = scmp.ne.s32.totalorder %s285, %s301
      %p303 = scmp.eq.s32.totalorder %s29, 0
      %p304 = por %p302, %p303
      %s305 = ssub.s32 %s31, %s38
      %p306 = scmp.eq.s32.totalorder %s305, 0
      %s308 = sadd.s32 %s307, 1
      %s309 = scalar_select %p306, %s307, %s308
      %p312 = pneg %p306
      %p313 = scmp.eq.s32.totalorder %s23, 1
      %p314 = por %p312, %p313
      %p315 = scmp.ne.s32.totalorder %s307, %s310
      %p316 = scmp.eq.s32.totalorder %s23, 0
      %p317 = por %p315, %p316
      %p318 = scmp.ne.s32.totalorder %s307, %s310
      %p319 = scmp.eq.s32.totalorder %s28, 1
      %p320 = por %p318, %p319
      %p321 = scmp.ne.s32.totalorder %s310, %s311
      %p322 = scmp.eq.s32.totalorder %s28, 0
      %p323 = por %p321, %p322
      %p324 = scmp.ne.s32.totalorder %s310, %s311
      %p325 = scmp.eq.s32.totalorder %s29, 1
      %p326 = por %p324, %p325
      %p328 = scmp.ne.s32.totalorder %s311, %s327
      %p329 = scmp.eq.s32.totalorder %s29, 0
      %p330 = por %p328, %p329
      %s331 = ssub.s32 %s31, %s38
      %p332 = scmp.eq.s32.totalorder %s331, 0
      %s334 = sadd.s32 %s333, 1
      %s335 = scalar_select %p332, %s333, %s334
      %p338 = pneg %p332
      %p339 = scmp.eq.s32.totalorder %s23, 1
      %p340 = por %p338, %p339
      %p341 = scmp.ne.s32.totalorder %s333, %s336
      %p342 = scmp.eq.s32.totalorder %s23, 0
      %p343 = por %p341, %p342
      %p344 = scmp.ne.s32.totalorder %s333, %s336
      %p345 = scmp.eq.s32.totalorder %s28, 1
      %p346 = por %p344, %p345
      %p347 = scmp.ne.s32.totalorder %s336, %s337
      %p348 = scmp.eq.s32.totalorder %s28, 0
      %p349 = por %p347, %p348
      %p350 = scmp.ne.s32.totalorder %s336, %s337
      %p351 = scmp.eq.s32.totalorder %s29, 1
      %p352 = por %p350, %p351
      %p354 = scmp.ne.s32.totalorder %s337, %s353
      %p355 = scmp.eq.s32.totalorder %s29, 0
      %p356 = por %p354, %p355
      %s357 = ssub.s32 %s31, %s38
      %p358 = scmp.eq.s32.totalorder %s357, 0
      %s360 = sadd.s32 %s359, 1
      %s361 = scalar_select %p358, %s359, %s360
      %p364 = pneg %p358
      %p365 = scmp.eq.s32.totalorder %s23, 1
      %p366 = por %p364, %p365
      %p367 = scmp.ne.s32.totalorder %s359, %s362
      %p368 = scmp.eq.s32.totalorder %s23, 0
      %p369 = por %p367, %p368
      %p370 = scmp.ne.s32.totalorder %s359, %s362
      %p371 = scmp.eq.s32.totalorder %s28, 1
      %p372 = por %p370, %p371
      %p373 = scmp.ne.s32.totalorder %s362, %s363
      %p374 = scmp.eq.s32.totalorder %s28, 0
      %p375 = por %p373, %p374
      %p376 = scmp.ne.s32.totalorder %s362, %s363
      %p377 = scmp.eq.s32.totalorder %s29, 1
      %p378 = por %p376, %p377
      %p380 = scmp.ne.s32.totalorder %s363, %s379
      %p381 = scmp.eq.s32.totalorder %s29, 0
      %p382 = por %p380, %p381
      %s383 = ssub.s32 %s31, %s38
      %p384 = scmp.eq.s32.totalorder %s383, 0
      %s386 = sadd.s32 %s385, 1
      %s387 = scalar_select %p384, %s385, %s386
      %p390 = pneg %p384
      %p391 = scmp.eq.s32.totalorder %s23, 1
      %p392 = por %p390, %p391
      %p393 = scmp.ne.s32.totalorder %s385, %s388
      %p394 = scmp.eq.s32.totalorder %s23, 0
      %p395 = por %p393, %p394
      %p396 = scmp.ne.s32.totalorder %s385, %s388
      %p397 = scmp.eq.s32.totalorder %s28, 1
      %p398 = por %p396, %p397
      %p399 = scmp.ne.s32.totalorder %s388, %s389
      %p400 = scmp.eq.s32.totalorder %s28, 0
      %p401 = por %p399, %p400
      %p402 = scmp.ne.s32.totalorder %s388, %s389
      %p403 = scmp.eq.s32.totalorder %s29, 1
      %p404 = por %p402, %p403
      %p406 = scmp.ne.s32.totalorder %s389, %s405
      %p407 = scmp.eq.s32.totalorder %s29, 0
      %p408 = por %p406, %p407
      %s409 = ssub.s32 %s30, %s42
      %p410 = scmp.eq.s32.totalorder %s409, 0
      %s412 = sadd.s32 %s411, 1
      %s413 = scalar_select %p410, %s411, %s412
      %p416 = pneg %p410
      %p417 = scmp.eq.s32.totalorder %s23, 1
      %p418 = por %p416, %p417
      %p419 = scmp.ne.s32.totalorder %s411, %s414
      %p420 = scmp.eq.s32.totalorder %s23, 0
      %p421 = por %p419, %p420
      %p422 = scmp.ne.s32.totalorder %s411, %s414
      %p423 = scmp.eq.s32.totalorder %s28, 1
      %p424 = por %p422, %p423
      %p425 = scmp.ne.s32.totalorder %s414, %s415
      %p426 = scmp.eq.s32.totalorder %s28, 0
      %p427 = por %p425, %p426
      %p428 = scmp.ne.s32.totalorder %s414, %s415
      %p429 = scmp.eq.s32.totalorder %s29, 1
      %p430 = por %p428, %p429
      %p432 = scmp.ne.s32.totalorder %s415, %s431
      %p433 = scmp.eq.s32.totalorder %s29, 0
      %p434 = por %p432, %p433
      %p435 = scmp.le.s32.totalorder 1, %s23
      %p436 = scmp.lt.s32.totalorder %s23, 3
      %p437 = pnand %p435, %p436
      %p438 = pneg %p437
      // Predicated region
      $region9: #{backbone_forward.8} parent=5 // pred_check
        _
      $region10: #{backbone_forward.8} parent=5 // pred_check_branch
        %440 = sbr.rel (%p437) target = $region12
      $region11: #{backbone_forward.8} parent=5 // pred_region
        %s441 = ssub.s32 %s23, 1
        // Predicated region
        $region13: #{backbone_forward.8} parent=11 // pred_check
          %p442 = pneg %p61
        $region14: #{backbone_forward.8} parent=11 // pred_check_branch
          %444 = sbr.rel (%p442) target = $region16
        $region15: #{backbone_forward.8} parent=11 // pred_region
          %s445 = smul.u32 2, %s32
          %p446 = scmp.lt.s32.totalorder %s445, 1
          %s447 = scalar_select %p446, %s445, 1
          %s448 = smul.addr %s447, 2
          %s449 = smul.addr %s448, 8
          %s450 = scalar_lea.vmem %s0, %s449
          %s451 = smul.u32 2, %s32
        $region16: #{backbone_forward.8} parent=11 // pred_fallthru
          _
        // Predicated region
        $region17: #{backbone_forward.8} parent=11 // pred_check
          %p452 = pneg %p115
        $region18: #{backbone_forward.8} parent=11 // pred_check_branch
          %454 = sbr.rel (%p452) target = $region20
        $region19: #{backbone_forward.8} parent=11 // pred_region
          %s455 = smul.u32 2, %s32
          %p456 = scmp.lt.s32.totalorder %s455, 1
          %s457 = scalar_select %p456, %s455, 1
          %s458 = smul.addr %s457, 2
          %s459 = smul.addr %s458, 8
          %s460 = scalar_lea.vmem %s2, %s459
          %s461 = smul.u32 2, %s32
        $region20: #{backbone_forward.8} parent=11 // pred_fallthru
          _
      $region12: #{backbone_forward.8} parent=5 // pred_fallthru
        _
      %p462 = scmp.lt.s32.totalorder %s23, 2
      // Predicated region
      $region21: #{backbone_forward.8} parent=5 // pred_check
        %p463 = pneg %p462
      $region22: #{backbone_forward.8} parent=5 // pred_check_branch
        %465 = sbr.rel (%p463) target = $region24
      $region23: #{backbone_forward.8} parent=5 // pred_region
        // Predicated region
        $region25: #{backbone_forward.8} parent=23 // pred_check
          %p466 = pneg %p83
        $region26: #{backbone_forward.8} parent=23 // pred_check_branch
          %468 = sbr.rel (%p466) target = $region28
        $region27: #{backbone_forward.8} parent=23 // pred_region
          %s469 = smul.u32 2, %s30
          %p470 = scmp.lt.s32.totalorder %s31, 1
          %s471 = scalar_select %p470, %s31, 1
          %p472 = scmp.lt.s32.totalorder %s469, 1
          %s473 = scalar_select %p472, %s469, 1
          %s474 = smul.addr %s471, 2
          %s475 = sadd.s32 %s473, %s474
          %s476 = scalar_lea.vmem %s1, %s475
          %s477 = smul.u32 2, %s30
        $region28: #{backbone_forward.8} parent=23 // pred_fallthru
          _
        // Predicated region
        $region29: #{backbone_forward.8} parent=23 // pred_check
          %p478 = pneg %p135
        $region30: #{backbone_forward.8} parent=23 // pred_check_branch
          %480 = sbr.rel (%p478) target = $region32
        $region31: #{backbone_forward.8} parent=23 // pred_region
          %p481 = scmp.lt.s32.totalorder %s31, 1
          %s482 = scalar_select %p481, %s31, 1
          %s483 = scalar_lea.vmem %s3, %s482
        $region32: #{backbone_forward.8} parent=23 // pred_fallthru
          _
        // Predicated region
        $region33: #{backbone_forward.8} parent=23 // pred_check
          %p484 = pneg %p161
        $region34: #{backbone_forward.8} parent=23 // pred_check_branch
          %486 = sbr.rel (%p484) target = $region36
        $region35: #{backbone_forward.8} parent=23 // pred_region
          %p487 = scmp.lt.s32.totalorder %s31, 1
          %s488 = scalar_select %p487, %s31, 1
          %s489 = scalar_lea.vmem %s4, %s488
        $region36: #{backbone_forward.8} parent=23 // pred_fallthru
          _
        // Predicated region
        $region37: #{backbone_forward.8} parent=23 // pred_check
          %p490 = pneg %p187
        $region38: #{backbone_forward.8} parent=23 // pred_check_branch
          %492 = sbr.rel (%p490) target = $region40
        $region39: #{backbone_forward.8} parent=23 // pred_region
          %p493 = scmp.lt.s32.totalorder %s31, 1
          %s494 = scalar_select %p493, %s31, 1
          %s495 = smul.addr %s494, 2
          %s496 = smul.addr %s495, 8
          %s497 = scalar_lea.vmem %s5, %s496
        $region40: #{backbone_forward.8} parent=23 // pred_fallthru
          _
        // Predicated region
        $region41: #{backbone_forward.8} parent=23 // pred_check
          %p498 = pneg %p213
        $region42: #{backbone_forward.8} parent=23 // pred_check_branch
          %500 = sbr.rel (%p498) target = $region44
        $region43: #{backbone_forward.8} parent=23 // pred_region
          %p501 = scmp.lt.s32.totalorder %s31, 1
          %s502 = scalar_select %p501, %s31, 1
          %s503 = smul.addr %s502, 2
          %s504 = smul.addr %s503, 8
          %s505 = scalar_lea.vmem %s6, %s504
        $region44: #{backbone_forward.8} parent=23 // pred_fallthru
          _
        // Predicated region
        $region45: #{backbone_forward.8} parent=23 // pred_check
          %p506 = pneg %p239
        $region46: #{backbone_forward.8} parent=23 // pred_check_branch
          %508 = sbr.rel (%p506) target = $region48
        $region47: #{backbone_forward.8} parent=23 // pred_region
          %p509 = scmp.lt.s32.totalorder %s31, 1
          %s510 = scalar_select %p509, %s31, 1
          %s511 = scalar_lea.vmem %s7, %s510
        $region48: #{backbone_forward.8} parent=23 // pred_fallthru
          _
        // Predicated region
        $region49: #{backbone_forward.8} parent=23 // pred_check
          %p512 = pneg %p265
        $region50: #{backbone_forward.8} parent=23 // pred_check_branch
          %514 = sbr.rel (%p512) target = $region52
        $region51: #{backbone_forward.8} parent=23 // pred_region
          %s515 = sand.u32 %s255, 1
          %s516 = scalar_lea.sflag [#allocation4], %s515
          %s517 = sand.u32 %s255, 1
          %s518 = smul.addr %s517, 64
          %s519 = scalar_lea.vmem [#allocation3], %s518
          %s521 = ssub.s32 1024, 1024
          %522 = vsyncadd %s516, %s521
          %s523 = smul.addr %s31, 16
          %s524 = smul.addr %s523, 64
          %s525 = scalar_lea.hbm %s8, %s524
          %s526 = sshll.u32 %s519, 4
          %s527 = int_to_ptr.vmem [resolvable:$true] %s526
          %532 = dma.hbm_to_vmem [thread:$0]  %s525, 1024, %s527, %s516, 64, 64, 4
        $region52: #{backbone_forward.8} parent=23 // pred_fallthru
          _
        // Predicated region
        $region53: #{backbone_forward.8} parent=23 // pred_check
          %p533 = pneg %p291
        $region54: #{backbone_forward.8} parent=23 // pred_check_branch
          %535 = sbr.rel (%p533) target = $region56
        $region55: #{backbone_forward.8} parent=23 // pred_region
          %p536 = scmp.lt.s32.totalorder %s31, 1
          %s537 = scalar_select %p536, %s31, 1
          %s538 = scalar_lea.vmem %s9, %s537
        $region56: #{backbone_forward.8} parent=23 // pred_fallthru
          _
        // Predicated region
        $region57: #{backbone_forward.8} parent=23 // pred_check
          %p539 = pneg %p317
        $region58: #{backbone_forward.8} parent=23 // pred_check_branch
          %541 = sbr.rel (%p539) target = $region60
        $region59: #{backbone_forward.8} parent=23 // pred_region
          %p542 = scmp.lt.s32.totalorder %s31, 1
          %s543 = scalar_select %p542, %s31, 1
          %s544 = smul.addr %s543, 2
          %s545 = scalar_lea.vmem %s10, %s544
        $region60: #{backbone_forward.8} parent=23 // pred_fallthru
          _
        // Predicated region
        $region61: #{backbone_forward.8} parent=23 // pred_check
          %p546 = pneg %p343
        $region62: #{backbone_forward.8} parent=23 // pred_check_branch
          %548 = sbr.rel (%p546) target = $region64
        $region63: #{backbone_forward.8} parent=23 // pred_region
          %p549 = scmp.lt.s32.totalorder %s31, 1
          %s550 = scalar_select %p549, %s31, 1
          %s551 = scalar_lea.vmem %s11, %s550
        $region64: #{backbone_forward.8} parent=23 // pred_fallthru
          _
        // Predicated region
        $region65: #{backbone_forward.8} parent=23 // pred_check
          %p552 = pneg %p369
        $region66: #{backbone_forward.8} parent=23 // pred_check_branch
          %554 = sbr.rel (%p552) target = $region68
        $region67: #{backbone_forward.8} parent=23 // pred_region
          %p555 = scmp.lt.s32.totalorder %s31, 1
          %s556 = scalar_select %p555, %s31, 1
          %s557 = smul.addr %s556, 32
          %s558 = smul.addr %s557, 4
          %s559 = scalar_lea.vmem %s12, %s558
        $region68: #{backbone_forward.8} parent=23 // pred_fallthru
          _
        // Predicated region
        $region69: #{backbone_forward.8} parent=23 // pred_check
          %p560 = pneg %p395
        $region70: #{backbone_forward.8} parent=23 // pred_check_branch
          %562 = sbr.rel (%p560) target = $region72
        $region71: #{backbone_forward.8} parent=23 // pred_region
          %p563 = scmp.lt.s32.totalorder %s31, 1
          %s564 = scalar_select %p563, %s31, 1
          %s565 = smul.addr %s564, 2
          %s566 = scalar_lea.vmem %s13, %s565
        $region72: #{backbone_forward.8} parent=23 // pred_fallthru
          _
      $region24: #{backbone_forward.8} parent=5 // pred_fallthru
        _
      %p567 = scmp.le.s32.totalorder 1, %s23
      %p568 = scmp.lt.s32.totalorder %s23, 3
      %p569 = pnand %p567, %p568
      %p570 = pneg %p569
      // Predicated region
      $region73: #{backbone_forward.8} parent=5 // pred_check
        _
      $region74: #{backbone_forward.8} parent=5 // pred_check_branch
        %572 = sbr.rel (%p569) target = $region76
      $region75: #{backbone_forward.8} parent=5 // pred_region
        %s573 = ssub.s32 %s23, 1
        %s574 = sand.u32 %s258, 1
        %s575 = scalar_lea.sflag [#allocation4], %s574
        %s576 = sand.u32 %s258, 1
        %s577 = smul.addr %s576, 64
        %s578 = scalar_lea.vmem [#allocation3], %s577
        // Predicated region
        $region77: #{backbone_forward.8} parent=75 // pred_check
          %p579 = pneg %p271
        $region78: #{backbone_forward.8} parent=75 // pred_check_branch
          %581 = sbr.rel (%p579) target = $region80
        $region79: #{backbone_forward.8} parent=75 // pred_region
          %582 = dma.done %s575, 1024
        $region80: #{backbone_forward.8} parent=75 // pred_fallthru
          _
        %s583 = smul.u32 2, %s32
        %p584 = scmp.lt.s32.totalorder %s583, 1
        %s585 = scalar_select %p584, %s583, 1
        %s586 = smul.addr %s585, 2
        %s587 = smul.addr %s586, 8
        %s588 = scalar_lea.vmem %s0, %s587
        %p589 = pneg %p61
        %p590 = pneg %p58
        %s591 = smul.u32 2, %s32
        %p592 = scmp.lt.s32.totalorder %s33, 1
        %s593 = scalar_select %p592, %s33, 1
        %p594 = scmp.lt.s32.totalorder %s591, 1
        %s595 = scalar_select %p594, %s591, 1
        %s596 = smul.addr %s593, 2
        %s597 = sadd.s32 %s595, %s596
        %s598 = scalar_lea.vmem %s1, %s597
        %p599 = pneg %p89
        %p600 = pneg %p86
        %s601 = smul.u32 2, %s32
        %p602 = scmp.lt.s32.totalorder %s601, 1
        %s603 = scalar_select %p602, %s601, 1
        %s604 = smul.addr %s603, 2
        %s605 = smul.addr %s604, 8
        %s606 = scalar_lea.vmem %s2, %s605
        %p607 = pneg %p115
        %p608 = pneg %p112
        %p609 = scmp.lt.s32.totalorder %s33, 1
        %s610 = scalar_select %p609, %s33, 1
        %s611 = scalar_lea.vmem %s3, %s610
        %p612 = pneg %p141
        %p613 = pneg %p138
        %p614 = scmp.lt.s32.totalorder %s33, 1
        %s615 = scalar_select %p614, %s33, 1
        %s616 = scalar_lea.vmem %s4, %s615
        %p617 = pneg %p167
        %p618 = pneg %p164
        %p619 = scmp.lt.s32.totalorder %s33, 1
        %s620 = scalar_select %p619, %s33, 1
        %s621 = smul.addr %s620, 2
        %s622 = smul.addr %s621, 8
        %s623 = scalar_lea.vmem %s5, %s622
        %p624 = pneg %p193
        %p625 = pneg %p190
        %p626 = scmp.lt.s32.totalorder %s33, 1
        %s627 = scalar_select %p626, %s33, 1
        %s628 = smul.addr %s627, 2
        %s629 = smul.addr %s628, 8
        %s630 = scalar_lea.vmem %s6, %s629
        %p631 = pneg %p219
        %p632 = pneg %p216
        %p633 = scmp.lt.s32.totalorder %s33, 1
        %s634 = scalar_select %p633, %s33, 1
        %s635 = scalar_lea.vmem %s7, %s634
        %p636 = pneg %p245
        %p637 = pneg %p242
        %s638 = sand.u32 %s258, 1
        %s639 = scalar_lea.sflag [#allocation4], %s638
        %s640 = sand.u32 %s258, 1
        %s641 = smul.addr %s640, 64
        %s642 = scalar_lea.vmem [#allocation3], %s641
        %p643 = pneg %p271
        %p644 = pneg %p268
        %p645 = scmp.lt.s32.totalorder %s33, 1
        %s646 = scalar_select %p645, %s33, 1
        %s647 = scalar_lea.vmem %s9, %s646
        %p648 = pneg %p297
        %p649 = pneg %p294
        %p650 = scmp.lt.s32.totalorder %s33, 1
        %s651 = scalar_select %p650, %s33, 1
        %s652 = smul.addr %s651, 2
        %s653 = scalar_lea.vmem %s10, %s652
        %p654 = pneg %p323
        %p655 = pneg %p320
        %p656 = scmp.lt.s32.totalorder %s33, 1
        %s657 = scalar_select %p656, %s33, 1
        %s658 = scalar_lea.vmem %s11, %s657
        %p659 = pneg %p349
        %p660 = pneg %p346
        %p661 = scmp.lt.s32.totalorder %s33, 1
        %s662 = scalar_select %p661, %s33, 1
        %s663 = smul.addr %s662, 32
        %s664 = smul.addr %s663, 4
        %s665 = scalar_lea.vmem %s12, %s664
        %p666 = pneg %p375
        %p667 = pneg %p372
        %p668 = scmp.lt.s32.totalorder %s33, 1
        %s669 = scalar_select %p668, %s33, 1
        %s670 = smul.addr %s669, 2
        %s671 = scalar_lea.vmem %s13, %s670
        %p672 = pneg %p401
        %p673 = pneg %p398
        %p674 = pneg %p427
        %p675 = pneg %p424
        %s676 = smul.u32 2, %s32
        %p677 = scmp.lt.s32.totalorder %s676, 1
        %s678 = scalar_select %p677, %s676, 1
        %s679 = smul.addr %s678, 2
        %s680 = smul.addr %s679, 8
        %s681 = scalar_lea.vmem %s14, %s680
        %s682 = smul.u32 2, %s32
        %p683 = scmp.lt.s32.totalorder %s682, 1
        %s684 = scalar_select %p683, %s682, 1
        %s685 = smul.addr %s684, 2
        %s686 = smul.addr %s685, 8
        %s687 = scalar_lea.vmem %s0, %s686
        %s688 = smul.u32 2, %s32
        %s689 = smul.u32 2, %s32
        %p690 = scmp.lt.s32.totalorder %s33, 1
        %s691 = scalar_select %p690, %s33, 1
        %p692 = scmp.lt.s32.totalorder %s689, 1
        %s693 = scalar_select %p692, %s689, 1
        %s694 = smul.addr %s691, 2
        %s695 = sadd.s32 %s693, %s694
        %s696 = scalar_lea.vmem %s1, %s695
        %s697 = smul.u32 2, %s32
        %s698 = smul.u32 2, %s32
        %p699 = scmp.lt.s32.totalorder %s698, 1
        %s700 = scalar_select %p699, %s698, 1
        %s701 = smul.addr %s700, 2
        %s702 = smul.addr %s701, 8
        %s703 = scalar_lea.vmem %s2, %s702
        %s704 = smul.u32 2, %s32
        %p705 = scmp.lt.s32.totalorder %s33, 1
        %s706 = scalar_select %p705, %s33, 1
        %s707 = scalar_lea.vmem %s3, %s706
        %p708 = scmp.lt.s32.totalorder %s33, 1
        %s709 = scalar_select %p708, %s33, 1
        %s710 = scalar_lea.vmem %s4, %s709
        %p711 = scmp.lt.s32.totalorder %s33, 1
        %s712 = scalar_select %p711, %s33, 1
        %s713 = smul.addr %s712, 2
        %s714 = smul.addr %s713, 8
        %s715 = scalar_lea.vmem %s5, %s714
        %p716 = scmp.lt.s32.totalorder %s33, 1
        %s717 = scalar_select %p716, %s33, 1
        %s718 = smul.addr %s717, 2
        %s719 = smul.addr %s718, 8
        %s720 = scalar_lea.vmem %s6, %s719
        %p721 = scmp.lt.s32.totalorder %s33, 1
        %s722 = scalar_select %p721, %s33, 1
        %s723 = scalar_lea.vmem %s7, %s722
        %p724 = scmp.lt.s32.totalorder %s33, 1
        %s725 = scalar_select %p724, %s33, 1
        %s726 = scalar_lea.vmem %s9, %s725
        %p727 = scmp.lt.s32.totalorder %s33, 1
        %s728 = scalar_select %p727, %s33, 1
        %s729 = smul.addr %s728, 2
        %s730 = scalar_lea.vmem %s10, %s729
        %p731 = scmp.lt.s32.totalorder %s33, 1
        %s732 = scalar_select %p731, %s33, 1
        %s733 = scalar_lea.vmem %s11, %s732
        %p734 = scmp.lt.s32.totalorder %s33, 1
        %s735 = scalar_select %p734, %s33, 1
        %s736 = smul.addr %s735, 32
        %s737 = smul.addr %s736, 4
        %s738 = scalar_lea.vmem %s12, %s737
        %p739 = scmp.lt.s32.totalorder %s33, 1
        %s740 = scalar_select %p739, %s33, 1
        %s741 = smul.addr %s740, 2
        %s742 = scalar_lea.vmem %s13, %s741
        %s743 = smul.u32 2, %s32
        %p744 = scmp.lt.s32.totalorder %s743, 1
        %s745 = scalar_select %p744, %s743, 1
        %s746 = smul.addr %s745, 2
        %s747 = smul.addr %s746, 8
        %s748 = scalar_lea.vmem %s14, %s747
        %s749 = smul.u32 2, %s32
        %p751 = scmp.eq.s32.totalorder %s33, 0
        // Predicated region
        $region81: #{backbone_forward.8} parent=75 // pred_check
          %p752 = pneg %p751
        $region82: #{backbone_forward.8} parent=75 // pred_check_branch
          %754 = sbr.rel (%p752) target = $region84
        $region83: #{backbone_forward.8} parent=75 // pred_region
          %v755 = vld [vmem:[%s687] sm:$0xff]
          %v756 = vld [vmem:[%s687 + $0x8] sm:$0xff]
          %v757 = vld [vmem:[%s687 + $0x10] sm:$0xff]
          %v758 = vld [vmem:[%s687 + $0x18] sm:$0xff]
          %759 = vst [vmem:[#allocation2] sm:$0xff] %v755
          %760 = vst [vmem:[#allocation2 + $0x8] sm:$0xff] %v756
          %761 = vst [vmem:[#allocation2 + $0x10] sm:$0xff] %v757
          %762 = vst [vmem:[#allocation2 + $0x18] sm:$0xff] %v758
          %763 = vst [vmem:[%s748] sm:$0xff] 0.0
          %764 = vst [vmem:[%s748 + $0x8] sm:$0xff] 0.0
          %765 = vst [vmem:[%s748 + $0x10] sm:$0xff] 0.0
          %766 = vst [vmem:[%s748 + $0x18] sm:$0xff] 0.0
        $region84: #{backbone_forward.8} parent=75 // pred_fallthru
          _
        %v767 = vld [vmem:[#allocation2] sm:$0xff]
        %v768 = vld [vmem:[#allocation2 + $0x8] sm:$0xff]
        %v769 = vld [vmem:[#allocation2 + $0x10] sm:$0xff]
        %v770 = vld [vmem:[#allocation2 + $0x18] sm:$0xff]
        %v771 = vld [vmem:[%s696] sm:$0x1]
        %v772 = vld [vmem:[%s696 + $0x1] sm:$0x1]
        %v775 = vlaneseq
        %v776 = vshrl.u32 %v775, 7
        %v777 = vsub.s32 0, %v776
        %v778 = vrot.slane %v771, %v777
        %v779 = vlaneseq
        %v780 = vshrl.u32 %v779, 7
        %v781 = vsub.s32 0, %v780
        %v782 = vrot.slane %v772, %v781
        %v785 = vadd.f32 %v767, %v778
        %v786 = vadd.f32 %v768, %v778
        %v787 = vadd.f32 %v769, %v782
        %v788 = vadd.f32 %v770, %v782
        %789 = vadd.xlane.f32.xlu0 %v785
        %v790 = vpop.xlane.xlu0 %789
        %791 = vadd.xlane.f32.xlu0 %v786
        %v792 = vpop.xlane.xlu0 %791
        %793 = vadd.xlane.f32.xlu0 %v787
        %v794 = vpop.xlane.xlu0 %793
        %795 = vadd.xlane.f32.xlu0 %v788
        %v796 = vpop.xlane.xlu0 %795
        %v797 = vmul.f32 %v790, 0.03125
        %v798 = vmul.f32 %v792, 0.03125
        %v799 = vmul.f32 %v794, 0.03125
        %v800 = vmul.f32 %v796, 0.03125
        %v801 = vmul.f32 %v785, %v785
        %v802 = vmul.f32 %v786, %v786
        %v803 = vmul.f32 %v787, %v787
        %v804 = vmul.f32 %v788, %v788
        %805 = vadd.xlane.f32.xlu0 %v801
        %v806 = vpop.xlane.xlu0 %805
        %807 = vadd.xlane.f32.xlu0 %v802
        %v808 = vpop.xlane.xlu0 %807
        %809 = vadd.xlane.f32.xlu0 %v803
        %v810 = vpop.xlane.xlu0 %809
        %811 = vadd.xlane.f32.xlu0 %v804
        %v812 = vpop.xlane.xlu0 %811
        %v813 = vmul.f32 %v806, 0.03125
        %v814 = vmul.f32 %v808, 0.03125
        %v815 = vmul.f32 %v810, 0.03125
        %v816 = vmul.f32 %v812, 0.03125
        %v817 = vmul.f32 %v797, %v797
        %v818 = vmul.f32 %v798, %v798
        %v819 = vmul.f32 %v799, %v799
        %v820 = vmul.f32 %v800, %v800
        %v821 = vsub.f32 %v813, %v817
        %v822 = vsub.f32 %v814, %v818
        %v823 = vsub.f32 %v815, %v819
        %v824 = vsub.f32 %v816, %v820
        %v825 = vmax.f32 %v821, 0.0
        %v826 = vmax.f32 %v822, 0.0
        %v827 = vmax.f32 %v823, 0.0
        %v828 = vmax.f32 %v824, 0.0
        %v829 = vsub.f32 %v785, %v797
        %v830 = vsub.f32 %v786, %v798
        %v831 = vsub.f32 %v787, %v799
        %v832 = vsub.f32 %v788, %v800
        %v833 = vadd.f32 %v825, 1e-05
        %v834 = vadd.f32 %v826, 1e-05
        %v835 = vadd.f32 %v827, 1e-05
        %v836 = vadd.f32 %v828, 1e-05
        %v837 = vrsqrt.pop %v833
        %v838 = vrsqrt.pop %v834
        %v839 = vrsqrt.pop %v835
        %v840 = vrsqrt.pop %v836
        %v841 = vmul.f32 %v829, %v837
        %v842 = vmul.f32 %v830, %v838
        %v843 = vmul.f32 %v831, %v839
        %v844 = vmul.f32 %v832, %v840
        %v845 = vld [vmem:[%s707] sm:$0x1]
        %v847 = vlaneseq
        %v848 = vshrl.u32 %v847, 7
        %v849 = vsub.s32 0, %v848
        %v850 = vrot.slane %v845, %v849
        %v852 = vmul.f32 %v841, %v850
        %v853 = vmul.f32 %v842, %v850
        %v854 = vmul.f32 %v843, %v850
        %v855 = vmul.f32 %v844, %v850
        %v856 = vld [vmem:[%s710] sm:$0x1]
        %v858 = vlaneseq
        %v859 = vshrl.u32 %v858, 7
        %v860 = vsub.s32 0, %v859
        %v861 = vrot.slane %v856, %v860
        %v863 = vadd.f32 %v852, %v861
        %v864 = vadd.f32 %v853, %v861
        %v865 = vadd.f32 %v854, %v861
        %v866 = vadd.f32 %v855, %v861
        %v867 = vlaneseq
        %v868 = vshrl.u32 %v867, 7
        %v869 = vadd.s32 %v868, 8
        %v870 = vadd.s32 %v868, 16
        %v871 = vadd.s32 %v868, 24
        %vm872 = vcmp.lt.s32.totalorder %v868, 0
        %v873 = vsub.s32 0, %v868
        %v874 = vsel %vm872, %v873, %v868
        %v875 = vshrl.u32 %v874, 4
        %v876 = vand.u32 %v874, 15
        %v877 = vsub.s32 0, %v876
        %v878 = vsel %vm872, %v877, %v876
        %vm879 = vcmp.lt.s32.totalorder %v869, 0
        %v880 = vsub.s32 0, %v869
        %v881 = vsel %vm879, %v880, %v869
        %v882 = vshrl.u32 %v881, 4
        %v883 = vand.u32 %v881, 15
        %v884 = vsub.s32 0, %v883
        %v885 = vsel %vm879, %v884, %v883
        %vm886 = vcmp.lt.s32.totalorder %v870, 0
        %v887 = vsub.s32 0, %v870
        %v888 = vsel %vm886, %v887, %v870
        %v889 = vshrl.u32 %v888, 4
        %v890 = vand.u32 %v888, 15
        %v891 = vsub.s32 0, %v890
        %v892 = vsel %vm886, %v891, %v890
        %vm893 = vcmp.lt.s32.totalorder %v871, 0
        %v894 = vsub.s32 0, %v871
        %v895 = vsel %vm893, %v894, %v871
        %v896 = vshrl.u32 %v895, 4
        %v897 = vand.u32 %v895, 15
        %v898 = vsub.s32 0, %v897
        %v899 = vsel %vm893, %v898, %v897
        %vm900 = vcmp.ne.s32.totalorder %v878, 0
        %vm901 = vcmp.ne.s32.totalorder %v885, 0
        %vm902 = vcmp.ne.s32.totalorder %v892, 0
        %vm903 = vcmp.ne.s32.totalorder %v899, 0
        %vm904 = vcmp.lt.s32.totalorder %v878, 0
        %vm905 = vcmp.lt.s32.totalorder %v885, 0
        %vm906 = vcmp.lt.s32.totalorder %v892, 0
        %vm907 = vcmp.lt.s32.totalorder %v899, 0
        %vm908 = vmand %vm904, %vm900
        %vm909 = vmand %vm905, %vm901
        %vm910 = vmand %vm906, %vm902
        %vm911 = vmand %vm907, %vm903
        %v912 = vadd.s32 %v878, 16
        %v913 = vadd.s32 %v885, 16
        %v914 = vadd.s32 %v892, 16
        %v915 = vadd.s32 %v899, 16
        %v916 = vsel %vm908, %v912, %v878
        %v917 = vsel %vm909, %v913, %v885
        %v918 = vsel %vm910, %v914, %v892
        %v919 = vsel %vm911, %v915, %v899
        %v920 = vld [vmem:[%s715] sm:$0x1]
        %v921 = vlaneseq
        %v922 = vshrl.u32 %v921, 7
        %v923 = vsub.s32 0, %v922
        %v924 = vrot.slane %v920, %v923
        %v925 = vmul.f32 %v863, %v924
        %v926 = vmul.f32 %v864, %v924
        %v927 = vmul.f32 %v865, %v924
        %v928 = vmul.f32 %v866, %v924
        %v929 = vrot.slane %v863, 7
        %v930 = vrot.slane %v864, 7
        %v931 = vrot.slane %v865, 7
        %v932 = vrot.slane %v866, 7
        %vm933 = vcmp.lt.s32.totalorder %v868, 1
        %v934 = vsel %vm933, %v931, %v932
        %v935 = vsel %vm933, %v930, %v931
        %v936 = vsel %vm933, %v929, %v930
        %v937 = vsel %vm933, %v932, %v929
        %vm938 = vcmp.ge.s32.totalorder %v916, 1
        %vm939 = vcmp.ge.s32.totalorder %v917, 1
        %vm940 = vcmp.ge.s32.totalorder %v918, 1
        %vm941 = vcmp.ge.s32.totalorder %v919, 1
        %v942 = vsel %vm938, %v937, 0.0
        %v943 = vsel %vm939, %v936, 0.0
        %v944 = vsel %vm940, %v935, 0.0
        %v945 = vsel %vm941, %v934, 0.0
        %v946 = vld [vmem:[%s715 + $0x1] sm:$0x1]
        %v947 = vlaneseq
        %v948 = vshrl.u32 %v947, 7
        %v949 = vsub.s32 0, %v948
        %v950 = vrot.slane %v946, %v949
        %v951 = vmul.f32 %v942, %v950
        %v952 = vmul.f32 %v943, %v950
        %v953 = vmul.f32 %v944, %v950
        %v954 = vmul.f32 %v945, %v950
        %v955 = vadd.f32 %v925, %v951
        %v956 = vadd.f32 %v926, %v952
        %v957 = vadd.f32 %v927, %v953
        %v958 = vadd.f32 %v928, %v954
        %v959 = vrot.slane %v863, 1
        %v960 = vrot.slane %v864, 1
        %v961 = vrot.slane %v865, 1
        %v962 = vrot.slane %v866, 1
        %vm963 = vcmp.lt.s32.totalorder %v868, 7
        %v964 = vsel %vm963, %v961, %v962
        %v965 = vsel %vm963, %v960, %v961
        %v966 = vsel %vm963, %v959, %v960
        %v967 = vsel %vm963, %v962, %v959
        %vm968 = vcmp.lt.s32.totalorder %v916, 15
        %vm969 = vcmp.lt.s32.totalorder %v917, 15
        %vm970 = vcmp.lt.s32.totalorder %v918, 15
        %vm971 = vcmp.lt.s32.totalorder %v919, 15
        %v972 = vsel %vm968, %v966, 0.0
        %v973 = vsel %vm969, %v965, 0.0
        %v974 = vsel %vm970, %v964, 0.0
        %v975 = vsel %vm971, %v967, 0.0
        %v976 = vld [vmem:[%s720] sm:$0x1]
        %v977 = vlaneseq
        %v978 = vshrl.u32 %v977, 7
        %v979 = vsub.s32 0, %v978
        %v980 = vrot.slane %v976, %v979
        %v981 = vmul.f32 %v972, %v980
        %v982 = vmul.f32 %v973, %v980
        %v983 = vmul.f32 %v974, %v980
        %v984 = vmul.f32 %v975, %v980
        %v985 = vadd.f32 %v981, 0.0
        %v986 = vadd.f32 %v982, 0.0
        %v987 = vadd.f32 %v983, 0.0
        %v988 = vadd.f32 %v984, 0.0
        %v989 = vrot.slane %v863, 6
        %v990 = vrot.slane %v864, 6
        %v991 = vrot.slane %v865, 6
        %v992 = vrot.slane %v866, 6
        %vm993 = vcmp.lt.s32.totalorder %v868, 2
        %v994 = vsel %vm993, %v991, %v992
        %v995 = vsel %vm993, %v990, %v991
        %v996 = vsel %vm993, %v989, %v990
        %v997 = vsel %vm993, %v992, %v989
        %vm998 = vcmp.ge.s32.totalorder %v916, 2
        %vm999 = vcmp.ge.s32.totalorder %v917, 2
        %vm1000 = vcmp.ge.s32.totalorder %v918, 2
        %vm1001 = vcmp.ge.s32.totalorder %v919, 2
        %v1002 = vsel %vm998, %v997, 0.0
        %v1003 = vsel %vm999, %v996, 0.0
        %v1004 = vsel %vm1000, %v995, 0.0
        %v1005 = vsel %vm1001, %v994, 0.0
        %v1006 = vld [vmem:[%s715 + $0x2] sm:$0x1]
        %v1007 = vlaneseq
        %v1008 = vshrl.u32 %v1007, 7
        %v1009 = vsub.s32 0, %v1008
        %v1010 = vrot.slane %v1006, %v1009
        %v1011 = vmul.f32 %v1002, %v1010
        %v1012 = vmul.f32 %v1003, %v1010
        %v1013 = vmul.f32 %v1004, %v1010
        %v1014 = vmul.f32 %v1005, %v1010
        %v1015 = vadd.f32 %v955, %v1011
        %v1016 = vadd.f32 %v956, %v1012
        %v1017 = vadd.f32 %v957, %v1013
        %v1018 = vadd.f32 %v958, %v1014
        %v1019 = vrot.slane %v863, 2
        %v1020 = vrot.slane %v864, 2
        %v1021 = vrot.slane %v865, 2
        %v1022 = vrot.slane %v866, 2
        %vm1023 = vcmp.lt.s32.totalorder %v868, 6
        %v1024 = vsel %vm1023, %v1021, %v1022
        %v1025 = vsel %vm1023, %v1020, %v1021
        %v1026 = vsel %vm1023, %v1019, %v1020
        %v1027 = vsel %vm1023, %v1022, %v1019
        %vm1028 = vcmp.lt.s32.totalorder %v916, 14
        %vm1029 = vcmp.lt.s32.totalorder %v917, 14
        %vm1030 = vcmp.lt.s32.totalorder %v918, 14
        %vm1031 = vcmp.lt.s32.totalorder %v919, 14
        %v1032 = vsel %vm1028, %v1026, 0.0
        %v1033 = vsel %vm1029, %v1025, 0.0
        %v1034 = vsel %vm1030, %v1024, 0.0
        %v1035 = vsel %vm1031, %v1027, 0.0
        %v1036 = vld [vmem:[%s720 + $0x1] sm:$0x1]
        %v1037 = vlaneseq
        %v1038 = vshrl.u32 %v1037, 7
        %v1039 = vsub.s32 0, %v1038
        %v1040 = vrot.slane %v1036, %v1039
        %v1041 = vmul.f32 %v1032, %v1040
        %v1042 = vmul.f32 %v1033, %v1040
        %v1043 = vmul.f32 %v1034, %v1040
        %v1044 = vmul.f32 %v1035, %v1040
        %v1045 = vadd.f32 %v985, %v1041
        %v1046 = vadd.f32 %v986, %v1042
        %v1047 = vadd.f32 %v987, %v1043
        %v1048 = vadd.f32 %v988, %v1044
        %v1049 = vrot.slane %v863, 5
        %v1050 = vrot.slane %v864, 5
        %v1051 = vrot.slane %v865, 5
        %v1052 = vrot.slane %v866, 5
        %vm1053 = vcmp.lt.s32.totalorder %v868, 3
        %v1054 = vsel %vm1053, %v1051, %v1052
        %v1055 = vsel %vm1053, %v1050, %v1051
        %v1056 = vsel %vm1053, %v1049, %v1050
        %v1057 = vsel %vm1053, %v1052, %v1049
        %vm1058 = vcmp.ge.s32.totalorder %v916, 3
        %vm1059 = vcmp.ge.s32.totalorder %v917, 3
        %vm1060 = vcmp.ge.s32.totalorder %v918, 3
        %vm1061 = vcmp.ge.s32.totalorder %v919, 3
        %v1062 = vsel %vm1058, %v1057, 0.0
        %v1063 = vsel %vm1059, %v1056, 0.0
        %v1064 = vsel %vm1060, %v1055, 0.0
        %v1065 = vsel %vm1061, %v1054, 0.0
        %v1066 = vld [vmem:[%s715 + $0x3] sm:$0x1]
        %v1067 = vlaneseq
        %v1068 = vshrl.u32 %v1067, 7
        %v1069 = vsub.s32 0, %v1068
        %v1070 = vrot.slane %v1066, %v1069
        %v1071 = vmul.f32 %v1062, %v1070
        %v1072 = vmul.f32 %v1063, %v1070
        %v1073 = vmul.f32 %v1064, %v1070
        %v1074 = vmul.f32 %v1065, %v1070
        %v1075 = vadd.f32 %v1015, %v1071
        %v1076 = vadd.f32 %v1016, %v1072
        %v1077 = vadd.f32 %v1017, %v1073
        %v1078 = vadd.f32 %v1018, %v1074
        %v1079 = vrot.slane %v863, 3
        %v1080 = vrot.slane %v864, 3
        %v1081 = vrot.slane %v865, 3
        %v1082 = vrot.slane %v866, 3
        %vm1083 = vcmp.lt.s32.totalorder %v868, 5
        %v1084 = vsel %vm1083, %v1081, %v1082
        %v1085 = vsel %vm1083, %v1080, %v1081
        %v1086 = vsel %vm1083, %v1079, %v1080
        %v1087 = vsel %vm1083, %v1082, %v1079
        %vm1088 = vcmp.lt.s32.totalorder %v916, 13
        %vm1089 = vcmp.lt.s32.totalorder %v917, 13
        %vm1090 = vcmp.lt.s32.totalorder %v918, 13
        %vm1091 = vcmp.lt.s32.totalorder %v919, 13
        %v1092 = vsel %vm1088, %v1086, 0.0
        %v1093 = vsel %vm1089, %v1085, 0.0
        %v1094 = vsel %vm1090, %v1084, 0.0
        %v1095 = vsel %vm1091, %v1087, 0.0
        %v1096 = vld [vmem:[%s720 + $0x2] sm:$0x1]
        %v1097 = vlaneseq
        %v1098 = vshrl.u32 %v1097, 7
        %v1099 = vsub.s32 0, %v1098
        %v1100 = vrot.slane %v1096, %v1099
        %v1101 = vmul.f32 %v1092, %v1100
        %v1102 = vmul.f32 %v1093, %v1100
        %v1103 = vmul.f32 %v1094, %v1100
        %v1104 = vmul.f32 %v1095, %v1100
        %v1105 = vadd.f32 %v1045, %v1101
        %v1106 = vadd.f32 %v1046, %v1102
        %v1107 = vadd.f32 %v1047, %v1103
        %v1108 = vadd.f32 %v1048, %v1104
        %v1109 = vrot.slane %v863, 4
        %v1110 = vrot.slane %v864, 4
        %v1111 = vrot.slane %v865, 4
        %v1112 = vrot.slane %v866, 4
        %vm1113 = vcmp.lt.s32.totalorder %v868, 4
        %v1114 = vsel %vm1113, %v1111, %v1112
        %v1115 = vsel %vm1113, %v1110, %v1111
        %v1116 = vsel %vm1113, %v1109, %v1110
        %v1117 = vsel %vm1113, %v1112, %v1109
        %vm1118 = vcmp.ge.s32.totalorder %v916, 4
        %vm1119 = vcmp.ge.s32.totalorder %v917, 4
        %vm1120 = vcmp.ge.s32.totalorder %v918, 4
        %vm1121 = vcmp.ge.s32.totalorder %v919, 4
        %v1122 = vsel %vm1118, %v1117, 0.0
        %v1123 = vsel %vm1119, %v1116, 0.0
        %v1124 = vsel %vm1120, %v1115, 0.0
        %v1125 = vsel %vm1121, %v1114, 0.0
        %v1126 = vld [vmem:[%s715 + $0x4] sm:$0x1]
        %v1127 = vlaneseq
        %v1128 = vshrl.u32 %v1127, 7
        %v1129 = vsub.s32 0, %v1128
        %v1130 = vrot.slane %v1126, %v1129
        %v1131 = vmul.f32 %v1122, %v1130
        %v1132 = vmul.f32 %v1123, %v1130
        %v1133 = vmul.f32 %v1124, %v1130
        %v1134 = vmul.f32 %v1125, %v1130
        %v1135 = vadd.f32 %v1075, %v1131
        %v1136 = vadd.f32 %v1076, %v1132
        %v1137 = vadd.f32 %v1077, %v1133
        %v1138 = vadd.f32 %v1078, %v1134
        %vm1139 = vcmp.lt.s32.totalorder %v916, 12
        %vm1140 = vcmp.lt.s32.totalorder %v917, 12
        %vm1141 = vcmp.lt.s32.totalorder %v918, 12
        %vm1142 = vcmp.lt.s32.totalorder %v919, 12
        %v1143 = vsel %vm1139, %v1116, 0.0
        %v1144 = vsel %vm1140, %v1115, 0.0
        %v1145 = vsel %vm1141, %v1114, 0.0
        %v1146 = vsel %vm1142, %v1117, 0.0
        %v1147 = vld [vmem:[%s720 + $0x3] sm:$0x1]
        %v1148 = vlaneseq
        %v1149 = vshrl.u32 %v1148, 7
        %v1150 = vsub.s32 0, %v1149
        %v1151 = vrot.slane %v1147, %v1150
        %v1152 = vmul.f32 %v1143, %v1151
        %v1153 = vmul.f32 %v1144, %v1151
        %v1154 = vmul.f32 %v1145, %v1151
        %v1155 = vmul.f32 %v1146, %v1151
        %v1156 = vadd.f32 %v1105, %v1152
        %v1157 = vadd.f32 %v1106, %v1153
        %v1158 = vadd.f32 %v1107, %v1154
        %v1159 = vadd.f32 %v1108, %v1155
        %vm1160 = vcmp.ge.s32.totalorder %v916, 5
        %vm1161 = vcmp.ge.s32.totalorder %v917, 5
        %vm1162 = vcmp.ge.s32.totalorder %v918, 5
        %vm1163 = vcmp.ge.s32.totalorder %v919, 5
        %v1164 = vsel %vm1160, %v1087, 0.0
        %v1165 = vsel %vm1161, %v1086, 0.0
        %v1166 = vsel %vm1162, %v1085, 0.0
        %v1167 = vsel %vm1163, %v1084, 0.0
        %v1168 = vld [vmem:[%s715 + $0x5] sm:$0x1]
        %v1169 = vlaneseq
        %v1170 = vshrl.u32 %v1169, 7
        %v1171 = vsub.s32 0, %v1170
        %v1172 = vrot.slane %v1168, %v1171
        %v1173 = vmul.f32 %v1164, %v1172
        %v1174 = vmul.f32 %v1165, %v1172
        %v1175 = vmul.f32 %v1166, %v1172
        %v1176 = vmul.f32 %v1167, %v1172
        %v1177 = vadd.f32 %v1135, %v1173
        %v1178 = vadd.f32 %v1136, %v1174
        %v1179 = vadd.f32 %v1137, %v1175
        %v1180 = vadd.f32 %v1138, %v1176
        %vm1181 = vcmp.lt.s32.totalorder %v916, 11
        %vm1182 = vcmp.lt.s32.totalorder %v917, 11
        %vm1183 = vcmp.lt.s32.totalorder %v918, 11
        %vm1184 = vcmp.lt.s32.totalorder %v919, 11
        %v1185 = vsel %vm1181, %v1056, 0.0
        %v1186 = vsel %vm1182, %v1055, 0.0
        %v1187 = vsel %vm1183, %v1054, 0.0
        %v1188 = vsel %vm1184, %v1057, 0.0
        %v1189 = vld [vmem:[%s720 + $0x4] sm:$0x1]
        %v1190 = vlaneseq
        %v1191 = vshrl.u32 %v1190, 7
        %v1192 = vsub.s32 0, %v1191
        %v1193 = vrot.slane %v1189, %v1192
        %v1194 = vmul.f32 %v1185, %v1193
        %v1195 = vmul.f32 %v1186, %v1193
        %v1196 = vmul.f32 %v1187, %v1193
        %v1197 = vmul.f32 %v1188, %v1193
        %v1198 = vadd.f32 %v1156, %v1194
        %v1199 = vadd.f32 %v1157, %v1195
        %v1200 = vadd.f32 %v1158, %v1196
        %v1201 = vadd.f32 %v1159, %v1197
        %vm1202 = vcmp.ge.s32.totalorder %v916, 6
        %vm1203 = vcmp.ge.s32.totalorder %v917, 6
        %vm1204 = vcmp.ge.s32.totalorder %v918, 6
        %vm1205 = vcmp.ge.s32.totalorder %v919, 6
        %v1206 = vsel %vm1202, %v1027, 0.0
        %v1207 = vsel %vm1203, %v1026, 0.0
        %v1208 = vsel %vm1204, %v1025, 0.0
        %v1209 = vsel %vm1205, %v1024, 0.0
        %v1210 = vld [vmem:[%s715 + $0x6] sm:$0x1]
        %v1211 = vlaneseq
        %v1212 = vshrl.u32 %v1211, 7
        %v1213 = vsub.s32 0, %v1212
        %v1214 = vrot.slane %v1210, %v1213
        %v1215 = vmul.f32 %v1206, %v1214
        %v1216 = vmul.f32 %v1207, %v1214
        %v1217 = vmul.f32 %v1208, %v1214
        %v1218 = vmul.f32 %v1209, %v1214
        %v1219 = vadd.f32 %v1177, %v1215
        %v1220 = vadd.f32 %v1178, %v1216
        %v1221 = vadd.f32 %v1179, %v1217
        %v1222 = vadd.f32 %v1180, %v1218
        %vm1223 = vcmp.lt.s32.totalorder %v916, 10
        %vm1224 = vcmp.lt.s32.totalorder %v917, 10
        %vm1225 = vcmp.lt.s32.totalorder %v918, 10
        %vm1226 = vcmp.lt.s32.totalorder %v919, 10
        %v1227 = vsel %vm1223, %v996, 0.0
        %v1228 = vsel %vm1224, %v995, 0.0
        %v1229 = vsel %vm1225, %v994, 0.0
        %v1230 = vsel %vm1226, %v997, 0.0
        %v1231 = vld [vmem:[%s720 + $0x5] sm:$0x1]
        %v1232 = vlaneseq
        %v1233 = vshrl.u32 %v1232, 7
        %v1234 = vsub.s32 0, %v1233
        %v1235 = vrot.slane %v1231, %v1234
        %v1236 = vmul.f32 %v1227, %v1235
        %v1237 = vmul.f32 %v1228, %v1235
        %v1238 = vmul.f32 %v1229, %v1235
        %v1239 = vmul.f32 %v1230, %v1235
        %v1240 = vadd.f32 %v1198, %v1236
        %v1241 = vadd.f32 %v1199, %v1237
        %v1242 = vadd.f32 %v1200, %v1238
        %v1243 = vadd.f32 %v1201, %v1239
        %vm1244 = vcmp.ge.s32.totalorder %v916, 7
        %vm1245 = vcmp.ge.s32.totalorder %v917, 7
        %vm1246 = vcmp.ge.s32.totalorder %v918, 7
        %vm1247 = vcmp.ge.s32.totalorder %v919, 7
        %v1248 = vsel %vm1244, %v967, 0.0
        %v1249 = vsel %vm1245, %v966, 0.0
        %v1250 = vsel %vm1246, %v965, 0.0
        %v1251 = vsel %vm1247, %v964, 0.0
        %v1252 = vld [vmem:[%s715 + $0x7] sm:$0x1]
        %v1253 = vlaneseq
        %v1254 = vshrl.u32 %v1253, 7
        %v1255 = vsub.s32 0, %v1254
        %v1256 = vrot.slane %v1252, %v1255
        %v1257 = vmul.f32 %v1248, %v1256
        %v1258 = vmul.f32 %v1249, %v1256
        %v1259 = vmul.f32 %v1250, %v1256
        %v1260 = vmul.f32 %v1251, %v1256
        %v1261 = vadd.f32 %v1219, %v1257
        %v1262 = vadd.f32 %v1220, %v1258
        %v1263 = vadd.f32 %v1221, %v1259
        %v1264 = vadd.f32 %v1222, %v1260
        %vm1265 = vcmp.lt.s32.totalorder %v916, 9
        %vm1266 = vcmp.lt.s32.totalorder %v917, 9
        %vm1267 = vcmp.lt.s32.totalorder %v918, 9
        %vm1268 = vcmp.lt.s32.totalorder %v919, 9
        %v1269 = vsel %vm1265, %v936, 0.0
        %v1270 = vsel %vm1266, %v935, 0.0
        %v1271 = vsel %vm1267, %v934, 0.0
        %v1272 = vsel %vm1268, %v937, 0.0
        %v1273 = vld [vmem:[%s720 + $0x6] sm:$0x1]
        %v1274 = vlaneseq
        %v1275 = vshrl.u32 %v1274, 7
        %v1276 = vsub.s32 0, %v1275
        %v1277 = vrot.slane %v1273, %v1276
        %v1278 = vmul.f32 %v1269, %v1277
        %v1279 = vmul.f32 %v1270, %v1277
        %v1280 = vmul.f32 %v1271, %v1277
        %v1281 = vmul.f32 %v1272, %v1277
        %v1282 = vadd.f32 %v1240, %v1278
        %v1283 = vadd.f32 %v1241, %v1279
        %v1284 = vadd.f32 %v1242, %v1280
        %v1285 = vadd.f32 %v1243, %v1281
        %vm1286 = vcmp.ge.s32.totalorder %v916, 8
        %vm1287 = vcmp.ge.s32.totalorder %v917, 8
        %vm1288 = vcmp.ge.s32.totalorder %v918, 8
        %vm1289 = vcmp.ge.s32.totalorder %v919, 8
        %v1290 = vsel %vm1286, %v866, 0.0
        %v1291 = vsel %vm1287, %v863, 0.0
        %v1292 = vsel %vm1288, %v864, 0.0
        %v1293 = vsel %vm1289, %v865, 0.0
        %v1294 = vld [vmem:[%s715 + $0x8] sm:$0x1]
        %v1295 = vlaneseq
        %v1296 = vshrl.u32 %v1295, 7
        %v1297 = vsub.s32 0, %v1296
        %v1298 = vrot.slane %v1294, %v1297
        %v1299 = vmul.f32 %v1290, %v1298
        %v1300 = vmul.f32 %v1291, %v1298
        %v1301 = vmul.f32 %v1292, %v1298
        %v1302 = vmul.f32 %v1293, %v1298
        %v1303 = vadd.f32 %v1261, %v1299
        %v1304 = vadd.f32 %v1262, %v1300
        %v1305 = vadd.f32 %v1263, %v1301
        %v1306 = vadd.f32 %v1264, %v1302
        %vm1307 = vcmp.lt.s32.totalorder %v916, 8
        %vm1308 = vcmp.lt.s32.totalorder %v917, 8
        %vm1309 = vcmp.lt.s32.totalorder %v918, 8
        %vm1310 = vcmp.lt.s32.totalorder %v919, 8
        %v1311 = vsel %vm1307, %v864, 0.0
        %v1312 = vsel %vm1308, %v865, 0.0
        %v1313 = vsel %vm1309, %v866, 0.0
        %v1314 = vsel %vm1310, %v863, 0.0
        %v1315 = vld [vmem:[%s720 + $0x7] sm:$0x1]
        %v1316 = vlaneseq
        %v1317 = vshrl.u32 %v1316, 7
        %v1318 = vsub.s32 0, %v1317
        %v1319 = vrot.slane %v1315, %v1318
        %v1320 = vmul.f32 %v1311, %v1319
        %v1321 = vmul.f32 %v1312, %v1319
        %v1322 = vmul.f32 %v1313, %v1319
        %v1323 = vmul.f32 %v1314, %v1319
        %v1324 = vadd.f32 %v1282, %v1320
        %v1325 = vadd.f32 %v1283, %v1321
        %v1326 = vadd.f32 %v1284, %v1322
        %v1327 = vadd.f32 %v1285, %v1323
        %vm1328 = vcmp.ge.s32.totalorder %v916, 9
        %vm1329 = vcmp.ge.s32.totalorder %v917, 9
        %vm1330 = vcmp.ge.s32.totalorder %v918, 9
        %vm1331 = vcmp.ge.s32.totalorder %v919, 9
        %v1332 = vsel %vm1328, %v934, 0.0
        %v1333 = vsel %vm1329, %v937, 0.0
        %v1334 = vsel %vm1330, %v936, 0.0
        %v1335 = vsel %vm1331, %v935, 0.0
        %v1336 = vld [vmem:[%s715 + $0x9] sm:$0x1]
        %v1337 = vlaneseq
        %v1338 = vshrl.u32 %v1337, 7
        %v1339 = vsub.s32 0, %v1338
        %v1340 = vrot.slane %v1336, %v1339
        %v1341 = vmul.f32 %v1332, %v1340
        %v1342 = vmul.f32 %v1333, %v1340
        %v1343 = vmul.f32 %v1334, %v1340
        %v1344 = vmul.f32 %v1335, %v1340
        %v1345 = vadd.f32 %v1303, %v1341
        %v1346 = vadd.f32 %v1304, %v1342
        %v1347 = vadd.f32 %v1305, %v1343
        %v1348 = vadd.f32 %v1306, %v1344
        %vm1349 = vcmp.lt.s32.totalorder %v916, 7
        %vm1350 = vcmp.lt.s32.totalorder %v917, 7
        %vm1351 = vcmp.lt.s32.totalorder %v918, 7
        %vm1352 = vcmp.lt.s32.totalorder %v919, 7
        %v1353 = vsel %vm1349, %v965, 0.0
        %v1354 = vsel %vm1350, %v964, 0.0
        %v1355 = vsel %vm1351, %v967, 0.0
        %v1356 = vsel %vm1352, %v966, 0.0
        %v1357 = vld [vmem:[%s720 + $0x8] sm:$0x1]
        %v1358 = vlaneseq
        %v1359 = vshrl.u32 %v1358, 7
        %v1360 = vsub.s32 0, %v1359
        %v1361 = vrot.slane %v1357, %v1360
        %v1362 = vmul.f32 %v1353, %v1361
        %v1363 = vmul.f32 %v1354, %v1361
        %v1364 = vmul.f32 %v1355, %v1361
        %v1365 = vmul.f32 %v1356, %v1361
        %v1366 = vadd.f32 %v1324, %v1362
        %v1367 = vadd.f32 %v1325, %v1363
        %v1368 = vadd.f32 %v1326, %v1364
        %v1369 = vadd.f32 %v1327, %v1365
        %vm1370 = vcmp.ge.s32.totalorder %v916, 10
        %vm1371 = vcmp.ge.s32.totalorder %v917, 10
        %vm1372 = vcmp.ge.s32.totalorder %v918, 10
        %vm1373 = vcmp.ge.s32.totalorder %v919, 10
        %v1374 = vsel %vm1370, %v994, 0.0
        %v1375 = vsel %vm1371, %v997, 0.0
        %v1376 = vsel %vm1372, %v996, 0.0
        %v1377 = vsel %vm1373, %v995, 0.0
        %v1378 = vld [vmem:[%s715 + $0xa] sm:$0x1]
        %v1379 = vlaneseq
        %v1380 = vshrl.u32 %v1379, 7
        %v1381 = vsub.s32 0, %v1380
        %v1382 = vrot.slane %v1378, %v1381
        %v1383 = vmul.f32 %v1374, %v1382
        %v1384 = vmul.f32 %v1375, %v1382
        %v1385 = vmul.f32 %v1376, %v1382
        %v1386 = vmul.f32 %v1377, %v1382
        %v1387 = vadd.f32 %v1345, %v1383
        %v1388 = vadd.f32 %v1346, %v1384
        %v1389 = vadd.f32 %v1347, %v1385
        %v1390 = vadd.f32 %v1348, %v1386
        %vm1391 = vcmp.lt.s32.totalorder %v916, 6
        %vm1392 = vcmp.lt.s32.totalorder %v917, 6
        %vm1393 = vcmp.lt.s32.totalorder %v918, 6
        %vm1394 = vcmp.lt.s32.totalorder %v919, 6
        %v1395 = vsel %vm1391, %v1025, 0.0
        %v1396 = vsel %vm1392, %v1024, 0.0
        %v1397 = vsel %vm1393, %v1027, 0.0
        %v1398 = vsel %vm1394, %v1026, 0.0
        %v1399 = vld [vmem:[%s720 + $0x9] sm:$0x1]
        %v1400 = vlaneseq
        %v1401 = vshrl.u32 %v1400, 7
        %v1402 = vsub.s32 0, %v1401
        %v1403 = vrot.slane %v1399, %v1402
        %v1404 = vmul.f32 %v1395, %v1403
        %v1405 = vmul.f32 %v1396, %v1403
        %v1406 = vmul.f32 %v1397, %v1403
        %v1407 = vmul.f32 %v1398, %v1403
        %v1408 = vadd.f32 %v1366, %v1404
        %v1409 = vadd.f32 %v1367, %v1405
        %v1410 = vadd.f32 %v1368, %v1406
        %v1411 = vadd.f32 %v1369, %v1407
        %vm1412 = vcmp.ge.s32.totalorder %v916, 11
        %vm1413 = vcmp.ge.s32.totalorder %v917, 11
        %vm1414 = vcmp.ge.s32.totalorder %v918, 11
        %vm1415 = vcmp.ge.s32.totalorder %v919, 11
        %v1416 = vsel %vm1412, %v1054, 0.0
        %v1417 = vsel %vm1413, %v1057, 0.0
        %v1418 = vsel %vm1414, %v1056, 0.0
        %v1419 = vsel %vm1415, %v1055, 0.0
        %v1420 = vld [vmem:[%s715 + $0xb] sm:$0x1]
        %v1421 = vlaneseq
        %v1422 = vshrl.u32 %v1421, 7
        %v1423 = vsub.s32 0, %v1422
        %v1424 = vrot.slane %v1420, %v1423
        %v1425 = vmul.f32 %v1416, %v1424
        %v1426 = vmul.f32 %v1417, %v1424
        %v1427 = vmul.f32 %v1418, %v1424
        %v1428 = vmul.f32 %v1419, %v1424
        %v1429 = vadd.f32 %v1387, %v1425
        %v1430 = vadd.f32 %v1388, %v1426
        %v1431 = vadd.f32 %v1389, %v1427
        %v1432 = vadd.f32 %v1390, %v1428
        %vm1433 = vcmp.lt.s32.totalorder %v916, 5
        %vm1434 = vcmp.lt.s32.totalorder %v917, 5
        %vm1435 = vcmp.lt.s32.totalorder %v918, 5
        %vm1436 = vcmp.lt.s32.totalorder %v919, 5
        %v1437 = vsel %vm1433, %v1085, 0.0
        %v1438 = vsel %vm1434, %v1084, 0.0
        %v1439 = vsel %vm1435, %v1087, 0.0
        %v1440 = vsel %vm1436, %v1086, 0.0
        %v1441 = vld [vmem:[%s720 + $0xa] sm:$0x1]
        %v1442 = vlaneseq
        %v1443 = vshrl.u32 %v1442, 7
        %v1444 = vsub.s32 0, %v1443
        %v1445 = vrot.slane %v1441, %v1444
        %v1446 = vmul.f32 %v1437, %v1445
        %v1447 = vmul.f32 %v1438, %v1445
        %v1448 = vmul.f32 %v1439, %v1445
        %v1449 = vmul.f32 %v1440, %v1445
        %v1450 = vadd.f32 %v1408, %v1446
        %v1451 = vadd.f32 %v1409, %v1447
        %v1452 = vadd.f32 %v1410, %v1448
        %v1453 = vadd.f32 %v1411, %v1449
        %vm1454 = vcmp.ge.s32.totalorder %v916, 12
        %vm1455 = vcmp.ge.s32.totalorder %v917, 12
        %vm1456 = vcmp.ge.s32.totalorder %v918, 12
        %vm1457 = vcmp.ge.s32.totalorder %v919, 12
        %v1458 = vsel %vm1454, %v1114, 0.0
        %v1459 = vsel %vm1455, %v1117, 0.0
        %v1460 = vsel %vm1456, %v1116, 0.0
        %v1461 = vsel %vm1457, %v1115, 0.0
        %v1462 = vld [vmem:[%s715 + $0xc] sm:$0x1]
        %v1463 = vlaneseq
        %v1464 = vshrl.u32 %v1463, 7
        %v1465 = vsub.s32 0, %v1464
        %v1466 = vrot.slane %v1462, %v1465
        %v1467 = vmul.f32 %v1458, %v1466
        %v1468 = vmul.f32 %v1459, %v1466
        %v1469 = vmul.f32 %v1460, %v1466
        %v1470 = vmul.f32 %v1461, %v1466
        %v1471 = vadd.f32 %v1429, %v1467
        %v1472 = vadd.f32 %v1430, %v1468
        %v1473 = vadd.f32 %v1431, %v1469
        %v1474 = vadd.f32 %v1432, %v1470
        %vm1475 = vcmp.lt.s32.totalorder %v916, 4
        %vm1476 = vcmp.lt.s32.totalorder %v917, 4
        %vm1477 = vcmp.lt.s32.totalorder %v918, 4
        %vm1478 = vcmp.lt.s32.totalorder %v919, 4
        %v1479 = vsel %vm1475, %v1115, 0.0
        %v1480 = vsel %vm1476, %v1114, 0.0
        %v1481 = vsel %vm1477, %v1117, 0.0
        %v1482 = vsel %vm1478, %v1116, 0.0
        %v1483 = vld [vmem:[%s720 + $0xb] sm:$0x1]
        %v1484 = vlaneseq
        %v1485 = vshrl.u32 %v1484, 7
        %v1486 = vsub.s32 0, %v1485
        %v1487 = vrot.slane %v1483, %v1486
        %v1488 = vmul.f32 %v1479, %v1487
        %v1489 = vmul.f32 %v1480, %v1487
        %v1490 = vmul.f32 %v1481, %v1487
        %v1491 = vmul.f32 %v1482, %v1487
        %v1492 = vadd.f32 %v1450, %v1488
        %v1493 = vadd.f32 %v1451, %v1489
        %v1494 = vadd.f32 %v1452, %v1490
        %v1495 = vadd.f32 %v1453, %v1491
        %vm1496 = vcmp.ge.s32.totalorder %v916, 13
        %vm1497 = vcmp.ge.s32.totalorder %v917, 13
        %vm1498 = vcmp.ge.s32.totalorder %v918, 13
        %vm1499 = vcmp.ge.s32.totalorder %v919, 13
        %v1500 = vsel %vm1496, %v1084, 0.0
        %v1501 = vsel %vm1497, %v1087, 0.0
        %v1502 = vsel %vm1498, %v1086, 0.0
        %v1503 = vsel %vm1499, %v1085, 0.0
        %v1504 = vld [vmem:[%s715 + $0xd] sm:$0x1]
        %v1505 = vlaneseq
        %v1506 = vshrl.u32 %v1505, 7
        %v1507 = vsub.s32 0, %v1506
        %v1508 = vrot.slane %v1504, %v1507
        %v1509 = vmul.f32 %v1500, %v1508
        %v1510 = vmul.f32 %v1501, %v1508
        %v1511 = vmul.f32 %v1502, %v1508
        %v1512 = vmul.f32 %v1503, %v1508
        %v1513 = vadd.f32 %v1471, %v1509
        %v1514 = vadd.f32 %v1472, %v1510
        %v1515 = vadd.f32 %v1473, %v1511
        %v1516 = vadd.f32 %v1474, %v1512
        %vm1517 = vcmp.lt.s32.totalorder %v916, 3
        %vm1518 = vcmp.lt.s32.totalorder %v917, 3
        %vm1519 = vcmp.lt.s32.totalorder %v918, 3
        %vm1520 = vcmp.lt.s32.totalorder %v919, 3
        %v1521 = vsel %vm1517, %v1055, 0.0
        %v1522 = vsel %vm1518, %v1054, 0.0
        %v1523 = vsel %vm1519, %v1057, 0.0
        %v1524 = vsel %vm1520, %v1056, 0.0
        %v1525 = vld [vmem:[%s720 + $0xc] sm:$0x1]
        %v1526 = vlaneseq
        %v1527 = vshrl.u32 %v1526, 7
        %v1528 = vsub.s32 0, %v1527
        %v1529 = vrot.slane %v1525, %v1528
        %v1530 = vmul.f32 %v1521, %v1529
        %v1531 = vmul.f32 %v1522, %v1529
        %v1532 = vmul.f32 %v1523, %v1529
        %v1533 = vmul.f32 %v1524, %v1529
        %v1534 = vadd.f32 %v1492, %v1530
        %v1535 = vadd.f32 %v1493, %v1531
        %v1536 = vadd.f32 %v1494, %v1532
        %v1537 = vadd.f32 %v1495, %v1533
        %vm1538 = vcmp.ge.s32.totalorder %v916, 14
        %vm1539 = vcmp.ge.s32.totalorder %v917, 14
        %vm1540 = vcmp.ge.s32.totalorder %v918, 14
        %vm1541 = vcmp.ge.s32.totalorder %v919, 14
        %v1542 = vsel %vm1538, %v1024, 0.0
        %v1543 = vsel %vm1539, %v1027, 0.0
        %v1544 = vsel %vm1540, %v1026, 0.0
        %v1545 = vsel %vm1541, %v1025, 0.0
        %v1546 = vld [vmem:[%s715 + $0xe] sm:$0x1]
        %v1547 = vlaneseq
        %v1548 = vshrl.u32 %v1547, 7
        %v1549 = vsub.s32 0, %v1548
        %v1550 = vrot.slane %v1546, %v1549
        %v1551 = vmul.f32 %v1542, %v1550
        %v1552 = vmul.f32 %v1543, %v1550
        %v1553 = vmul.f32 %v1544, %v1550
        %v1554 = vmul.f32 %v1545, %v1550
        %v1555 = vadd.f32 %v1513, %v1551
        %v1556 = vadd.f32 %v1514, %v1552
        %v1557 = vadd.f32 %v1515, %v1553
        %v1558 = vadd.f32 %v1516, %v1554
        %vm1559 = vcmp.lt.s32.totalorder %v916, 2
        %vm1560 = vcmp.lt.s32.totalorder %v917, 2
        %vm1561 = vcmp.lt.s32.totalorder %v918, 2
        %vm1562 = vcmp.lt.s32.totalorder %v919, 2
        %v1563 = vsel %vm1559, %v995, 0.0
        %v1564 = vsel %vm1560, %v994, 0.0
        %v1565 = vsel %vm1561, %v997, 0.0
        %v1566 = vsel %vm1562, %v996, 0.0
        %v1567 = vld [vmem:[%s720 + $0xd] sm:$0x1]
        %v1568 = vlaneseq
        %v1569 = vshrl.u32 %v1568, 7
        %v1570 = vsub.s32 0, %v1569
        %v1571 = vrot.slane %v1567, %v1570
        %v1572 = vmul.f32 %v1563, %v1571
        %v1573 = vmul.f32 %v1564, %v1571
        %v1574 = vmul.f32 %v1565, %v1571
        %v1575 = vmul.f32 %v1566, %v1571
        %v1576 = vadd.f32 %v1534, %v1572
        %v1577 = vadd.f32 %v1535, %v1573
        %v1578 = vadd.f32 %v1536, %v1574
        %v1579 = vadd.f32 %v1537, %v1575
        %vm1580 = vcmp.ge.s32.totalorder %v916, 15
        %vm1581 = vcmp.ge.s32.totalorder %v917, 15
        %vm1582 = vcmp.ge.s32.totalorder %v918, 15
        %vm1583 = vcmp.ge.s32.totalorder %v919, 15
        %v1584 = vsel %vm1580, %v964, 0.0
        %v1585 = vsel %vm1581, %v967, 0.0
        %v1586 = vsel %vm1582, %v966, 0.0
        %v1587 = vsel %vm1583, %v965, 0.0
        %v1588 = vld [vmem:[%s715 + $0xf] sm:$0x1]
        %v1589 = vlaneseq
        %v1590 = vshrl.u32 %v1589, 7
        %v1591 = vsub.s32 0, %v1590
        %v1592 = vrot.slane %v1588, %v1591
        %v1593 = vmul.f32 %v1584, %v1592
        %v1594 = vmul.f32 %v1585, %v1592
        %v1595 = vmul.f32 %v1586, %v1592
        %v1596 = vmul.f32 %v1587, %v1592
        %v1597 = vadd.f32 %v1555, %v1593
        %v1598 = vadd.f32 %v1556, %v1594
        %v1599 = vadd.f32 %v1557, %v1595
        %v1600 = vadd.f32 %v1558, %v1596
        %vm1601 = vcmp.lt.s32.totalorder %v916, 1
        %vm1602 = vcmp.lt.s32.totalorder %v917, 1
        %vm1603 = vcmp.lt.s32.totalorder %v918, 1
        %vm1604 = vcmp.lt.s32.totalorder %v919, 1
        %v1605 = vsel %vm1601, %v935, 0.0
        %v1606 = vsel %vm1602, %v934, 0.0
        %v1607 = vsel %vm1603, %v937, 0.0
        %v1608 = vsel %vm1604, %v936, 0.0
        %v1609 = vld [vmem:[%s720 + $0xe] sm:$0x1]
        %v1610 = vlaneseq
        %v1611 = vshrl.u32 %v1610, 7
        %v1612 = vsub.s32 0, %v1611
        %v1613 = vrot.slane %v1609, %v1612
        %v1614 = vmul.f32 %v1605, %v1613
        %v1615 = vmul.f32 %v1606, %v1613
        %v1616 = vmul.f32 %v1607, %v1613
        %v1617 = vmul.f32 %v1608, %v1613
        %v1618 = vadd.f32 %v1576, %v1614
        %v1619 = vadd.f32 %v1577, %v1615
        %v1620 = vadd.f32 %v1578, %v1616
        %v1621 = vadd.f32 %v1579, %v1617
        %v1622 = vadd.f32 %v1597, %v1618
        %v1623 = vadd.f32 %v1598, %v1619
        %v1624 = vadd.f32 %v1599, %v1620
        %v1625 = vadd.f32 %v1600, %v1621
        %v1626 = vld [vmem:[%s723] sm:$0x1]
        %v1628 = vlaneseq
        %v1629 = vshrl.u32 %v1628, 7
        %v1630 = vsub.s32 0, %v1629
        %v1631 = vrot.slane %v1626, %v1630
        %v1633 = vmul.f32 %v863, %v1631
        %v1634 = vmul.f32 %v864, %v1631
        %v1635 = vmul.f32 %v865, %v1631
        %v1636 = vmul.f32 %v866, %v1631
        %v1637 = vadd.f32 %v1622, %v1633
        %v1638 = vadd.f32 %v1623, %v1634
        %v1639 = vadd.f32 %v1624, %v1635
        %v1640 = vadd.f32 %v1625, %v1636
        %v1641 = vmul.f32 %v1637, %v1637
        %v1642 = vmul.f32 %v1638, %v1638
        %v1643 = vmul.f32 %v1639, %v1639
        %v1644 = vmul.f32 %v1640, %v1640
        %v1645 = vmul.f32 %v1637, %v1641
        %v1646 = vmul.f32 %v1638, %v1642
        %v1647 = vmul.f32 %v1639, %v1643
        %v1648 = vmul.f32 %v1640, %v1644
        %v1649 = vmul.f32 %v1645, 0.044715
        %v1650 = vmul.f32 %v1646, 0.044715
        %v1651 = vmul.f32 %v1647, 0.044715
        %v1652 = vmul.f32 %v1648, 0.044715
        %v1653 = vadd.f32 %v1637, %v1649
        %v1654 = vadd.f32 %v1638, %v1650
        %v1655 = vadd.f32 %v1639, %v1651
        %v1656 = vadd.f32 %v1640, %v1652
        %v1657 = vmul.f32 %v1653, 0.7978846
        %v1658 = vmul.f32 %v1654, 0.7978846
        %v1659 = vmul.f32 %v1655, 0.7978846
        %v1660 = vmul.f32 %v1656, 0.7978846
        %v1661 = vtanh.pop %v1657
        %v1662 = vtanh.pop %v1658
        %v1663 = vtanh.pop %v1659
        %v1664 = vtanh.pop %v1660
        %v1665 = vadd.f32 %v1661, 1.0
        %v1666 = vadd.f32 %v1662, 1.0
        %v1667 = vadd.f32 %v1663, 1.0
        %v1668 = vadd.f32 %v1664, 1.0
        %v1669 = vmul.f32 %v1665, 0.5
        %v1670 = vmul.f32 %v1666, 0.5
        %v1671 = vmul.f32 %v1667, 0.5
        %v1672 = vmul.f32 %v1668, 0.5
        %v1673 = vmul.f32 %v1637, %v1669
        %v1674 = vmul.f32 %v1638, %v1670
        %v1675 = vmul.f32 %v1639, %v1671
        %v1676 = vmul.f32 %v1640, %v1672
        %v1677 = vpack.c.bf16 %v1674, %v1673
        %v1678 = vpack.c.bf16 %v1676, %v1675
        %v1679 = vld [vmem:[%s578] sm:$0xf]
        %v1680 = vld [vmem:[%s578 + $0x4] sm:$0xf]
        %v1681 = vld [vmem:[%s578 + $0x8] sm:$0xf]
        %v1682 = vld [vmem:[%s578 + $0xc] sm:$0xf]
        %v1683 = vld [vmem:[%s578 + $0x10] sm:$0xf]
        %v1684 = vld [vmem:[%s578 + $0x14] sm:$0xf]
        %v1685 = vld [vmem:[%s578 + $0x18] sm:$0xf]
        %v1686 = vld [vmem:[%s578 + $0x1c] sm:$0xf]
        %v1687 = vld [vmem:[%s578 + $0x20] sm:$0xf]
        %v1688 = vld [vmem:[%s578 + $0x24] sm:$0xf]
        %v1689 = vld [vmem:[%s578 + $0x28] sm:$0xf]
        %v1690 = vld [vmem:[%s578 + $0x2c] sm:$0xf]
        %v1691 = vld [vmem:[%s578 + $0x30] sm:$0xf]
        %v1692 = vld [vmem:[%s578 + $0x34] sm:$0xf]
        %v1693 = vld [vmem:[%s578 + $0x38] sm:$0xf]
        %v1694 = vld [vmem:[%s578 + $0x3c] sm:$0xf]
        %v1695 = vld [vmem:[%s726] sm:$0x1]
        %v1697 = vlaneseq
        %v1698 = vshrl.u32 %v1697, 7
        %v1699 = vsub.s32 0, %v1698
        %v1700 = vrot.slane %v1695, %v1699
        %v1718 = vunpack.c.l.b16 %v1679
        %v1719 = vunpack.c.l.b16 %v1680
        %v1720 = vunpack.c.l.b16 %v1681
        %v1721 = vunpack.c.l.b16 %v1682
        %v1722 = vunpack.c.l.b16 %v1683
        %v1723 = vunpack.c.l.b16 %v1684
        %v1724 = vunpack.c.l.b16 %v1685
        %v1725 = vunpack.c.l.b16 %v1686
        %v1726 = vunpack.c.l.b16 %v1687
        %v1727 = vunpack.c.l.b16 %v1688
        %v1728 = vunpack.c.l.b16 %v1689
        %v1729 = vunpack.c.l.b16 %v1690
        %v1730 = vunpack.c.l.b16 %v1691
        %v1731 = vunpack.c.l.b16 %v1692
        %v1732 = vunpack.c.l.b16 %v1693
        %v1733 = vunpack.c.l.b16 %v1694
        %v1734 = vpack.c.b16 %v1719, %v1718
        %v1735 = vpack.c.b16 %v1721, %v1720
        %v1736 = vpack.c.b16 %v1723, %v1722
        %v1737 = vpack.c.b16 %v1725, %v1724
        %v1738 = vpack.c.b16 %v1727, %v1726
        %v1739 = vpack.c.b16 %v1729, %v1728
        %v1740 = vpack.c.b16 %v1731, %v1730
        %v1741 = vpack.c.b16 %v1733, %v1732
        %1750 = vmatprep.subr.bf16.mxu0 0
        %1751 = vmatpush1.bf16.msra.mxu0 %v1734
        %1752 = vmatprep.subr.bf16.mxu0 0
        %1753 = vmatpush1.bf16.msra.mxu0 %v1735
        %1754 = vmatprep.subr.bf16.mxu0 0
        %1755 = vmatpush1.bf16.msra.mxu0 %v1736
        %1756 = vmatprep.subr.bf16.mxu0 0
        %1757 = vmatpush1.bf16.msra.mxu0 %v1737
        %1758 = vmatprep.subr.bf16.mxu0 0
        %1759 = vmatpush1.bf16.msra.mxu0 %v1738
        %1760 = vmatprep.subr.bf16.mxu0 0
        %1761 = vmatpush1.bf16.msra.mxu0 %v1739
        %1762 = vmatprep.subr.bf16.mxu0 0
        %1763 = vmatpush1.bf16.msra.mxu0 %v1740
        %1764 = vmatprep.subr.bf16.mxu0 0
        %1765 = vmatpush1.bf16.msra.mxu0 %v1741
        %1766 = vmatprep.subr.bf16.mxu0 0
        %1767 = vmatpush1.bf16.msra.mxu0 0
        %1768 = vmatprep.subr.bf16.mxu0 0
        %1769 = vmatpush1.bf16.msra.mxu0 0
        %1770 = vmatprep.subr.bf16.mxu0 0
        %1771 = vmatpush1.bf16.msra.mxu0 0
        %1772 = vmatprep.subr.bf16.mxu0 0
        %1773 = vmatpush1.bf16.msra.mxu0 0
        %1774 = vmatprep.subr.bf16.mxu0 0
        %1775 = vmatpush1.bf16.msra.mxu0 0
        %1776 = vmatprep.subr.bf16.mxu0 0
        %1777 = vmatpush1.bf16.msra.mxu0 0
        %1778 = vmatprep.subr.bf16.mxu0 0
        %1779 = vmatpush1.bf16.msra.mxu0 0
        %1780 = vmatprep.subr.bf16.mxu0 0
        %1781 = vmatpush1.bf16.msra.mxu0 0
        %1782 = vmatprep.mubr.bf16.mxu0 0
        %1783 = vmatmul.mubr.bf16.gmra.mrb[0].mxu0 %v1677
        %v1784 = vpop.f32.mrb[0].mxu0
        %v1785 = vadd.f32 %v1700, %v1784
        %v1786 = vpop.f32.mrb[0].mxu0
        %v1787 = vpop.f32.mrb[0].mxu0
        %v1788 = vadd.f32 %v1700, %v1787
        %v1789 = vpop.f32.mrb[0].mxu0
        %1790 = vmatprep.mubr.bf16.mxu0 0
        %1791 = vmatmul.mubr.bf16.gmra.mrb[0].mxu0 %v1678
        %v1792 = vpop.f32.mrb[0].mxu0
        %v1793 = vadd.f32 %v1700, %v1792
        %v1794 = vpop.f32.mrb[0].mxu0
        %v1795 = vpop.f32.mrb[0].mxu0
        %v1796 = vadd.f32 %v1700, %v1795
        %v1797 = vpop.f32.mrb[0].mxu0
        %1798 = vdwg.mxu0
        %v1799 = vadd.f32 %v1785, %v785
        %v1800 = vadd.f32 %v1788, %v786
        %v1801 = vadd.f32 %v1793, %v787
        %v1802 = vadd.f32 %v1796, %v788
        %v1803 = vld [vmem:[%s703] sm:$0xff]
        %v1804 = vld [vmem:[%s703 + $0x8] sm:$0xff]
        %v1805 = vld [vmem:[%s703 + $0x10] sm:$0xff]
        %v1806 = vld [vmem:[%s703 + $0x18] sm:$0xff]
        %v1807 = vpack.c.bf16 %v1804, %v1803
        %v1808 = vpack.c.bf16 %v1806, %v1805
        %v1809 = vld [vmem:[%s730] sm:$0x3]
        %vm1810 = vcmask 23552
        %v1812 = vsel %vm1810, %v1807, 0
        %v1815 = vsel %vm1810, %v1808, 0
        %vm1817 = vcmask 1040384
        %vm1818 = vcmask 1041408
        %v1819 = vsel %vm1817, 4294967295, 65535
        %v1820 = vsel %vm1818, %v1819, 0
        %v1822 = vand.u32 %v1809, %v1820
        %1824 = vmatprep.subr.bf16.mxu0 0
        %1825 = vmatpush1.bf16.msra.mxu0 %v1822
        %1826 = vmatprep.subr.bf16.mxu0 0
        %1827 = vmatpush1.bf16.msra.mxu0 0
        %1828 = vmatprep.subr.bf16.mxu0 0
        %1829 = vmatpush1.bf16.msra.mxu0 0
        %1830 = vmatprep.subr.bf16.mxu0 0
        %1831 = vmatpush1.bf16.msra.mxu0 0
        %1832 = vmatprep.subr.bf16.mxu0 0
        %1833 = vmatpush1.bf16.msra.mxu0 0
        %1834 = vmatprep.subr.bf16.mxu0 0
        %1835 = vmatpush1.bf16.msra.mxu0 0
        %1836 = vmatprep.subr.bf16.mxu0 0
        %1837 = vmatpush1.bf16.msra.mxu0 0
        %1838 = vmatprep.subr.bf16.mxu0 0
        %1839 = vmatpush1.bf16.msra.mxu0 0
        %1840 = vmatprep.subr.bf16.mxu0 0
        %1841 = vmatpush1.bf16.msra.mxu0 0
        %1842 = vmatprep.subr.bf16.mxu0 0
        %1843 = vmatpush1.bf16.msra.mxu0 0
        %1844 = vmatprep.subr.bf16.mxu0 0
        %1845 = vmatpush1.bf16.msra.mxu0 0
        %1846 = vmatprep.subr.bf16.mxu0 0
        %1847 = vmatpush1.bf16.msra.mxu0 0
        %1848 = vmatprep.subr.bf16.mxu0 0
        %1849 = vmatpush1.bf16.msra.mxu0 0
        %1850 = vmatprep.subr.bf16.mxu0 0
        %1851 = vmatpush1.bf16.msra.mxu0 0
        %1852 = vmatprep.subr.bf16.mxu0 0
        %1853 = vmatpush1.bf16.msra.mxu0 0
        %1854 = vmatprep.subr.bf16.mxu0 0
        %1855 = vmatpush1.bf16.msra.mxu0 0
        %1856 = vmatprep.mubr.bf16.mxu0 0
        %1857 = vmatmul.mubr.bf16.gmra.mrb[0].mxu0 %v1812
        %v1858 = vpop.f32.mrb[0].mxu0
        %v1859 = vadd.f32 0.0, %v1858
        %v1860 = vpop.f32.mrb[0].mxu0
        %v1861 = vpop.f32.mrb[0].mxu0
        %v1862 = vadd.f32 0.0, %v1861
        %v1863 = vpop.f32.mrb[0].mxu0
        %1864 = vmatprep.mubr.bf16.mxu0 0
        %1865 = vmatmul.mubr.bf16.gmra.mrb[0].mxu0 %v1815
        %v1866 = vpop.f32.mrb[0].mxu0
        %v1867 = vadd.f32 0.0, %v1866
        %v1868 = vpop.f32.mrb[0].mxu0
        %v1869 = vpop.f32.mrb[0].mxu0
        %v1870 = vadd.f32 0.0, %v1869
        %v1871 = vpop.f32.mrb[0].mxu0
        %1872 = vdwg.mxu0
        %v1873 = vadd.f32 %v1799, %v1859
        %v1874 = vadd.f32 %v1800, %v1862
        %v1875 = vadd.f32 %v1801, %v1867
        %v1876 = vadd.f32 %v1802, %v1870
        %v1877 = vld [vmem:[%s733] sm:$0x1]
        %v1879 = vlaneseq
        %v1880 = vshrl.u32 %v1879, 7
        %v1881 = vsub.s32 0, %v1880
        %v1882 = vrot.slane %v1877, %v1881
        %v1884 = vadd.f32 %v1873, %v1882
        %v1885 = vadd.f32 %v1874, %v1882
        %v1886 = vadd.f32 %v1875, %v1882
        %v1887 = vadd.f32 %v1876, %v1882
        %v1888 = vtanh.pop %v1884
        %v1889 = vtanh.pop %v1885
        %v1890 = vtanh.pop %v1886
        %v1891 = vtanh.pop %v1887
        %v1892 = vxor.u32 %v1884, 2147483648
        %v1893 = vxor.u32 %v1885, 2147483648
        %v1894 = vxor.u32 %v1886, 2147483648
        %v1895 = vxor.u32 %v1887, 2147483648
        %v1896 = vmul.f32 %v1892, 1.442695
        %v1897 = vpow.pop %v1896
        %v1898 = vmul.f32 %v1893, 1.442695
        %v1899 = vpow.pop %v1898
        %v1900 = vmul.f32 %v1894, 1.442695
        %v1901 = vpow.pop %v1900
        %v1902 = vmul.f32 %v1895, 1.442695
        %v1903 = vpow.pop %v1902
        %v1904 = vadd.f32 %v1897, 1.0
        %v1905 = vadd.f32 %v1899, 1.0
        %v1906 = vadd.f32 %v1901, 1.0
        %v1907 = vadd.f32 %v1903, 1.0
        %v1908 = vrcp.pop %v1904
        %v1909 = vmul.f32 1.0, %v1908
        %v1910 = vrcp.pop %v1905
        %v1911 = vmul.f32 1.0, %v1910
        %v1912 = vrcp.pop %v1906
        %v1913 = vmul.f32 1.0, %v1912
        %v1914 = vrcp.pop %v1907
        %v1915 = vmul.f32 1.0, %v1914
        %v1916 = vmul.f32 %v1888, %v1909
        %v1917 = vmul.f32 %v1889, %v1911
        %v1918 = vmul.f32 %v1890, %v1913
        %v1919 = vmul.f32 %v1891, %v1915
        %v1920 = vpack.c.bf16 %v1917, %v1916
        %v1921 = vpack.c.bf16 %v1919, %v1918
        %v1922 = vld [vmem:[%s738] sm:$0xff]
        %v1923 = vld [vmem:[%s738 + $0x8] sm:$0xff]
        %v1924 = vld [vmem:[%s738 + $0x10] sm:$0xff]
        %v1925 = vld [vmem:[%s738 + $0x18] sm:$0xff]
        %v1926 = vld [vmem:[%s738 + $0x20] sm:$0xff]
        %v1927 = vld [vmem:[%s738 + $0x28] sm:$0xff]
        %v1928 = vld [vmem:[%s738 + $0x30] sm:$0xff]
        %v1929 = vld [vmem:[%s738 + $0x38] sm:$0xff]
        %v1930 = vld [vmem:[%s738 + $0x40] sm:$0xff]
        %v1931 = vld [vmem:[%s738 + $0x48] sm:$0xff]
        %v1932 = vld [vmem:[%s738 + $0x50] sm:$0xff]
        %v1933 = vld [vmem:[%s738 + $0x58] sm:$0xff]
        %v1934 = vld [vmem:[%s738 + $0x60] sm:$0xff]
        %v1935 = vld [vmem:[%s738 + $0x68] sm:$0xff]
        %v1936 = vld [vmem:[%s738 + $0x70] sm:$0xff]
        %v1937 = vld [vmem:[%s738 + $0x78] sm:$0xff]
        %v1938 = vld [vmem:[%s742] sm:$0x3]
        %v1940 = vlaneseq
        %v1941 = vshrl.u32 %v1940, 7
        %v1942 = vsub.s32 0, %v1941
        %v1943 = vrot.slane %v1938, %v1942
        %v1944 = vlaneseq
        %v1945 = vshrl.u32 %v1944, 7
        %v1946 = vsub.s32 1, %v1945
        %v1947 = vrot.slane %v1938, %v1946
        %v1966 = vunpack.c.l.b16 %v1922
        %v1967 = vunpack.c.h.b16 %v1922
        %v1968 = vunpack.c.l.b16 %v1923
        %v1969 = vunpack.c.h.b16 %v1923
        %v1970 = vunpack.c.l.b16 %v1924
        %v1971 = vunpack.c.h.b16 %v1924
        %v1972 = vunpack.c.l.b16 %v1925
        %v1973 = vunpack.c.h.b16 %v1925
        %v1974 = vunpack.c.l.b16 %v1926
        %v1975 = vunpack.c.h.b16 %v1926
        %v1976 = vunpack.c.l.b16 %v1927
        %v1977 = vunpack.c.h.b16 %v1927
        %v1978 = vunpack.c.l.b16 %v1928
        %v1979 = vunpack.c.h.b16 %v1928
        %v1980 = vunpack.c.l.b16 %v1929
        %v1981 = vunpack.c.h.b16 %v1929
        %v1982 = vunpack.c.l.b16 %v1930
        %v1983 = vunpack.c.h.b16 %v1930
        %v1984 = vunpack.c.l.b16 %v1931
        %v1985 = vunpack.c.h.b16 %v1931
        %v1986 = vunpack.c.l.b16 %v1932
        %v1987 = vunpack.c.h.b16 %v1932
        %v1988 = vunpack.c.l.b16 %v1933
        %v1989 = vunpack.c.h.b16 %v1933
        %v1990 = vunpack.c.l.b16 %v1934
        %v1991 = vunpack.c.h.b16 %v1934
        %v1992 = vunpack.c.l.b16 %v1935
        %v1993 = vunpack.c.h.b16 %v1935
        %v1994 = vunpack.c.l.b16 %v1936
        %v1995 = vunpack.c.h.b16 %v1936
        %v1996 = vunpack.c.l.b16 %v1937
        %v1997 = vunpack.c.h.b16 %v1937
        %v1998 = vpack.c.b16 %v1968, %v1966
        %v1999 = vpack.c.b16 %v1969, %v1967
        %v2000 = vpack.c.b16 %v1972, %v1970
        %v2001 = vpack.c.b16 %v1973, %v1971
        %v2002 = vpack.c.b16 %v1976, %v1974
        %v2003 = vpack.c.b16 %v1977, %v1975
        %v2004 = vpack.c.b16 %v1980, %v1978
        %v2005 = vpack.c.b16 %v1981, %v1979
        %v2006 = vpack.c.b16 %v1984, %v1982
        %v2007 = vpack.c.b16 %v1985, %v1983
        %v2008 = vpack.c.b16 %v1988, %v1986
        %v2009 = vpack.c.b16 %v1989, %v1987
        %v2010 = vpack.c.b16 %v1992, %v1990
        %v2011 = vpack.c.b16 %v1993, %v1991
        %v2012 = vpack.c.b16 %v1996, %v1994
        %v2013 = vpack.c.b16 %v1997, %v1995
        %2030 = vmatprep.subr.bf16.mxu0 %v1999
        %2031 = vmatpush1.bf16.msra.mxu0 %v1998
        %2032 = vmatprep.subr.bf16.mxu0 %v2001
        %2033 = vmatpush1.bf16.msra.mxu0 %v2000
        %2034 = vmatprep.subr.bf16.mxu0 %v2003
        %2035 = vmatpush1.bf16.msra.mxu0 %v2002
        %2036 = vmatprep.subr.bf16.mxu0 %v2005
        %2037 = vmatpush1.bf16.msra.mxu0 %v2004
        %2038 = vmatprep.subr.bf16.mxu0 %v2007
        %2039 = vmatpush1.bf16.msra.mxu0 %v2006
        %2040 = vmatprep.subr.bf16.mxu0 %v2009
        %2041 = vmatpush1.bf16.msra.mxu0 %v2008
        %2042 = vmatprep.subr.bf16.mxu0 %v2011
        %2043 = vmatpush1.bf16.msra.mxu0 %v2010
        %2044 = vmatprep.subr.bf16.mxu0 %v2013
        %2045 = vmatpush1.bf16.msra.mxu0 %v2012
        %2046 = vmatprep.subr.bf16.mxu0 0
        %2047 = vmatpush1.bf16.msra.mxu0 0
        %2048 = vmatprep.subr.bf16.mxu0 0
        %2049 = vmatpush1.bf16.msra.mxu0 0
        %2050 = vmatprep.subr.bf16.mxu0 0
        %2051 = vmatpush1.bf16.msra.mxu0 0
        %2052 = vmatprep.subr.bf16.mxu0 0
        %2053 = vmatpush1.bf16.msra.mxu0 0
        %2054 = vmatprep.subr.bf16.mxu0 0
        %2055 = vmatpush1.bf16.msra.mxu0 0
        %2056 = vmatprep.subr.bf16.mxu0 0
        %2057 = vmatpush1.bf16.msra.mxu0 0
        %2058 = vmatprep.subr.bf16.mxu0 0
        %2059 = vmatpush1.bf16.msra.mxu0 0
        %2060 = vmatprep.subr.bf16.mxu0 0
        %2061 = vmatpush1.bf16.msra.mxu0 0
        %2062 = vmatprep.mubr.bf16.mxu0 0
        %2063 = vmatmul.mubr.bf16.gmra.mrb[0].mxu0 %v1920
        %v2064 = vpop.f32.mrb[0].mxu0
        %v2065 = vadd.f32 %v1943, %v2064
        %v2066 = vpop.f32.mrb[0].mxu0
        %v2067 = vadd.f32 %v1947, %v2066
        %v2068 = vpop.f32.mrb[0].mxu0
        %v2069 = vadd.f32 %v1943, %v2068
        %v2070 = vpop.f32.mrb[0].mxu0
        %v2071 = vadd.f32 %v1947, %v2070
        %2072 = vmatprep.mubr.bf16.mxu0 0
        %2073 = vmatmul.mubr.bf16.gmra.mrb[0].mxu0 %v1921
        %v2074 = vpop.f32.mrb[0].mxu0
        %v2075 = vadd.f32 %v1943, %v2074
        %v2076 = vpop.f32.mrb[0].mxu0
        %v2077 = vadd.f32 %v1947, %v2076
        %v2078 = vpop.f32.mrb[0].mxu0
        %v2079 = vadd.f32 %v1943, %v2078
        %v2080 = vpop.f32.mrb[0].mxu0
        %v2081 = vadd.f32 %v1947, %v2080
        %2082 = vdwg.mxu0
        %v2083 = vadd.f32 %v2065, %v767
        %v2084 = vadd.f32 %v2069, %v768
        %v2085 = vadd.f32 %v2075, %v769
        %v2086 = vadd.f32 %v2079, %v770
        %2087 = vst [vmem:[#allocation2] sm:$0xff] %v2083
        %2088 = vst [vmem:[#allocation2 + $0x8] sm:$0xff] %v2084
        %2089 = vst [vmem:[#allocation2 + $0x10] sm:$0xff] %v2085
        %2090 = vst [vmem:[#allocation2 + $0x18] sm:$0xff] %v2086
        %v2091 = vld [vmem:[%s748] sm:$0xff]
        %v2092 = vld [vmem:[%s748 + $0x8] sm:$0xff]
        %v2093 = vld [vmem:[%s748 + $0x10] sm:$0xff]
        %v2094 = vld [vmem:[%s748 + $0x18] sm:$0xff]
        %v2095 = vadd.f32 %v2091, %v2067
        %v2096 = vadd.f32 %v2092, %v2071
        %v2097 = vadd.f32 %v2093, %v2077
        %v2098 = vadd.f32 %v2094, %v2081
        %2099 = vst [vmem:[%s748] sm:$0xff] %v2095
        %2100 = vst [vmem:[%s748 + $0x8] sm:$0xff] %v2096
        %2101 = vst [vmem:[%s748 + $0x10] sm:$0xff] %v2097
        %2102 = vst [vmem:[%s748 + $0x18] sm:$0xff] %v2098
        %s2103 = smul.u32 2, %s32
        %p2104 = scmp.lt.s32.totalorder %s2103, 1
        %s2105 = scalar_select %p2104, %s2103, 1
        %s2106 = smul.addr %s2105, 2
        %s2107 = smul.addr %s2106, 8
        %s2108 = scalar_lea.vmem %s14, %s2107
        // Predicated region
        $region85: #{backbone_forward.8} parent=75 // pred_check
          %p2109 = pneg %p424
        $region86: #{backbone_forward.8} parent=75 // pred_check_branch
          %2111 = sbr.rel (%p2109) target = $region88
        $region87: #{backbone_forward.8} parent=75 // pred_region
          %s2112 = smul.u32 2, %s32
        $region88: #{backbone_forward.8} parent=75 // pred_fallthru
          _
        // Predicated region
        $region89: #{backbone_forward.8} parent=75 // pred_check
          %p2113 = pneg %p424
        $region90: #{backbone_forward.8} parent=75 // pred_check_branch
          %2115 = sbr.rel (%p2113) target = $region92
        $region91: #{backbone_forward.8} parent=75 // pred_region
          %s2116 = smul.u32 2, %s32
          %p2117 = scmp.lt.s32.totalorder %s2116, 1
          %s2118 = scalar_select %p2117, %s2116, 1
          %s2119 = smul.addr %s2118, 2
          %s2120 = smul.addr %s2119, 8
          %s2121 = scalar_lea.vmem %s14, %s2120
        $region92: #{backbone_forward.8} parent=75 // pred_fallthru
          _
      $region76: #{backbone_forward.8} parent=5 // pred_fallthru
        _
      %p2122 = scmp.le.s32.totalorder 2, %s23
      // Predicated region
      $region93: #{backbone_forward.8} parent=5 // pred_check
        %p2123 = pneg %p2122
      $region94: #{backbone_forward.8} parent=5 // pred_check_branch
        %2125 = sbr.rel (%p2123) target = $region96
      $region95: #{backbone_forward.8} parent=5 // pred_region
        %s2126 = ssub.s32 %s23, 2
      $region96: #{backbone_forward.8} parent=5 // pred_fallthru
        _
    $region6: #{backbone_forward.8} parent=1 // loop_footer
      %s27 = sadd.s32 1, %s23
    $region7: #{backbone_forward.8} parent=1 // loop_footer_branch
      %22 = sbr.rel target = $region3
    $region8: #{backbone_forward.8} parent=1 // loop_exit
      _
    %2127 = vsyncpa [#allocation4], 1
    %s2128 = scalar_lea.sflag [#allocation4], 1
    %2129 = vsyncpa %s2128, 1

</llo_original>
